<compile_context>
chip_gen: v7x
topology: tpu7x:2x2x1
jax: 0.10.0
libtpu: 0.0.40
codegen_flags: <defaults>
</compile_context>

<pallas_src>
import math
import functools

import jax
import jax.numpy as jnp
from jax.experimental import pallas as pl
from jax.experimental.pallas import tpu as pltpu


# --------------------------------------------------------------------------
# In-kernel helpers
# --------------------------------------------------------------------------
def _layernorm(x, g, b, eps=1e-5):
    mu = jnp.mean(x, axis=-1, keepdims=True)
    var = jnp.mean(jnp.square(x - mu), axis=-1, keepdims=True)
    return (x - mu) * jax.lax.rsqrt(var + eps) * g + b


def _gelu_tanh(x):
    # TODO(synk): torch nn.GELU() default is the exact erf formulation; erf has no
    # guaranteed Mosaic lowering, so the tanh approximation is used (|err| ~1e-3).
    c = math.sqrt(2.0 / math.pi)
    return 0.5 * x * (1.0 + jnp.tanh(c * (x + 0.044715 * x * x * x)))


def _shift_lanes_blocked(v, off, block):
    """result[:, b*block + l] = v[:, b*block + l + off]; zero where l+off leaves [0, block).

    Zero-fill shift implemented with static slices + concat (guaranteed lowering,
    no MXU push, no circular-wrap ambiguity)."""
    nb = v.shape[1] // block
    zc = jnp.zeros((v.shape[0], abs(off)), v.dtype)
    pieces = []
    for b in range(nb):
        blk = v[:, b * block:(b + 1) * block]
        if off > 0:
            pieces.append(jnp.concatenate([blk[:, off:], zc], axis=1))
        else:
            pieces.append(jnp.concatenate([zc, blk[:, :off]], axis=1))
    return jnp.concatenate(pieces, axis=1)


def _shift_rows(v, off):
    """result[s, :] = v[s + off, :]; zero outside."""
    zr = jnp.zeros((abs(off), v.shape[1]), v.dtype)
    if off > 0:
        return jnp.concatenate([v[off:, :], zr], axis=0)
    return jnp.concatenate([zr, v[:off, :]], axis=0)


# --------------------------------------------------------------------------
# The single fused forward kernel (one invocation == whole batch)
# --------------------------------------------------------------------------
def _fused_forward_kernel(x_ref, cls_ref, pe_ref,
                          w1_ref, b1_ref, w2_ref, b2_ref,
                          wqkv_ref, wo_ref, vecs_ref,
                          f1w_ref, f1b_ref, f2w_ref,
                          fbw_ref, fbb_ref, locp_ref,
                          out_ref,
                          *, n_layers, n_heads, d_k, d_v, seq_len, d_model,
                          batch, l_in):
    f32 = jnp.float32
    B, S, D, H, NL = batch, seq_len, d_model, n_heads, n_layers
    Sp = S + 1
    C = S                         # token-conv channels == seq_len
    L0 = l_in
    L1 = L0 // 2
    BL0, BL1, BD = B * L0, B * L1, B * D
    mm = lambda a, b: jnp.dot(a, b, preferred_element_type=f32)

    # ---- Token_module: (Conv1d + BN(eval, folded) + ReLU + MaxPool(2)) x 2 ----
    # Batch is stacked along lanes: x is (C, B*L0).  Convs are im2col'ed: masked
    # zero-fill shifts stacked along sublanes -> ONE matmul per conv.
    x = x_ref[...]
    stk1 = jnp.concatenate(
        [_shift_lanes_blocked(x, -1, L0), x, _shift_lanes_blocked(x, 1, L0)], axis=0)
    y1 = jnp.maximum(mm(w1_ref[...], stk1) + b1_ref[...], 0.0)

    # MaxPool1d(2): pairwise max, then stride-2 compaction with an iota-generated
    # gather matrix (one-time MXU push; not shipped from HBM).
    m1 = jnp.maximum(y1, _shift_lanes_blocked(y1, 1, L0))
    g1 = (jax.lax.broadcasted_iota(jnp.int32, (BL0, BL1), 0)
          == 2 * jax.lax.broadcasted_iota(jnp.int32, (BL0, BL1), 1)).astype(f32)
    p1 = mm(m1, g1)                                            # (C, B*L1)

    taps = [(_shift_lanes_blocked(p1, o, L1) if o else p1) for o in (-2, -1, 0, 1, 2)]
    stk2 = jnp.concatenate(taps, axis=0)
    y2 = jnp.maximum(mm(w2_ref[...], stk2) + b2_ref[...], 0.0)

    m2 = jnp.maximum(y2, _shift_lanes_blocked(y2, 1, L1))
    g2 = (jax.lax.broadcasted_iota(jnp.int32, (BL1, BD), 0)
          == 2 * jax.lax.broadcasted_iota(jnp.int32, (BL1, BD), 1)).astype(f32)
    enc_l = mm(m2, g2)                                         # (S, B*D) lane-batched

    # ---- CLS token + positional encoding (pe row indexed by batch: torch quirk) ----
    blocks = []
    for b in range(B):
        blk = jnp.concatenate([cls_ref[b:b + 1, :], enc_l[:, b * D:(b + 1) * D]], axis=0)
        blocks.append(blk + pe_ref[b:b + 1, :])
    posi = jnp.concatenate(blocks, axis=0)                     # (B*(S+1), D) sublane-batched

    inv_sqrt_dk = 1.0 / math.sqrt(d_k)
    off_k, off_v = H * d_k, 2 * H * d_k
    zrow = jnp.zeros((1, D), f32)

    g = posi
    fb = enc_l
    for l in range(NL):                          # static layer unroll, VMEM-resident
        v5 = vecs_ref[l]                         # [ln1g, ln1b, ln2g, ln2b, f2b]
        # -- Global_module: LN1 -> fused-QKV MHA -> +res -> LN2 -> FFN -> +res --
        xn = _layernorm(posi, v5[0:1, :], v5[1:2, :])
        qkv = mm(xn, wqkv_ref[l])                # (B*Sp, 2*H*dk + H*dv), both batches at once
        wo_l = wo_ref[l]
        mha = []
        for b in range(B):
            r0 = b * Sp
            ctxs = []
            for h in range(H):
                q = qkv[r0:r0 + Sp, h * d_k:(h + 1) * d_k]
                k = qkv[r0:r0 + Sp, off_k + h * d_k:off_k + (h + 1) * d_k]
                v = qkv[r0:r0 + Sp, off_v + h * d_v:off_v + (h + 1) * d_v]
                s = jax.lax.dot_general(q, k, (((1,), (1,)), ((), ())),
                                        preferred_element_type=f32) * inv_sqrt_dk
                s = s - jnp.max(s, axis=-1, keepdims=True)
                p = jnp.exp(s)
                p = p / jnp.sum(p, axis=-1, keepdims=True)
                ctxs.append(mm(p, v))
            # all heads folded through Wo with ONE matmul per batch element
            mha.append(mm(jnp.concatenate(ctxs, axis=1), wo_l))
        att = posi + jnp.concatenate(mha, axis=0)              # residual = pre-LN input
        xn2 = _layernorm(att, v5[2:3, :], v5[3:4, :])
        hmid = _gelu_tanh(mm(xn2, f1w_ref[l]) + f1b_ref[l])
        g = mm(hmid, f2w_ref[l]) + v5[4:5, :] + att

        # -- Local_module (lane-batched (S, B*D)): 1x1 conv+ReLU -> 3x3 conv(+BN)
        #    +ReLU -> (+1x1 BN residual) -> ReLU.  Halo = zero-fill shifts (no matmul).
        lw = lambda j: locp_ref[l, j]
        a = jnp.maximum(lw(0) * enc_l + lw(1), 0.0)
        a_cols = {-1: _shift_lanes_blocked(a, -1, D), 0: a,
                  1: _shift_lanes_blocked(a, 1, D)}
        acc = jnp.zeros((S, BD), f32)
        for oj in (-1, 0, 1):
            av = a_cols[oj]
            for oi in (-1, 0, 1):
                sv = av if oi == 0 else _shift_rows(av, oi)
                acc = acc + lw(2 + (oi + 1) * 3 + (oj + 1)) * sv
        conv_out = jnp.maximum(acc + lw(11), 0.0)
        res = lw(12) * enc_l + lw(13)
        enc_l = jnp.maximum(conv_out + res, 0.0)

        # -- FB_Unit: kernel-1 Conv1d over channels == channel-mix matmul (both batches) --
        fb = mm(fbw_ref[l], enc_l) + fbb_ref[l]                # (S, B*D)

        # -- posi = cat([g[:, :1], g[:, 1:] + fb]): sublane compose, no scatter matmul --
        pieces = []
        for b in range(B):
            pieces.append(zrow)
            pieces.append(fb[:, b * D:(b + 1) * D])
        posi = g + jnp.concatenate(pieces, axis=0)

    # ---- Lane-dense output slab: row 0 = global_future, row 1 = detail_future ----
    gp, fp = [], []
    for b in range(B):
        for si in range(S):
            gp.append(g[b * Sp + 1 + si:b * Sp + 2 + si, :])
            fp.append(fb[si:si + 1, b * D:(b + 1) * D])
    out_ref[...] = jnp.concatenate(
        [jnp.concatenate(gp, axis=1), jnp.concatenate(fp, axis=1)],
        axis=0).astype(out_ref.dtype)


# --------------------------------------------------------------------------
# Host-side constants
# --------------------------------------------------------------------------
def positional_encoding_rows(n_rows, d_model):
    pos = jnp.arange(n_rows, dtype=jnp.float32)[:, None]
    div = jnp.exp(jnp.arange(0, d_model, 2, dtype=jnp.float32)
                  * (-math.log(10000.0) / d_model))
    pe = jnp.zeros((n_rows, d_model), jnp.float32)
    pe = pe.at[:, 0::2].set(jnp.sin(pos * div))
    pe = pe.at[:, 1::2].set(jnp.cos(pos * div))
    return pe


# --------------------------------------------------------------------------
# Parameter initialization (deterministic, torch-shaped, BN folded for eval mode)
# --------------------------------------------------------------------------
def init_params(key, *, seq_len, d_model, d_ff, d_k, d_v, n_heads, n_layers):
    keys = iter(jax.random.split(key, 512))

    def nrm(shape, scale=0.1):
        return (scale * jax.random.normal(next(keys), shape)).astype(jnp.float32)

    bn_s = 1.0 / math.sqrt(1.0 + 1e-5)   # eval-mode BatchNorm, default stats/affine
    C = seq_len
    P = {}
    # Token_module conv weights in torch layout (Cout, Cin, K), BN folded, im2col'ed
    # to (Cout, K*Cin) so W[c, k*C + cin] == w_torch[c, cin, k].
    w1 = nrm((C, C, 3)) * bn_s
    P['tok_w1'] = jnp.transpose(w1, (0, 2, 1)).reshape(C, 3 * C)
    P['tok_b1'] = (nrm((C,)) * bn_s).reshape(C, 1)
    w2 = nrm((C, C, 5)) * bn_s
    P['tok_w2'] = jnp.transpose(w2, (0, 2, 1)).reshape(C, 5 * C)
    P['tok_b2'] = (nrm((C,)) * bn_s).reshape(C, 1)

    wqkv, wo, vecs, f1w, f1b, f2w, fbw, fbb, locp = [], [], [], [], [], [], [], [], []
    for _ in range(n_layers):
        wq = nrm((d_k * n_heads, d_model)).T
        wk = nrm((d_k * n_heads, d_model)).T
        wv = nrm((d_v * n_heads, d_model)).T
        wqkv.append(jnp.concatenate([wq, wk, wv], axis=1))     # (D, 2*H*dk + H*dv)
        wo.append(nrm((d_model, d_v * n_heads)).T)             # (H*dv, D)
        f1w.append(nrm((d_ff, d_model)).T)
        f1b.append(nrm((1, d_ff)))
        f2w.append(nrm((d_model, d_ff)).T)
        f2b = nrm((1, d_model))
        # packed per-layer D-wide vectors: [ln1g, ln1b, ln2g, ln2b, f2b]
        vecs.append(jnp.concatenate([jnp.ones((1, d_model), jnp.float32),
                                     jnp.zeros((1, d_model), jnp.float32),
                                     jnp.ones((1, d_model), jnp.float32),
                                     jnp.zeros((1, d_model), jnp.float32),
                                     f2b], axis=0))
        fbw.append(nrm((C, C)))
        fbb.append(nrm((C, 1)))
        # Local_module scalars: [w1x1, b1x1, w3x3(9, BN-folded), b3, w_res, b_res]
        w1x1, b1x1 = nrm(()), nrm(())
        w3 = (nrm((3, 3)) * bn_s).reshape(-1)
        b3 = nrm(()) * bn_s
        wr, br = nrm(()) * bn_s, nrm(()) * bn_s
        locp.append(jnp.concatenate([jnp.stack([w1x1, b1x1]), w3,
                                     jnp.stack([b3, wr, br])]))
    st = lambda xs: jnp.stack(xs, 0)
    P.update(wqkv=st(wqkv), wo=st(wo), vecs=st(vecs), f1w=st(f1w), f1b=st(f1b),
             f2w=st(f2w), fbw=st(fbw), fbb=st(fbb), locp=st(locp))
    return P


# --------------------------------------------------------------------------
# Full forward: ONE pallas_call, whole batch in one grid step
# --------------------------------------------------------------------------
def forward(params, enc_inputs, cls_token, *, d_k, d_v, n_heads, n_layers):
    B, C, L_in = enc_inputs.shape
    S = C
    D = params['wo'].shape[-1]
    d_ff = params['f1w'].shape[-1]
    H, NL = n_heads, n_layers
    qkv_w = params['wqkv'].shape[-1]
    L1 = L_in // 2
    Sp = S + 1
    assert L_in == 4 * D, "Token_module pools length by 4 -> d_model"

    # Lane-batched token input (C, B*L_in); CLS and pe rows as (B, D).
    x_flat = jnp.transpose(enc_inputs, (1, 0, 2)).reshape(C, B * L_in)
    cls2 = cls_token.reshape(B, D)
    pe = positional_encoding_rows(B, D)          # torch quirk: pe row per batch index

    operands = (x_flat, cls2, pe,
                params['tok_w1'], params['tok_b1'], params['tok_w2'], params['tok_b2'],
                params['wqkv'], params['wo'], params['vecs'],
                params['f1w'], params['f1b'], params['f2w'],
                params['fbw'], params['fbb'], params['locp'])

    flops = int(
        2 * C * (3 * C) * (B * L_in) + 2 * C * (B * L_in) * (B * L1)
        + 2 * C * (5 * C) * (B * L1) + 2 * C * (B * L1) * (B * D)
        + NL * (2 * B * Sp * D * qkv_w
                + B * H * (2 * Sp * Sp * d_k + 2 * Sp * Sp * d_v)
                + 2 * B * Sp * (H * d_v) * D
                + 4 * B * Sp * D * d_ff
                + 2 * S * S * (B * D)
                + 30 * B * S * D))
    transcendentals = int(NL * B * (Sp * d_ff + H * Sp * Sp))
    bytes_accessed = int(sum(int(a.size) * a.dtype.itemsize for a in operands)
                         + 2 * B * S * D * 4)

    full2 = lambda i: (0, 0)
    full3 = lambda i: (0, 0, 0)
    kernel = functools.partial(_fused_forward_kernel, n_layers=NL, n_heads=H,
                               d_k=d_k, d_v=d_v, seq_len=S, d_model=D,
                               batch=B, l_in=L_in)
    out = pl.pallas_call(
        kernel,
        out_shape=jax.ShapeDtypeStruct((2, B * S * D), jnp.float32),
        grid=(1,),
        in_specs=[
            pl.BlockSpec((C, B * L_in), full2),       # token input, lane-batched
            pl.BlockSpec((B, D), full2),              # CLS rows
            pl.BlockSpec((B, D), full2),              # pe rows (per-batch torch quirk)
            pl.BlockSpec((C, 3 * C), full2),          # token conv1 (im2col, BN folded)
            pl.BlockSpec((C, 1), full2),              # token conv1 bias (BN folded)
            pl.BlockSpec((C, 5 * C), full2),          # token conv2 (im2col, BN folded)
            pl.BlockSpec((C, 1), full2),              # token conv2 bias (BN folded)
            pl.BlockSpec((NL, D, qkv_w), full3),      # Wq|Wk|Wv, all layers
            pl.BlockSpec((NL, H * d_v, D), full3),    # Wo
            pl.BlockSpec((NL, 5, D), full3),          # packed LN gammas/betas + FFN2 bias
            pl.BlockSpec((NL, D, d_ff), full3),       # FFN1 w
            pl.BlockSpec((NL, 1, d_ff), full3),       # FFN1 b
            pl.BlockSpec((NL, d_ff, D), full3),       # FFN2 w
            pl.BlockSpec((NL, S, S), full3),          # FB conv weight
            pl.BlockSpec((NL, S, 1), full3),          # FB conv bias
            pl.BlockSpec(memory_space=pltpu.MemorySpace.SMEM),  # local-module scalars
        ],
        out_specs=pl.BlockSpec((2, B * S * D), full2),          # lane-dense output slab
        compiler_params=pltpu.CompilerParams(dimension_semantics=("arbitrary",)),
        cost_estimate=pl.CostEstimate(flops=flops, transcendentals=transcendentals,
                                      bytes_accessed=bytes_accessed),
    )(*operands)

    out = out.reshape(2, B, S, D)
    return out[0], out[1]


# --------------------------------------------------------------------------
if __name__ == "__main__":
    B, seq_len, d_model = 2, 8, 32
    d_ff, d_k, d_v, n_heads = 64, 16, 16, 2
    n_layers = 2                       # == min(n_layers_G, n_layers_L, 10)
    L_in = 4 * d_model                 # Token_module pools length by 4 -> d_model

    key = jax.random.PRNGKey(0)
    k_p, k_x, k_cls = jax.random.split(key, 3)
    params = init_params(k_p, seq_len=seq_len, d_model=d_model, d_ff=d_ff,
                         d_k=d_k, d_v=d_v, n_heads=n_heads, n_layers=n_layers)
    enc_inputs = jax.random.normal(k_x, (B, seq_len, L_in), jnp.float32)
    # TODO(synk): torch draws a fresh random CLS token every forward; here it is a
    # deterministic input for reproducibility.
    cls_token = jax.random.normal(k_cls, (B, 1, d_model), jnp.float32)

    fwd = jax.jit(functools.partial(forward, d_k=d_k, d_v=d_v,
                                    n_heads=n_heads, n_layers=n_layers))
    global_future, detail_future = fwd(params, enc_inputs, cls_token)
    jax.block_until_ready((global_future, detail_future))

    assert global_future.shape == (B, seq_len, d_model)
    assert detail_future.shape == (B, seq_len, d_model)
    print("KERNEL_OK")
</pallas_src>

<mosaic_0001>
module attributes {stable_mosaic.version = 11 : i64} {
  func.func @_fused_forward_kernel(%arg0: i32, %arg1: memref<8x256xf32, #tpu.memory_space<vmem>>, %arg2: memref<2x32xf32, #tpu.memory_space<vmem>>, %arg3: memref<2x32xf32, #tpu.memory_space<vmem>>, %arg4: memref<8x24xf32, #tpu.memory_space<vmem>>, %arg5: memref<8x1xf32, #tpu.memory_space<vmem>>, %arg6: memref<8x40xf32, #tpu.memory_space<vmem>>, %arg7: memref<8x1xf32, #tpu.memory_space<vmem>>, %arg8: memref<2x32x96xf32, #tpu.memory_space<vmem>>, %arg9: memref<2x32x32xf32, #tpu.memory_space<vmem>>, %arg10: memref<2x5x32xf32, #tpu.memory_space<vmem>>, %arg11: memref<2x32x64xf32, #tpu.memory_space<vmem>>, %arg12: memref<2x1x64xf32, #tpu.memory_space<vmem>>, %arg13: memref<2x64x32xf32, #tpu.memory_space<vmem>>, %arg14: memref<2x8x8xf32, #tpu.memory_space<vmem>>, %arg15: memref<2x8x1xf32, #tpu.memory_space<vmem>>, %arg16: memref<2x14xf32, #tpu.memory_space<smem>>, %arg17: memref<2x512xf32, #tpu.memory_space<vmem>>) attributes {dimension_semantics = [#tpu.dimension_semantics<arbitrary>], iteration_bounds = array<i64: 1>, scalar_prefetch = 0 : i64, scratch_operands = 0 : i64, tpu.core_type = #tpu.core_type<tc>, window_params = [{pipeline_mode = #tpu.pipeline_mode<synchronous>, transform_indices = @transform_0, window_bounds = array<i64: 8, 256>}, {pipeline_mode = #tpu.pipeline_mode<synchronous>, transform_indices = @transform_1, window_bounds = array<i64: 2, 32>}, {pipeline_mode = #tpu.pipeline_mode<synchronous>, transform_indices = @transform_2, window_bounds = array<i64: 2, 32>}, {pipeline_mode = #tpu.pipeline_mode<synchronous>, transform_indices = @transform_3, window_bounds = array<i64: 8, 24>}, {pipeline_mode = #tpu.pipeline_mode<synchronous>, transform_indices = @transform_4, window_bounds = array<i64: 8, 1>}, {pipeline_mode = #tpu.pipeline_mode<synchronous>, transform_indices = @transform_5, window_bounds = array<i64: 8, 40>}, {pipeline_mode = #tpu.pipeline_mode<synchronous>, transform_indices = @transform_6, window_bounds = array<i64: 8, 1>}, {pipeline_mode = #tpu.pipeline_mode<synchronous>, transform_indices = @transform_7, window_bounds = array<i64: 2, 32, 96>}, {pipeline_mode = #tpu.pipeline_mode<synchronous>, transform_indices = @transform_8, window_bounds = array<i64: 2, 32, 32>}, {pipeline_mode = #tpu.pipeline_mode<synchronous>, transform_indices = @transform_9, window_bounds = array<i64: 2, 5, 32>}, {pipeline_mode = #tpu.pipeline_mode<synchronous>, transform_indices = @transform_10, window_bounds = array<i64: 2, 32, 64>}, {pipeline_mode = #tpu.pipeline_mode<synchronous>, transform_indices = @transform_11, window_bounds = array<i64: 2, 1, 64>}, {pipeline_mode = #tpu.pipeline_mode<synchronous>, transform_indices = @transform_12, window_bounds = array<i64: 2, 64, 32>}, {pipeline_mode = #tpu.pipeline_mode<synchronous>, transform_indices = @transform_13, window_bounds = array<i64: 2, 8, 8>}, {pipeline_mode = #tpu.pipeline_mode<synchronous>, transform_indices = @transform_14, window_bounds = array<i64: 2, 8, 1>}, {transform_indices = @transform_15, window_bounds = array<i64: 2, 14>}, {pipeline_mode = #tpu.pipeline_mode<synchronous>, transform_indices = @transform_16, window_bounds = array<i64: 2, 512>}]} {
    %c0 = arith.constant 0 : index
    %c0_0 = arith.constant 0 : index
    %0 = vector.load %arg1[%c0, %c0_0] : memref<8x256xf32, #tpu.memory_space<vmem>>, vector<8x256xf32>
    %cst = arith.constant 0.000000e+00 : f32
    %1 = vector.broadcast %cst : f32 to vector<8x1xf32>
    %2 = vector.extract_strided_slice %0 {offsets = [0, 0], sizes = [8, 128], strides = [1, 1]} : vector<8x256xf32> to vector<8x128xf32>
    %3 = vector.extract_strided_slice %2 {offsets = [0, 0], sizes = [8, 127], strides = [1, 1]} : vector<8x128xf32> to vector<8x127xf32>
    %4 = tpu.concatenate %1, %3 in 1 : vector<8x1xf32>, vector<8x127xf32> -> vector<8x128xf32>
    %5 = vector.extract_strided_slice %0 {offsets = [0, 128], sizes = [8, 128], strides = [1, 1]} : vector<8x256xf32> to vector<8x128xf32>
    %6 = vector.extract_strided_slice %5 {offsets = [0, 0], sizes = [8, 127], strides = [1, 1]} : vector<8x128xf32> to vector<8x127xf32>
    %7 = tpu.concatenate %1, %6 in 1 : vector<8x1xf32>, vector<8x127xf32> -> vector<8x128xf32>
    %8 = tpu.concatenate %4, %7 in 1 : vector<8x128xf32>, vector<8x128xf32> -> vector<8x256xf32>
    %cst_1 = arith.constant 0.000000e+00 : f32
    %9 = vector.broadcast %cst_1 : f32 to vector<8x1xf32>
    %10 = vector.extract_strided_slice %0 {offsets = [0, 0], sizes = [8, 128], strides = [1, 1]} : vector<8x256xf32> to vector<8x128xf32>
    %11 = vector.extract_strided_slice %10 {offsets = [0, 1], sizes = [8, 127], strides = [1, 1]} : vector<8x128xf32> to vector<8x127xf32>
    %12 = tpu.concatenate %11, %9 in 1 : vector<8x127xf32>, vector<8x1xf32> -> vector<8x128xf32>
    %13 = vector.extract_strided_slice %0 {offsets = [0, 128], sizes = [8, 128], strides = [1, 1]} : vector<8x256xf32> to vector<8x128xf32>
    %14 = vector.extract_strided_slice %13 {offsets = [0, 1], sizes = [8, 127], strides = [1, 1]} : vector<8x128xf32> to vector<8x127xf32>
    %15 = tpu.concatenate %14, %9 in 1 : vector<8x127xf32>, vector<8x1xf32> -> vector<8x128xf32>
    %16 = tpu.concatenate %12, %15 in 1 : vector<8x128xf32>, vector<8x128xf32> -> vector<8x256xf32>
    %17 = tpu.concatenate %8, %0, %16 in 0 : vector<8x256xf32>, vector<8x256xf32>, vector<8x256xf32> -> vector<24x256xf32>
    %c0_2 = arith.constant 0 : index
    %c0_3 = arith.constant 0 : index
    %18 = vector.load %arg4[%c0_2, %c0_3] : memref<8x24xf32, #tpu.memory_space<vmem>>, vector<8x24xf32>
    %cst_4 = arith.constant dense<0.000000e+00> : vector<8x256xf32>
    %19 = tpu.matmul %18, %17, %cst_4 {dimension_numbers = #tpu.dot_dimension_numbers<[1], [0], [0], [1], [0, 0, 1, 1], [], []>} : vector<8x24xf32>, vector<24x256xf32>, vector<8x256xf32> -> vector<8x256xf32>
    %c0_5 = arith.constant 0 : index
    %c0_6 = arith.constant 0 : index
    %20 = vector.load %arg5[%c0_5, %c0_6] : memref<8x1xf32, #tpu.memory_space<vmem>>, vector<8x1xf32>
    %21 = vector.broadcast %20 : vector<8x1xf32> to vector<8x256xf32>
    %22 = arith.addf %19, %21 : vector<8x256xf32>
    %cst_7 = arith.constant 0.000000e+00 : f32
    %23 = vector.broadcast %cst_7 : f32 to vector<8x256xf32>
    %24 = arith.maximumf %22, %23 : vector<8x256xf32>
    %cst_8 = arith.constant 0.000000e+00 : f32
    %25 = vector.broadcast %cst_8 : f32 to vector<8x1xf32>
    %26 = vector.extract_strided_slice %24 {offsets = [0, 0], sizes = [8, 128], strides = [1, 1]} : vector<8x256xf32> to vector<8x128xf32>
    %27 = vector.extract_strided_slice %26 {offsets = [0, 1], sizes = [8, 127], strides = [1, 1]} : vector<8x128xf32> to vector<8x127xf32>
    %28 = tpu.concatenate %27, %25 in 1 : vector<8x127xf32>, vector<8x1xf32> -> vector<8x128xf32>
    %29 = vector.extract_strided_slice %24 {offsets = [0, 128], sizes = [8, 128], strides = [1, 1]} : vector<8x256xf32> to vector<8x128xf32>
    %30 = vector.extract_strided_slice %29 {offsets = [0, 1], sizes = [8, 127], strides = [1, 1]} : vector<8x128xf32> to vector<8x127xf32>
    %31 = tpu.concatenate %30, %25 in 1 : vector<8x127xf32>, vector<8x1xf32> -> vector<8x128xf32>
    %32 = tpu.concatenate %28, %31 in 1 : vector<8x128xf32>, vector<8x128xf32> -> vector<8x256xf32>
    %33 = arith.maximumf %24, %32 : vector<8x256xf32>
    %34 = tpu.iota {dimensions = array<i32: 0>} : vector<256x128xi32>
    %35 = tpu.iota {dimensions = array<i32: 1>} : vector<256x128xi32>
    %c2_i32 = arith.constant 2 : i32
    %36 = vector.broadcast %c2_i32 : i32 to vector<256x128xi32>
    %37 = arith.muli %36, %35 : vector<256x128xi32>
    %38 = arith.cmpi eq, %34, %37 : vector<256x128xi32>
    %39 = arith.extui %38 : vector<256x128xi1> to vector<256x128xi32>
    %40 = arith.sitofp %39 : vector<256x128xi32> to vector<256x128xf32>
    %cst_9 = arith.constant dense<0.000000e+00> : vector<8x128xf32>
    %41 = tpu.matmul %33, %40, %cst_9 {dimension_numbers = #tpu.dot_dimension_numbers<[1], [0], [0], [1], [0, 0, 1, 1], [], []>} : vector<8x256xf32>, vector<256x128xf32>, vector<8x128xf32> -> vector<8x128xf32>
    %cst_10 = arith.constant 0.000000e+00 : f32
    %42 = vector.broadcast %cst_10 : f32 to vector<8x2xf32>
    %43 = vector.extract_strided_slice %41 {offsets = [0, 0], sizes = [8, 64], strides = [1, 1]} : vector<8x128xf32> to vector<8x64xf32>
    %44 = vector.extract_strided_slice %43 {offsets = [0, 0], sizes = [8, 62], strides = [1, 1]} : vector<8x64xf32> to vector<8x62xf32>
    %45 = tpu.concatenate %42, %44 in 1 : vector<8x2xf32>, vector<8x62xf32> -> vector<8x64xf32>
    %46 = vector.extract_strided_slice %41 {offsets = [0, 64], sizes = [8, 64], strides = [1, 1]} : vector<8x128xf32> to vector<8x64xf32>
    %47 = vector.extract_strided_slice %46 {offsets = [0, 0], sizes = [8, 62], strides = [1, 1]} : vector<8x64xf32> to vector<8x62xf32>
    %48 = tpu.concatenate %42, %47 in 1 : vector<8x2xf32>, vector<8x62xf32> -> vector<8x64xf32>
    %49 = tpu.concatenate %45, %48 in 1 : vector<8x64xf32>, vector<8x64xf32> -> vector<8x128xf32>
    %cst_11 = arith.constant 0.000000e+00 : f32
    %50 = vector.broadcast %cst_11 : f32 to vector<8x1xf32>
    %51 = vector.extract_strided_slice %41 {offsets = [0, 0], sizes = [8, 64], strides = [1, 1]} : vector<8x128xf32> to vector<8x64xf32>
    %52 = vector.extract_strided_slice %51 {offsets = [0, 0], sizes = [8, 63], strides = [1, 1]} : vector<8x64xf32> to vector<8x63xf32>
    %53 = tpu.concatenate %50, %52 in 1 : vector<8x1xf32>, vector<8x63xf32> -> vector<8x64xf32>
    %54 = vector.extract_strided_slice %41 {offsets = [0, 64], sizes = [8, 64], strides = [1, 1]} : vector<8x128xf32> to vector<8x64xf32>
    %55 = vector.extract_strided_slice %54 {offsets = [0, 0], sizes = [8, 63], strides = [1, 1]} : vector<8x64xf32> to vector<8x63xf32>
    %56 = tpu.concatenate %50, %55 in 1 : vector<8x1xf32>, vector<8x63xf32> -> vector<8x64xf32>
    %57 = tpu.concatenate %53, %56 in 1 : vector<8x64xf32>, vector<8x64xf32> -> vector<8x128xf32>
    %cst_12 = arith.constant 0.000000e+00 : f32
    %58 = vector.broadcast %cst_12 : f32 to vector<8x1xf32>
    %59 = vector.extract_strided_slice %41 {offsets = [0, 0], sizes = [8, 64], strides = [1, 1]} : vector<8x128xf32> to vector<8x64xf32>
    %60 = vector.extract_strided_slice %59 {offsets = [0, 1], sizes = [8, 63], strides = [1, 1]} : vector<8x64xf32> to vector<8x63xf32>
    %61 = tpu.concatenate %60, %58 in 1 : vector<8x63xf32>, vector<8x1xf32> -> vector<8x64xf32>
    %62 = vector.extract_strided_slice %41 {offsets = [0, 64], sizes = [8, 64], strides = [1, 1]} : vector<8x128xf32> to vector<8x64xf32>
    %63 = vector.extract_strided_slice %62 {offsets = [0, 1], sizes = [8, 63], strides = [1, 1]} : vector<8x64xf32> to vector<8x63xf32>
    %64 = tpu.concatenate %63, %58 in 1 : vector<8x63xf32>, vector<8x1xf32> -> vector<8x64xf32>
    %65 = tpu.concatenate %61, %64 in 1 : vector<8x64xf32>, vector<8x64xf32> -> vector<8x128xf32>
    %cst_13 = arith.constant 0.000000e+00 : f32
    %66 = vector.broadcast %cst_13 : f32 to vector<8x2xf32>
    %67 = vector.extract_strided_slice %41 {offsets = [0, 0], sizes = [8, 64], strides = [1, 1]} : vector<8x128xf32> to vector<8x64xf32>
    %68 = vector.extract_strided_slice %67 {offsets = [0, 2], sizes = [8, 62], strides = [1, 1]} : vector<8x64xf32> to vector<8x62xf32>
    %69 = tpu.concatenate %68, %66 in 1 : vector<8x62xf32>, vector<8x2xf32> -> vector<8x64xf32>
    %70 = vector.extract_strided_slice %41 {offsets = [0, 64], sizes = [8, 64], strides = [1, 1]} : vector<8x128xf32> to vector<8x64xf32>
    %71 = vector.extract_strided_slice %70 {offsets = [0, 2], sizes = [8, 62], strides = [1, 1]} : vector<8x64xf32> to vector<8x62xf32>
    %72 = tpu.concatenate %71, %66 in 1 : vector<8x62xf32>, vector<8x2xf32> -> vector<8x64xf32>
    %73 = tpu.concatenate %69, %72 in 1 : vector<8x64xf32>, vector<8x64xf32> -> vector<8x128xf32>
    %74 = tpu.concatenate %49, %57, %41, %65, %73 in 0 : vector<8x128xf32>, vector<8x128xf32>, vector<8x128xf32>, vector<8x128xf32>, vector<8x128xf32> -> vector<40x128xf32>
    %c0_14 = arith.constant 0 : index
    %c0_15 = arith.constant 0 : index
    %75 = vector.load %arg6[%c0_14, %c0_15] : memref<8x40xf32, #tpu.memory_space<vmem>>, vector<8x40xf32>
    %cst_16 = arith.constant dense<0.000000e+00> : vector<8x128xf32>
    %76 = tpu.matmul %75, %74, %cst_16 {dimension_numbers = #tpu.dot_dimension_numbers<[1], [0], [0], [1], [0, 0, 1, 1], [], []>} : vector<8x40xf32>, vector<40x128xf32>, vector<8x128xf32> -> vector<8x128xf32>
    %c0_17 = arith.constant 0 : index
    %c0_18 = arith.constant 0 : index
    %77 = vector.load %arg7[%c0_17, %c0_18] : memref<8x1xf32, #tpu.memory_space<vmem>>, vector<8x1xf32>
    %78 = vector.broadcast %77 : vector<8x1xf32> to vector<8x128xf32>
    %79 = arith.addf %76, %78 : vector<8x128xf32>
    %cst_19 = arith.constant 0.000000e+00 : f32
    %80 = vector.broadcast %cst_19 : f32 to vector<8x128xf32>
    %81 = arith.maximumf %79, %80 : vector<8x128xf32>
    %cst_20 = arith.constant 0.000000e+00 : f32
    %82 = vector.broadcast %cst_20 : f32 to vector<8x1xf32>
    %83 = vector.extract_strided_slice %81 {offsets = [0, 0], sizes = [8, 64], strides = [1, 1]} : vector<8x128xf32> to vector<8x64xf32>
    %84 = vector.extract_strided_slice %83 {offsets = [0, 1], sizes = [8, 63], strides = [1, 1]} : vector<8x64xf32> to vector<8x63xf32>
    %85 = tpu.concatenate %84, %82 in 1 : vector<8x63xf32>, vector<8x1xf32> -> vector<8x64xf32>
    %86 = vector.extract_strided_slice %81 {offsets = [0, 64], sizes = [8, 64], strides = [1, 1]} : vector<8x128xf32> to vector<8x64xf32>
    %87 = vector.extract_strided_slice %86 {offsets = [0, 1], sizes = [8, 63], strides = [1, 1]} : vector<8x64xf32> to vector<8x63xf32>
    %88 = tpu.concatenate %87, %82 in 1 : vector<8x63xf32>, vector<8x1xf32> -> vector<8x64xf32>
    %89 = tpu.concatenate %85, %88 in 1 : vector<8x64xf32>, vector<8x64xf32> -> vector<8x128xf32>
    %90 = arith.maximumf %81, %89 : vector<8x128xf32>
    %91 = tpu.iota {dimensions = array<i32: 0>} : vector<128x64xi32>
    %92 = tpu.iota {dimensions = array<i32: 1>} : vector<128x64xi32>
    %c2_i32_21 = arith.constant 2 : i32
    %93 = vector.broadcast %c2_i32_21 : i32 to vector<128x64xi32>
    %94 = arith.muli %93, %92 : vector<128x64xi32>
    %95 = arith.cmpi eq, %91, %94 : vector<128x64xi32>
    %96 = arith.extui %95 : vector<128x64xi1> to vector<128x64xi32>
    %97 = arith.sitofp %96 : vector<128x64xi32> to vector<128x64xf32>
    %cst_22 = arith.constant dense<0.000000e+00> : vector<8x64xf32>
    %98 = tpu.matmul %90, %97, %cst_22 {dimension_numbers = #tpu.dot_dimension_numbers<[1], [0], [0], [1], [0, 0, 1, 1], [], []>} : vector<8x128xf32>, vector<128x64xf32>, vector<8x64xf32> -> vector<8x64xf32>
    %c0_23 = arith.constant 0 : index
    %c0_24 = arith.constant 0 : index
    %99 = vector.load %arg2[%c0_23, %c0_24] : memref<2x32xf32, #tpu.memory_space<vmem>>, vector<1x32xf32>
    %100 = vector.extract_strided_slice %98 {offsets = [0, 0], sizes = [8, 32], strides = [1, 1]} : vector<8x64xf32> to vector<8x32xf32>
    %101 = tpu.concatenate %99, %100 in 0 : vector<1x32xf32>, vector<8x32xf32> -> vector<9x32xf32>
    %c0_25 = arith.constant 0 : index
    %c0_26 = arith.constant 0 : index
    %102 = vector.load %arg3[%c0_25, %c0_26] : memref<2x32xf32, #tpu.memory_space<vmem>>, vector<1x32xf32>
    %103 = vector.broadcast %102 : vector<1x32xf32> to vector<9x32xf32>
    %104 = arith.addf %101, %103 : vector<9x32xf32>
    %c1 = arith.constant 1 : index
    %c0_27 = arith.constant 0 : index
    %105 = vector.load %arg2[%c1, %c0_27] : memref<2x32xf32, #tpu.memory_space<vmem>>, vector<1x32xf32>
    %106 = vector.extract_strided_slice %98 {offsets = [0, 32], sizes = [8, 32], strides = [1, 1]} : vector<8x64xf32> to vector<8x32xf32>
    %107 = tpu.concatenate %105, %106 in 0 : vector<1x32xf32>, vector<8x32xf32> -> vector<9x32xf32>
    %c1_28 = arith.constant 1 : index
    %c0_29 = arith.constant 0 : index
    %108 = vector.load %arg3[%c1_28, %c0_29] : memref<2x32xf32, #tpu.memory_space<vmem>>, vector<1x32xf32>
    %109 = vector.broadcast %108 : vector<1x32xf32> to vector<9x32xf32>
    %110 = arith.addf %107, %109 : vector<9x32xf32>
    %111 = tpu.concatenate %104, %110 in 0 : vector<9x32xf32>, vector<9x32xf32> -> vector<18x32xf32>
    %cst_30 = arith.constant 0.000000e+00 : f32
    %112 = vector.broadcast %cst_30 : f32 to vector<1x32xf32>
    %c0_31 = arith.constant 0 : index
    %c0_32 = arith.constant 0 : index
    %c0_33 = arith.constant 0 : index
    %113 = vector.load %arg10[%c0_31, %c0_32, %c0_33] : memref<2x5x32xf32, #tpu.memory_space<vmem>>, vector<1x5x32xf32>
    %114 = vector.shape_cast %113 : vector<1x5x32xf32> to vector<5x32xf32>
    %115 = vector.extract_strided_slice %114 {offsets = [0, 0], sizes = [1, 32], strides = [1, 1]} : vector<5x32xf32> to vector<1x32xf32>
    %116 = vector.extract_strided_slice %114 {offsets = [1, 0], sizes = [1, 32], strides = [1, 1]} : vector<5x32xf32> to vector<1x32xf32>
    %cst_34 = arith.constant dense<0.000000e+00> : vector<18xf32>
    %117 = vector.multi_reduction <add>, %111, %cst_34 [1] : vector<18x32xf32> to vector<18xf32>
    %118 = vector.shape_cast %117 : vector<18xf32> to vector<18x1xf32>
    %cst_35 = arith.constant 3.200000e+01 : f32
    %119 = vector.broadcast %cst_35 : f32 to vector<18x1xf32>
    %120 = arith.divf %118, %119 : vector<18x1xf32>
    %121 = vector.broadcast %120 : vector<18x1xf32> to vector<18x32xf32>
    %122 = arith.subf %111, %121 : vector<18x32xf32>
    %123 = arith.mulf %122, %122 : vector<18x32xf32>
    %cst_36 = arith.constant dense<0.000000e+00> : vector<18xf32>
    %124 = vector.multi_reduction <add>, %123, %cst_36 [1] : vector<18x32xf32> to vector<18xf32>
    %125 = vector.shape_cast %124 : vector<18xf32> to vector<18x1xf32>
    %cst_37 = arith.constant 3.200000e+01 : f32
    %126 = vector.broadcast %cst_37 : f32 to vector<18x1xf32>
    %127 = arith.divf %125, %126 : vector<18x1xf32>
    %128 = vector.broadcast %120 : vector<18x1xf32> to vector<18x32xf32>
    %129 = arith.subf %111, %128 : vector<18x32xf32>
    %cst_38 = arith.constant 9.99999974E-6 : f32
    %130 = vector.broadcast %cst_38 : f32 to vector<18x1xf32>
    %131 = arith.addf %127, %130 : vector<18x1xf32>
    %132 = math.rsqrt %131 : vector<18x1xf32>
    %133 = vector.broadcast %132 : vector<18x1xf32> to vector<18x32xf32>
    %134 = arith.mulf %129, %133 : vector<18x32xf32>
    %135 = vector.broadcast %115 : vector<1x32xf32> to vector<18x32xf32>
    %136 = arith.mulf %134, %135 : vector<18x32xf32>
    %137 = vector.broadcast %116 : vector<1x32xf32> to vector<18x32xf32>
    %138 = arith.addf %136, %137 : vector<18x32xf32>
    %c0_39 = arith.constant 0 : index
    %c0_40 = arith.constant 0 : index
    %c0_41 = arith.constant 0 : index
    %139 = vector.load %arg8[%c0_39, %c0_40, %c0_41] : memref<2x32x96xf32, #tpu.memory_space<vmem>>, vector<1x32x96xf32>
    %140 = vector.shape_cast %139 : vector<1x32x96xf32> to vector<32x96xf32>
    %cst_42 = arith.constant dense<0.000000e+00> : vector<18x96xf32>
    %141 = tpu.matmul %138, %140, %cst_42 {dimension_numbers = #tpu.dot_dimension_numbers<[1], [0], [0], [1], [0, 0, 1, 1], [], []>} : vector<18x32xf32>, vector<32x96xf32>, vector<18x96xf32> -> vector<18x96xf32>
    %c0_43 = arith.constant 0 : index
    %c0_44 = arith.constant 0 : index
    %c0_45 = arith.constant 0 : index
    %142 = vector.load %arg9[%c0_43, %c0_44, %c0_45] : memref<2x32x32xf32, #tpu.memory_space<vmem>>, vector<1x32x32xf32>
    %143 = vector.shape_cast %142 : vector<1x32x32xf32> to vector<32x32xf32>
    %144 = vector.extract_strided_slice %141 {offsets = [0, 0], sizes = [9, 16], strides = [1, 1]} : vector<18x96xf32> to vector<9x16xf32>
    %145 = vector.extract_strided_slice %141 {offsets = [0, 32], sizes = [9, 16], strides = [1, 1]} : vector<18x96xf32> to vector<9x16xf32>
    %146 = vector.extract_strided_slice %141 {offsets = [0, 64], sizes = [9, 16], strides = [1, 1]} : vector<18x96xf32> to vector<9x16xf32>
    %cst_46 = arith.constant dense<0.000000e+00> : vector<9x9xf32>
    %147 = tpu.matmul %144, %145, %cst_46 {dimension_numbers = #tpu.dot_dimension_numbers<[1], [1], [0], [0], [0, 0, 1, 0], [], []>} : vector<9x16xf32>, vector<9x16xf32>, vector<9x9xf32> -> vector<9x9xf32>
    %cst_47 = arith.constant 2.500000e-01 : f32
    %148 = vector.broadcast %cst_47 : f32 to vector<9x9xf32>
    %149 = arith.mulf %147, %148 : vector<9x9xf32>
    %cst_48 = arith.constant dense<0xFF800000> : vector<9xf32>
    %150 = vector.multi_reduction <maximumf>, %149, %cst_48 [1] : vector<9x9xf32> to vector<9xf32>
    %151 = vector.shape_cast %150 : vector<9xf32> to vector<9x1xf32>
    %152 = vector.broadcast %151 : vector<9x1xf32> to vector<9x9xf32>
    %153 = arith.subf %149, %152 : vector<9x9xf32>
    %154 = math.exp %153 : vector<9x9xf32>
    %cst_49 = arith.constant dense<0.000000e+00> : vector<9xf32>
    %155 = vector.multi_reduction <add>, %154, %cst_49 [1] : vector<9x9xf32> to vector<9xf32>
    %156 = vector.shape_cast %155 : vector<9xf32> to vector<9x1xf32>
    %157 = vector.broadcast %156 : vector<9x1xf32> to vector<9x9xf32>
    %158 = arith.divf %154, %157 : vector<9x9xf32>
    %cst_50 = arith.constant dense<0.000000e+00> : vector<9x16xf32>
    %159 = tpu.matmul %158, %146, %cst_50 {dimension_numbers = #tpu.dot_dimension_numbers<[1], [0], [0], [1], [0, 0, 1, 1], [], []>} : vector<9x9xf32>, vector<9x16xf32>, vector<9x16xf32> -> vector<9x16xf32>
    %160 = vector.extract_strided_slice %141 {offsets = [0, 16], sizes = [9, 16], strides = [1, 1]} : vector<18x96xf32> to vector<9x16xf32>
    %161 = vector.extract_strided_slice %141 {offsets = [0, 48], sizes = [9, 16], strides = [1, 1]} : vector<18x96xf32> to vector<9x16xf32>
    %162 = vector.extract_strided_slice %141 {offsets = [0, 80], sizes = [9, 16], strides = [1, 1]} : vector<18x96xf32> to vector<9x16xf32>
    %cst_51 = arith.constant dense<0.000000e+00> : vector<9x9xf32>
    %163 = tpu.matmul %160, %161, %cst_51 {dimension_numbers = #tpu.dot_dimension_numbers<[1], [1], [0], [0], [0, 0, 1, 0], [], []>} : vector<9x16xf32>, vector<9x16xf32>, vector<9x9xf32> -> vector<9x9xf32>
    %cst_52 = arith.constant 2.500000e-01 : f32
    %164 = vector.broadcast %cst_52 : f32 to vector<9x9xf32>
    %165 = arith.mulf %163, %164 : vector<9x9xf32>
    %cst_53 = arith.constant dense<0xFF800000> : vector<9xf32>
    %166 = vector.multi_reduction <maximumf>, %165, %cst_53 [1] : vector<9x9xf32> to vector<9xf32>
    %167 = vector.shape_cast %166 : vector<9xf32> to vector<9x1xf32>
    %168 = vector.broadcast %167 : vector<9x1xf32> to vector<9x9xf32>
    %169 = arith.subf %165, %168 : vector<9x9xf32>
    %170 = math.exp %169 : vector<9x9xf32>
    %cst_54 = arith.constant dense<0.000000e+00> : vector<9xf32>
    %171 = vector.multi_reduction <add>, %170, %cst_54 [1] : vector<9x9xf32> to vector<9xf32>
    %172 = vector.shape_cast %171 : vector<9xf32> to vector<9x1xf32>
    %173 = vector.broadcast %172 : vector<9x1xf32> to vector<9x9xf32>
    %174 = arith.divf %170, %173 : vector<9x9xf32>
    %cst_55 = arith.constant dense<0.000000e+00> : vector<9x16xf32>
    %175 = tpu.matmul %174, %162, %cst_55 {dimension_numbers = #tpu.dot_dimension_numbers<[1], [0], [0], [1], [0, 0, 1, 1], [], []>} : vector<9x9xf32>, vector<9x16xf32>, vector<9x16xf32> -> vector<9x16xf32>
    %176 = tpu.concatenate %159, %175 in 1 : vector<9x16xf32>, vector<9x16xf32> -> vector<9x32xf32>
    %cst_56 = arith.constant dense<0.000000e+00> : vector<9x32xf32>
    %177 = tpu.matmul %176, %143, %cst_56 {dimension_numbers = #tpu.dot_dimension_numbers<[1], [0], [0], [1], [0, 0, 1, 1], [], []>} : vector<9x32xf32>, vector<32x32xf32>, vector<9x32xf32> -> vector<9x32xf32>
    %178 = vector.extract_strided_slice %141 {offsets = [9, 0], sizes = [9, 16], strides = [1, 1]} : vector<18x96xf32> to vector<9x16xf32>
    %179 = vector.extract_strided_slice %141 {offsets = [9, 32], sizes = [9, 16], strides = [1, 1]} : vector<18x96xf32> to vector<9x16xf32>
    %180 = vector.extract_strided_slice %141 {offsets = [9, 64], sizes = [9, 16], strides = [1, 1]} : vector<18x96xf32> to vector<9x16xf32>
    %cst_57 = arith.constant dense<0.000000e+00> : vector<9x9xf32>
    %181 = tpu.matmul %178, %179, %cst_57 {dimension_numbers = #tpu.dot_dimension_numbers<[1], [1], [0], [0], [0, 0, 1, 0], [], []>} : vector<9x16xf32>, vector<9x16xf32>, vector<9x9xf32> -> vector<9x9xf32>
    %cst_58 = arith.constant 2.500000e-01 : f32
    %182 = vector.broadcast %cst_58 : f32 to vector<9x9xf32>
    %183 = arith.mulf %181, %182 : vector<9x9xf32>
    %cst_59 = arith.constant dense<0xFF800000> : vector<9xf32>
    %184 = vector.multi_reduction <maximumf>, %183, %cst_59 [1] : vector<9x9xf32> to vector<9xf32>
    %185 = vector.shape_cast %184 : vector<9xf32> to vector<9x1xf32>
    %186 = vector.broadcast %185 : vector<9x1xf32> to vector<9x9xf32>
    %187 = arith.subf %183, %186 : vector<9x9xf32>
    %188 = math.exp %187 : vector<9x9xf32>
    %cst_60 = arith.constant dense<0.000000e+00> : vector<9xf32>
    %189 = vector.multi_reduction <add>, %188, %cst_60 [1] : vector<9x9xf32> to vector<9xf32>
    %190 = vector.shape_cast %189 : vector<9xf32> to vector<9x1xf32>
    %191 = vector.broadcast %190 : vector<9x1xf32> to vector<9x9xf32>
    %192 = arith.divf %188, %191 : vector<9x9xf32>
    %cst_61 = arith.constant dense<0.000000e+00> : vector<9x16xf32>
    %193 = tpu.matmul %192, %180, %cst_61 {dimension_numbers = #tpu.dot_dimension_numbers<[1], [0], [0], [1], [0, 0, 1, 1], [], []>} : vector<9x9xf32>, vector<9x16xf32>, vector<9x16xf32> -> vector<9x16xf32>
    %194 = vector.extract_strided_slice %141 {offsets = [9, 16], sizes = [9, 16], strides = [1, 1]} : vector<18x96xf32> to vector<9x16xf32>
    %195 = vector.extract_strided_slice %141 {offsets = [9, 48], sizes = [9, 16], strides = [1, 1]} : vector<18x96xf32> to vector<9x16xf32>
    %196 = vector.extract_strided_slice %141 {offsets = [9, 80], sizes = [9, 16], strides = [1, 1]} : vector<18x96xf32> to vector<9x16xf32>
    %cst_62 = arith.constant dense<0.000000e+00> : vector<9x9xf32>
    %197 = tpu.matmul %194, %195, %cst_62 {dimension_numbers = #tpu.dot_dimension_numbers<[1], [1], [0], [0], [0, 0, 1, 0], [], []>} : vector<9x16xf32>, vector<9x16xf32>, vector<9x9xf32> -> vector<9x9xf32>
    %cst_63 = arith.constant 2.500000e-01 : f32
    %198 = vector.broadcast %cst_63 : f32 to vector<9x9xf32>
    %199 = arith.mulf %197, %198 : vector<9x9xf32>
    %cst_64 = arith.constant dense<0xFF800000> : vector<9xf32>
    %200 = vector.multi_reduction <maximumf>, %199, %cst_64 [1] : vector<9x9xf32> to vector<9xf32>
    %201 = vector.shape_cast %200 : vector<9xf32> to vector<9x1xf32>
    %202 = vector.broadcast %201 : vector<9x1xf32> to vector<9x9xf32>
    %203 = arith.subf %199, %202 : vector<9x9xf32>
    %204 = math.exp %203 : vector<9x9xf32>
    %cst_65 = arith.constant dense<0.000000e+00> : vector<9xf32>
    %205 = vector.multi_reduction <add>, %204, %cst_65 [1] : vector<9x9xf32> to vector<9xf32>
    %206 = vector.shape_cast %205 : vector<9xf32> to vector<9x1xf32>
    %207 = vector.broadcast %206 : vector<9x1xf32> to vector<9x9xf32>
    %208 = arith.divf %204, %207 : vector<9x9xf32>
    %cst_66 = arith.constant dense<0.000000e+00> : vector<9x16xf32>
    %209 = tpu.matmul %208, %196, %cst_66 {dimension_numbers = #tpu.dot_dimension_numbers<[1], [0], [0], [1], [0, 0, 1, 1], [], []>} : vector<9x9xf32>, vector<9x16xf32>, vector<9x16xf32> -> vector<9x16xf32>
    %210 = tpu.concatenate %193, %209 in 1 : vector<9x16xf32>, vector<9x16xf32> -> vector<9x32xf32>
    %cst_67 = arith.constant dense<0.000000e+00> : vector<9x32xf32>
    %211 = tpu.matmul %210, %143, %cst_67 {dimension_numbers = #tpu.dot_dimension_numbers<[1], [0], [0], [1], [0, 0, 1, 1], [], []>} : vector<9x32xf32>, vector<32x32xf32>, vector<9x32xf32> -> vector<9x32xf32>
    %212 = tpu.concatenate %177, %211 in 0 : vector<9x32xf32>, vector<9x32xf32> -> vector<18x32xf32>
    %213 = arith.addf %111, %212 : vector<18x32xf32>
    %214 = vector.extract_strided_slice %114 {offsets = [2, 0], sizes = [1, 32], strides = [1, 1]} : vector<5x32xf32> to vector<1x32xf32>
    %215 = vector.extract_strided_slice %114 {offsets = [3, 0], sizes = [1, 32], strides = [1, 1]} : vector<5x32xf32> to vector<1x32xf32>
    %cst_68 = arith.constant dense<0.000000e+00> : vector<18xf32>
    %216 = vector.multi_reduction <add>, %213, %cst_68 [1] : vector<18x32xf32> to vector<18xf32>
    %217 = vector.shape_cast %216 : vector<18xf32> to vector<18x1xf32>
    %cst_69 = arith.constant 3.200000e+01 : f32
    %218 = vector.broadcast %cst_69 : f32 to vector<18x1xf32>
    %219 = arith.divf %217, %218 : vector<18x1xf32>
    %220 = vector.broadcast %219 : vector<18x1xf32> to vector<18x32xf32>
    %221 = arith.subf %213, %220 : vector<18x32xf32>
    %222 = arith.mulf %221, %221 : vector<18x32xf32>
    %cst_70 = arith.constant dense<0.000000e+00> : vector<18xf32>
    %223 = vector.multi_reduction <add>, %222, %cst_70 [1] : vector<18x32xf32> to vector<18xf32>
    %224 = vector.shape_cast %223 : vector<18xf32> to vector<18x1xf32>
    %cst_71 = arith.constant 3.200000e+01 : f32
    %225 = vector.broadcast %cst_71 : f32 to vector<18x1xf32>
    %226 = arith.divf %224, %225 : vector<18x1xf32>
    %227 = vector.broadcast %219 : vector<18x1xf32> to vector<18x32xf32>
    %228 = arith.subf %213, %227 : vector<18x32xf32>
    %cst_72 = arith.constant 9.99999974E-6 : f32
    %229 = vector.broadcast %cst_72 : f32 to vector<18x1xf32>
    %230 = arith.addf %226, %229 : vector<18x1xf32>
    %231 = math.rsqrt %230 : vector<18x1xf32>
    %232 = vector.broadcast %231 : vector<18x1xf32> to vector<18x32xf32>
    %233 = arith.mulf %228, %232 : vector<18x32xf32>
    %234 = vector.broadcast %214 : vector<1x32xf32> to vector<18x32xf32>
    %235 = arith.mulf %233, %234 : vector<18x32xf32>
    %236 = vector.broadcast %215 : vector<1x32xf32> to vector<18x32xf32>
    %237 = arith.addf %235, %236 : vector<18x32xf32>
    %c0_73 = arith.constant 0 : index
    %c0_74 = arith.constant 0 : index
    %c0_75 = arith.constant 0 : index
    %238 = vector.load %arg11[%c0_73, %c0_74, %c0_75] : memref<2x32x64xf32, #tpu.memory_space<vmem>>, vector<1x32x64xf32>
    %239 = vector.shape_cast %238 : vector<1x32x64xf32> to vector<32x64xf32>
    %cst_76 = arith.constant dense<0.000000e+00> : vector<18x64xf32>
    %240 = tpu.matmul %237, %239, %cst_76 {dimension_numbers = #tpu.dot_dimension_numbers<[1], [0], [0], [1], [0, 0, 1, 1], [], []>} : vector<18x32xf32>, vector<32x64xf32>, vector<18x64xf32> -> vector<18x64xf32>
    %c0_77 = arith.constant 0 : index
    %c0_78 = arith.constant 0 : index
    %c0_79 = arith.constant 0 : index
    %241 = vector.load %arg12[%c0_77, %c0_78, %c0_79] : memref<2x1x64xf32, #tpu.memory_space<vmem>>, vector<1x1x64xf32>
    %242 = vector.shape_cast %241 : vector<1x1x64xf32> to vector<1x64xf32>
    %243 = vector.broadcast %242 : vector<1x64xf32> to vector<18x64xf32>
    %244 = arith.addf %240, %243 : vector<18x64xf32>
    %cst_80 = arith.constant 5.000000e-01 : f32
    %245 = vector.broadcast %cst_80 : f32 to vector<18x64xf32>
    %246 = arith.mulf %245, %244 : vector<18x64xf32>
    %cst_81 = arith.constant 4.471500e-02 : f32
    %247 = vector.broadcast %cst_81 : f32 to vector<18x64xf32>
    %248 = arith.mulf %247, %244 : vector<18x64xf32>
    %249 = arith.mulf %248, %244 : vector<18x64xf32>
    %250 = arith.mulf %249, %244 : vector<18x64xf32>
    %251 = arith.addf %244, %250 : vector<18x64xf32>
    %cst_82 = arith.constant 0.797884583 : f32
    %252 = vector.broadcast %cst_82 : f32 to vector<18x64xf32>
    %253 = arith.mulf %252, %251 : vector<18x64xf32>
    %254 = math.tanh %253 : vector<18x64xf32>
    %cst_83 = arith.constant 1.000000e+00 : f32
    %255 = vector.broadcast %cst_83 : f32 to vector<18x64xf32>
    %256 = arith.addf %255, %254 : vector<18x64xf32>
    %257 = arith.mulf %246, %256 : vector<18x64xf32>
    %c0_84 = arith.constant 0 : index
    %c0_85 = arith.constant 0 : index
    %c0_86 = arith.constant 0 : index
    %258 = vector.load %arg13[%c0_84, %c0_85, %c0_86] : memref<2x64x32xf32, #tpu.memory_space<vmem>>, vector<1x64x32xf32>
    %259 = vector.shape_cast %258 : vector<1x64x32xf32> to vector<64x32xf32>
    %cst_87 = arith.constant dense<0.000000e+00> : vector<18x32xf32>
    %260 = tpu.matmul %257, %259, %cst_87 {dimension_numbers = #tpu.dot_dimension_numbers<[1], [0], [0], [1], [0, 0, 1, 1], [], []>} : vector<18x64xf32>, vector<64x32xf32>, vector<18x32xf32> -> vector<18x32xf32>
    %261 = vector.extract_strided_slice %114 {offsets = [4, 0], sizes = [1, 32], strides = [1, 1]} : vector<5x32xf32> to vector<1x32xf32>
    %262 = vector.broadcast %261 : vector<1x32xf32> to vector<18x32xf32>
    %263 = arith.addf %260, %262 : vector<18x32xf32>
    %264 = arith.addf %263, %213 : vector<18x32xf32>
    %c0_88 = arith.constant 0 : index
    %c0_89 = arith.constant 0 : index
    %265 = memref.load %arg16[%c0_88, %c0_89] : memref<2x14xf32, #tpu.memory_space<smem>>
    %266 = vector.broadcast %265 : f32 to vector<8x64xf32>
    %267 = arith.mulf %266, %98 : vector<8x64xf32>
    %c0_90 = arith.constant 0 : index
    %c1_91 = arith.constant 1 : index
    %268 = memref.load %arg16[%c0_90, %c1_91] : memref<2x14xf32, #tpu.memory_space<smem>>
    %269 = vector.broadcast %268 : f32 to vector<8x64xf32>
    %270 = arith.addf %267, %269 : vector<8x64xf32>
    %cst_92 = arith.constant 0.000000e+00 : f32
    %271 = vector.broadcast %cst_92 : f32 to vector<8x64xf32>
    %272 = arith.maximumf %270, %271 : vector<8x64xf32>
    %cst_93 = arith.constant 0.000000e+00 : f32
    %273 = vector.broadcast %cst_93 : f32 to vector<8x1xf32>
    %274 = vector.extract_strided_slice %272 {offsets = [0, 0], sizes = [8, 32], strides = [1, 1]} : vector<8x64xf32> to vector<8x32xf32>
    %275 = vector.extract_strided_slice %274 {offsets = [0, 0], sizes = [8, 31], strides = [1, 1]} : vector<8x32xf32> to vector<8x31xf32>
    %276 = tpu.concatenate %273, %275 in 1 : vector<8x1xf32>, vector<8x31xf32> -> vector<8x32xf32>
    %277 = vector.extract_strided_slice %272 {offsets = [0, 32], sizes = [8, 32], strides = [1, 1]} : vector<8x64xf32> to vector<8x32xf32>
    %278 = vector.extract_strided_slice %277 {offsets = [0, 0], sizes = [8, 31], strides = [1, 1]} : vector<8x32xf32> to vector<8x31xf32>
    %279 = tpu.concatenate %273, %278 in 1 : vector<8x1xf32>, vector<8x31xf32> -> vector<8x32xf32>
    %280 = tpu.concatenate %276, %279 in 1 : vector<8x32xf32>, vector<8x32xf32> -> vector<8x64xf32>
    %cst_94 = arith.constant 0.000000e+00 : f32
    %281 = vector.broadcast %cst_94 : f32 to vector<8x1xf32>
    %282 = vector.extract_strided_slice %272 {offsets = [0, 0], sizes = [8, 32], strides = [1, 1]} : vector<8x64xf32> to vector<8x32xf32>
    %283 = vector.extract_strided_slice %282 {offsets = [0, 1], sizes = [8, 31], strides = [1, 1]} : vector<8x32xf32> to vector<8x31xf32>
    %284 = tpu.concatenate %283, %281 in 1 : vector<8x31xf32>, vector<8x1xf32> -> vector<8x32xf32>
    %285 = vector.extract_strided_slice %272 {offsets = [0, 32], sizes = [8, 32], strides = [1, 1]} : vector<8x64xf32> to vector<8x32xf32>
    %286 = vector.extract_strided_slice %285 {offsets = [0, 1], sizes = [8, 31], strides = [1, 1]} : vector<8x32xf32> to vector<8x31xf32>
    %287 = tpu.concatenate %286, %281 in 1 : vector<8x31xf32>, vector<8x1xf32> -> vector<8x32xf32>
    %288 = tpu.concatenate %284, %287 in 1 : vector<8x32xf32>, vector<8x32xf32> -> vector<8x64xf32>
    %cst_95 = arith.constant 0.000000e+00 : f32
    %289 = vector.broadcast %cst_95 : f32 to vector<8x64xf32>
    %cst_96 = arith.constant 0.000000e+00 : f32
    %290 = vector.broadcast %cst_96 : f32 to vector<1x64xf32>
    %291 = vector.extract_strided_slice %280 {offsets = [0, 0], sizes = [7, 64], strides = [1, 1]} : vector<8x64xf32> to vector<7x64xf32>
    %292 = tpu.concatenate %290, %291 in 0 : vector<1x64xf32>, vector<7x64xf32> -> vector<8x64xf32>
    %c0_97 = arith.constant 0 : index
    %c2 = arith.constant 2 : index
    %293 = memref.load %arg16[%c0_97, %c2] : memref<2x14xf32, #tpu.memory_space<smem>>
    %294 = vector.broadcast %293 : f32 to vector<8x64xf32>
    %295 = arith.mulf %294, %292 : vector<8x64xf32>
    %296 = arith.addf %289, %295 : vector<8x64xf32>
    %c0_98 = arith.constant 0 : index
    %c5 = arith.constant 5 : index
    %297 = memref.load %arg16[%c0_98, %c5] : memref<2x14xf32, #tpu.memory_space<smem>>
    %298 = vector.broadcast %297 : f32 to vector<8x64xf32>
    %299 = arith.mulf %298, %280 : vector<8x64xf32>
    %300 = arith.addf %296, %299 : vector<8x64xf32>
    %cst_99 = arith.constant 0.000000e+00 : f32
    %301 = vector.broadcast %cst_99 : f32 to vector<1x64xf32>
    %302 = vector.extract_strided_slice %280 {offsets = [1, 0], sizes = [7, 64], strides = [1, 1]} : vector<8x64xf32> to vector<7x64xf32>
    %303 = tpu.concatenate %302, %301 in 0 : vector<7x64xf32>, vector<1x64xf32> -> vector<8x64xf32>
    %c0_100 = arith.constant 0 : index
    %c8 = arith.constant 8 : index
    %304 = memref.load %arg16[%c0_100, %c8] : memref<2x14xf32, #tpu.memory_space<smem>>
    %305 = vector.broadcast %304 : f32 to vector<8x64xf32>
    %306 = arith.mulf %305, %303 : vector<8x64xf32>
    %307 = arith.addf %300, %306 : vector<8x64xf32>
    %cst_101 = arith.constant 0.000000e+00 : f32
    %308 = vector.broadcast %cst_101 : f32 to vector<1x64xf32>
    %309 = vector.extract_strided_slice %272 {offsets = [0, 0], sizes = [7, 64], strides = [1, 1]} : vector<8x64xf32> to vector<7x64xf32>
    %310 = tpu.concatenate %308, %309 in 0 : vector<1x64xf32>, vector<7x64xf32> -> vector<8x64xf32>
    %c0_102 = arith.constant 0 : index
    %c3 = arith.constant 3 : index
    %311 = memref.load %arg16[%c0_102, %c3] : memref<2x14xf32, #tpu.memory_space<smem>>
    %312 = vector.broadcast %311 : f32 to vector<8x64xf32>
    %313 = arith.mulf %312, %310 : vector<8x64xf32>
    %314 = arith.addf %307, %313 : vector<8x64xf32>
    %c0_103 = arith.constant 0 : index
    %c6 = arith.constant 6 : index
    %315 = memref.load %arg16[%c0_103, %c6] : memref<2x14xf32, #tpu.memory_space<smem>>
    %316 = vector.broadcast %315 : f32 to vector<8x64xf32>
    %317 = arith.mulf %316, %272 : vector<8x64xf32>
    %318 = arith.addf %314, %317 : vector<8x64xf32>
    %cst_104 = arith.constant 0.000000e+00 : f32
    %319 = vector.broadcast %cst_104 : f32 to vector<1x64xf32>
    %320 = vector.extract_strided_slice %272 {offsets = [1, 0], sizes = [7, 64], strides = [1, 1]} : vector<8x64xf32> to vector<7x64xf32>
    %321 = tpu.concatenate %320, %319 in 0 : vector<7x64xf32>, vector<1x64xf32> -> vector<8x64xf32>
    %c0_105 = arith.constant 0 : index
    %c9 = arith.constant 9 : index
    %322 = memref.load %arg16[%c0_105, %c9] : memref<2x14xf32, #tpu.memory_space<smem>>
    %323 = vector.broadcast %322 : f32 to vector<8x64xf32>
    %324 = arith.mulf %323, %321 : vector<8x64xf32>
    %325 = arith.addf %318, %324 : vector<8x64xf32>
    %cst_106 = arith.constant 0.000000e+00 : f32
    %326 = vector.broadcast %cst_106 : f32 to vector<1x64xf32>
    %327 = vector.extract_strided_slice %288 {offsets = [0, 0], sizes = [7, 64], strides = [1, 1]} : vector<8x64xf32> to vector<7x64xf32>
    %328 = tpu.concatenate %326, %327 in 0 : vector<1x64xf32>, vector<7x64xf32> -> vector<8x64xf32>
    %c0_107 = arith.constant 0 : index
    %c4 = arith.constant 4 : index
    %329 = memref.load %arg16[%c0_107, %c4] : memref<2x14xf32, #tpu.memory_space<smem>>
    %330 = vector.broadcast %329 : f32 to vector<8x64xf32>
    %331 = arith.mulf %330, %328 : vector<8x64xf32>
    %332 = arith.addf %325, %331 : vector<8x64xf32>
    %c0_108 = arith.constant 0 : index
    %c7 = arith.constant 7 : index
    %333 = memref.load %arg16[%c0_108, %c7] : memref<2x14xf32, #tpu.memory_space<smem>>
    %334 = vector.broadcast %333 : f32 to vector<8x64xf32>
    %335 = arith.mulf %334, %288 : vector<8x64xf32>
    %336 = arith.addf %332, %335 : vector<8x64xf32>
    %cst_109 = arith.constant 0.000000e+00 : f32
    %337 = vector.broadcast %cst_109 : f32 to vector<1x64xf32>
    %338 = vector.extract_strided_slice %288 {offsets = [1, 0], sizes = [7, 64], strides = [1, 1]} : vector<8x64xf32> to vector<7x64xf32>
    %339 = tpu.concatenate %338, %337 in 0 : vector<7x64xf32>, vector<1x64xf32> -> vector<8x64xf32>
    %c0_110 = arith.constant 0 : index
    %c10 = arith.constant 10 : index
    %340 = memref.load %arg16[%c0_110, %c10] : memref<2x14xf32, #tpu.memory_space<smem>>
    %341 = vector.broadcast %340 : f32 to vector<8x64xf32>
    %342 = arith.mulf %341, %339 : vector<8x64xf32>
    %343 = arith.addf %336, %342 : vector<8x64xf32>
    %c0_111 = arith.constant 0 : index
    %c11 = arith.constant 11 : index
    %344 = memref.load %arg16[%c0_111, %c11] : memref<2x14xf32, #tpu.memory_space<smem>>
    %345 = vector.broadcast %344 : f32 to vector<8x64xf32>
    %346 = arith.addf %343, %345 : vector<8x64xf32>
    %cst_112 = arith.constant 0.000000e+00 : f32
    %347 = vector.broadcast %cst_112 : f32 to vector<8x64xf32>
    %348 = arith.maximumf %346, %347 : vector<8x64xf32>
    %c0_113 = arith.constant 0 : index
    %c12 = arith.constant 12 : index
    %349 = memref.load %arg16[%c0_113, %c12] : memref<2x14xf32, #tpu.memory_space<smem>>
    %350 = vector.broadcast %349 : f32 to vector<8x64xf32>
    %351 = arith.mulf %350, %98 : vector<8x64xf32>
    %c0_114 = arith.constant 0 : index
    %c13 = arith.constant 13 : index
    %352 = memref.load %arg16[%c0_114, %c13] : memref<2x14xf32, #tpu.memory_space<smem>>
    %353 = vector.broadcast %352 : f32 to vector<8x64xf32>
    %354 = arith.addf %351, %353 : vector<8x64xf32>
    %355 = arith.addf %348, %354 : vector<8x64xf32>
    %cst_115 = arith.constant 0.000000e+00 : f32
    %356 = vector.broadcast %cst_115 : f32 to vector<8x64xf32>
    %357 = arith.maximumf %355, %356 : vector<8x64xf32>
    %c0_116 = arith.constant 0 : index
    %c0_117 = arith.constant 0 : index
    %c0_118 = arith.constant 0 : index
    %358 = vector.load %arg14[%c0_116, %c0_117, %c0_118] : memref<2x8x8xf32, #tpu.memory_space<vmem>>, vector<1x8x8xf32>
    %359 = vector.shape_cast %358 : vector<1x8x8xf32> to vector<8x8xf32>
    %cst_119 = arith.constant dense<0.000000e+00> : vector<8x64xf32>
    %360 = tpu.matmul %359, %357, %cst_119 {dimension_numbers = #tpu.dot_dimension_numbers<[1], [0], [0], [1], [0, 0, 1, 1], [], []>} : vector<8x8xf32>, vector<8x64xf32>, vector<8x64xf32> -> vector<8x64xf32>
    %c0_120 = arith.constant 0 : index
    %c0_121 = arith.constant 0 : index
    %c0_122 = arith.constant 0 : index
    %361 = vector.load %arg15[%c0_120, %c0_121, %c0_122] : memref<2x8x1xf32, #tpu.memory_space<vmem>>, vector<1x8x1xf32>
    %362 = vector.shape_cast %361 : vector<1x8x1xf32> to vector<8x1xf32>
    %363 = vector.broadcast %362 : vector<8x1xf32> to vector<8x64xf32>
    %364 = arith.addf %360, %363 : vector<8x64xf32>
    %365 = vector.extract_strided_slice %364 {offsets = [0, 0], sizes = [8, 32], strides = [1, 1]} : vector<8x64xf32> to vector<8x32xf32>
    %366 = vector.extract_strided_slice %364 {offsets = [0, 32], sizes = [8, 32], strides = [1, 1]} : vector<8x64xf32> to vector<8x32xf32>
    %367 = tpu.concatenate %112, %365, %112, %366 in 0 : vector<1x32xf32>, vector<8x32xf32>, vector<1x32xf32>, vector<8x32xf32> -> vector<18x32xf32>
    %368 = arith.addf %264, %367 : vector<18x32xf32>
    %c1_123 = arith.constant 1 : index
    %c0_124 = arith.constant 0 : index
    %c0_125 = arith.constant 0 : index
    %369 = vector.load %arg10[%c1_123, %c0_124, %c0_125] : memref<2x5x32xf32, #tpu.memory_space<vmem>>, vector<1x5x32xf32>
    %370 = vector.shape_cast %369 : vector<1x5x32xf32> to vector<5x32xf32>
    %371 = vector.extract_strided_slice %370 {offsets = [0, 0], sizes = [1, 32], strides = [1, 1]} : vector<5x32xf32> to vector<1x32xf32>
    %372 = vector.extract_strided_slice %370 {offsets = [1, 0], sizes = [1, 32], strides = [1, 1]} : vector<5x32xf32> to vector<1x32xf32>
    %cst_126 = arith.constant dense<0.000000e+00> : vector<18xf32>
    %373 = vector.multi_reduction <add>, %368, %cst_126 [1] : vector<18x32xf32> to vector<18xf32>
    %374 = vector.shape_cast %373 : vector<18xf32> to vector<18x1xf32>
    %cst_127 = arith.constant 3.200000e+01 : f32
    %375 = vector.broadcast %cst_127 : f32 to vector<18x1xf32>
    %376 = arith.divf %374, %375 : vector<18x1xf32>
    %377 = vector.broadcast %376 : vector<18x1xf32> to vector<18x32xf32>
    %378 = arith.subf %368, %377 : vector<18x32xf32>
    %379 = arith.mulf %378, %378 : vector<18x32xf32>
    %cst_128 = arith.constant dense<0.000000e+00> : vector<18xf32>
    %380 = vector.multi_reduction <add>, %379, %cst_128 [1] : vector<18x32xf32> to vector<18xf32>
    %381 = vector.shape_cast %380 : vector<18xf32> to vector<18x1xf32>
    %cst_129 = arith.constant 3.200000e+01 : f32
    %382 = vector.broadcast %cst_129 : f32 to vector<18x1xf32>
    %383 = arith.divf %381, %382 : vector<18x1xf32>
    %384 = vector.broadcast %376 : vector<18x1xf32> to vector<18x32xf32>
    %385 = arith.subf %368, %384 : vector<18x32xf32>
    %cst_130 = arith.constant 9.99999974E-6 : f32
    %386 = vector.broadcast %cst_130 : f32 to vector<18x1xf32>
    %387 = arith.addf %383, %386 : vector<18x1xf32>
    %388 = math.rsqrt %387 : vector<18x1xf32>
    %389 = vector.broadcast %388 : vector<18x1xf32> to vector<18x32xf32>
    %390 = arith.mulf %385, %389 : vector<18x32xf32>
    %391 = vector.broadcast %371 : vector<1x32xf32> to vector<18x32xf32>
    %392 = arith.mulf %390, %391 : vector<18x32xf32>
    %393 = vector.broadcast %372 : vector<1x32xf32> to vector<18x32xf32>
    %394 = arith.addf %392, %393 : vector<18x32xf32>
    %c1_131 = arith.constant 1 : index
    %c0_132 = arith.constant 0 : index
    %c0_133 = arith.constant 0 : index
    %395 = vector.load %arg8[%c1_131, %c0_132, %c0_133] : memref<2x32x96xf32, #tpu.memory_space<vmem>>, vector<1x32x96xf32>
    %396 = vector.shape_cast %395 : vector<1x32x96xf32> to vector<32x96xf32>
    %cst_134 = arith.constant dense<0.000000e+00> : vector<18x96xf32>
    %397 = tpu.matmul %394, %396, %cst_134 {dimension_numbers = #tpu.dot_dimension_numbers<[1], [0], [0], [1], [0, 0, 1, 1], [], []>} : vector<18x32xf32>, vector<32x96xf32>, vector<18x96xf32> -> vector<18x96xf32>
    %c1_135 = arith.constant 1 : index
    %c0_136 = arith.constant 0 : index
    %c0_137 = arith.constant 0 : index
    %398 = vector.load %arg9[%c1_135, %c0_136, %c0_137] : memref<2x32x32xf32, #tpu.memory_space<vmem>>, vector<1x32x32xf32>
    %399 = vector.shape_cast %398 : vector<1x32x32xf32> to vector<32x32xf32>
    %400 = vector.extract_strided_slice %397 {offsets = [0, 0], sizes = [9, 16], strides = [1, 1]} : vector<18x96xf32> to vector<9x16xf32>
    %401 = vector.extract_strided_slice %397 {offsets = [0, 32], sizes = [9, 16], strides = [1, 1]} : vector<18x96xf32> to vector<9x16xf32>
    %402 = vector.extract_strided_slice %397 {offsets = [0, 64], sizes = [9, 16], strides = [1, 1]} : vector<18x96xf32> to vector<9x16xf32>
    %cst_138 = arith.constant dense<0.000000e+00> : vector<9x9xf32>
    %403 = tpu.matmul %400, %401, %cst_138 {dimension_numbers = #tpu.dot_dimension_numbers<[1], [1], [0], [0], [0, 0, 1, 0], [], []>} : vector<9x16xf32>, vector<9x16xf32>, vector<9x9xf32> -> vector<9x9xf32>
    %cst_139 = arith.constant 2.500000e-01 : f32
    %404 = vector.broadcast %cst_139 : f32 to vector<9x9xf32>
    %405 = arith.mulf %403, %404 : vector<9x9xf32>
    %cst_140 = arith.constant dense<0xFF800000> : vector<9xf32>
    %406 = vector.multi_reduction <maximumf>, %405, %cst_140 [1] : vector<9x9xf32> to vector<9xf32>
    %407 = vector.shape_cast %406 : vector<9xf32> to vector<9x1xf32>
    %408 = vector.broadcast %407 : vector<9x1xf32> to vector<9x9xf32>
    %409 = arith.subf %405, %408 : vector<9x9xf32>
    %410 = math.exp %409 : vector<9x9xf32>
    %cst_141 = arith.constant dense<0.000000e+00> : vector<9xf32>
    %411 = vector.multi_reduction <add>, %410, %cst_141 [1] : vector<9x9xf32> to vector<9xf32>
    %412 = vector.shape_cast %411 : vector<9xf32> to vector<9x1xf32>
    %413 = vector.broadcast %412 : vector<9x1xf32> to vector<9x9xf32>
    %414 = arith.divf %410, %413 : vector<9x9xf32>
    %cst_142 = arith.constant dense<0.000000e+00> : vector<9x16xf32>
    %415 = tpu.matmul %414, %402, %cst_142 {dimension_numbers = #tpu.dot_dimension_numbers<[1], [0], [0], [1], [0, 0, 1, 1], [], []>} : vector<9x9xf32>, vector<9x16xf32>, vector<9x16xf32> -> vector<9x16xf32>
    %416 = vector.extract_strided_slice %397 {offsets = [0, 16], sizes = [9, 16], strides = [1, 1]} : vector<18x96xf32> to vector<9x16xf32>
    %417 = vector.extract_strided_slice %397 {offsets = [0, 48], sizes = [9, 16], strides = [1, 1]} : vector<18x96xf32> to vector<9x16xf32>
    %418 = vector.extract_strided_slice %397 {offsets = [0, 80], sizes = [9, 16], strides = [1, 1]} : vector<18x96xf32> to vector<9x16xf32>
    %cst_143 = arith.constant dense<0.000000e+00> : vector<9x9xf32>
    %419 = tpu.matmul %416, %417, %cst_143 {dimension_numbers = #tpu.dot_dimension_numbers<[1], [1], [0], [0], [0, 0, 1, 0], [], []>} : vector<9x16xf32>, vector<9x16xf32>, vector<9x9xf32> -> vector<9x9xf32>
    %cst_144 = arith.constant 2.500000e-01 : f32
    %420 = vector.broadcast %cst_144 : f32 to vector<9x9xf32>
    %421 = arith.mulf %419, %420 : vector<9x9xf32>
    %cst_145 = arith.constant dense<0xFF800000> : vector<9xf32>
    %422 = vector.multi_reduction <maximumf>, %421, %cst_145 [1] : vector<9x9xf32> to vector<9xf32>
    %423 = vector.shape_cast %422 : vector<9xf32> to vector<9x1xf32>
    %424 = vector.broadcast %423 : vector<9x1xf32> to vector<9x9xf32>
    %425 = arith.subf %421, %424 : vector<9x9xf32>
    %426 = math.exp %425 : vector<9x9xf32>
    %cst_146 = arith.constant dense<0.000000e+00> : vector<9xf32>
    %427 = vector.multi_reduction <add>, %426, %cst_146 [1] : vector<9x9xf32> to vector<9xf32>
    %428 = vector.shape_cast %427 : vector<9xf32> to vector<9x1xf32>
    %429 = vector.broadcast %428 : vector<9x1xf32> to vector<9x9xf32>
    %430 = arith.divf %426, %429 : vector<9x9xf32>
    %cst_147 = arith.constant dense<0.000000e+00> : vector<9x16xf32>
    %431 = tpu.matmul %430, %418, %cst_147 {dimension_numbers = #tpu.dot_dimension_numbers<[1], [0], [0], [1], [0, 0, 1, 1], [], []>} : vector<9x9xf32>, vector<9x16xf32>, vector<9x16xf32> -> vector<9x16xf32>
    %432 = tpu.concatenate %415, %431 in 1 : vector<9x16xf32>, vector<9x16xf32> -> vector<9x32xf32>
    %cst_148 = arith.constant dense<0.000000e+00> : vector<9x32xf32>
    %433 = tpu.matmul %432, %399, %cst_148 {dimension_numbers = #tpu.dot_dimension_numbers<[1], [0], [0], [1], [0, 0, 1, 1], [], []>} : vector<9x32xf32>, vector<32x32xf32>, vector<9x32xf32> -> vector<9x32xf32>
    %434 = vector.extract_strided_slice %397 {offsets = [9, 0], sizes = [9, 16], strides = [1, 1]} : vector<18x96xf32> to vector<9x16xf32>
    %435 = vector.extract_strided_slice %397 {offsets = [9, 32], sizes = [9, 16], strides = [1, 1]} : vector<18x96xf32> to vector<9x16xf32>
    %436 = vector.extract_strided_slice %397 {offsets = [9, 64], sizes = [9, 16], strides = [1, 1]} : vector<18x96xf32> to vector<9x16xf32>
    %cst_149 = arith.constant dense<0.000000e+00> : vector<9x9xf32>
    %437 = tpu.matmul %434, %435, %cst_149 {dimension_numbers = #tpu.dot_dimension_numbers<[1], [1], [0], [0], [0, 0, 1, 0], [], []>} : vector<9x16xf32>, vector<9x16xf32>, vector<9x9xf32> -> vector<9x9xf32>
    %cst_150 = arith.constant 2.500000e-01 : f32
    %438 = vector.broadcast %cst_150 : f32 to vector<9x9xf32>
    %439 = arith.mulf %437, %438 : vector<9x9xf32>
    %cst_151 = arith.constant dense<0xFF800000> : vector<9xf32>
    %440 = vector.multi_reduction <maximumf>, %439, %cst_151 [1] : vector<9x9xf32> to vector<9xf32>
    %441 = vector.shape_cast %440 : vector<9xf32> to vector<9x1xf32>
    %442 = vector.broadcast %441 : vector<9x1xf32> to vector<9x9xf32>
    %443 = arith.subf %439, %442 : vector<9x9xf32>
    %444 = math.exp %443 : vector<9x9xf32>
    %cst_152 = arith.constant dense<0.000000e+00> : vector<9xf32>
    %445 = vector.multi_reduction <add>, %444, %cst_152 [1] : vector<9x9xf32> to vector<9xf32>
    %446 = vector.shape_cast %445 : vector<9xf32> to vector<9x1xf32>
    %447 = vector.broadcast %446 : vector<9x1xf32> to vector<9x9xf32>
    %448 = arith.divf %444, %447 : vector<9x9xf32>
    %cst_153 = arith.constant dense<0.000000e+00> : vector<9x16xf32>
    %449 = tpu.matmul %448, %436, %cst_153 {dimension_numbers = #tpu.dot_dimension_numbers<[1], [0], [0], [1], [0, 0, 1, 1], [], []>} : vector<9x9xf32>, vector<9x16xf32>, vector<9x16xf32> -> vector<9x16xf32>
    %450 = vector.extract_strided_slice %397 {offsets = [9, 16], sizes = [9, 16], strides = [1, 1]} : vector<18x96xf32> to vector<9x16xf32>
    %451 = vector.extract_strided_slice %397 {offsets = [9, 48], sizes = [9, 16], strides = [1, 1]} : vector<18x96xf32> to vector<9x16xf32>
    %452 = vector.extract_strided_slice %397 {offsets = [9, 80], sizes = [9, 16], strides = [1, 1]} : vector<18x96xf32> to vector<9x16xf32>
    %cst_154 = arith.constant dense<0.000000e+00> : vector<9x9xf32>
    %453 = tpu.matmul %450, %451, %cst_154 {dimension_numbers = #tpu.dot_dimension_numbers<[1], [1], [0], [0], [0, 0, 1, 0], [], []>} : vector<9x16xf32>, vector<9x16xf32>, vector<9x9xf32> -> vector<9x9xf32>
    %cst_155 = arith.constant 2.500000e-01 : f32
    %454 = vector.broadcast %cst_155 : f32 to vector<9x9xf32>
    %455 = arith.mulf %453, %454 : vector<9x9xf32>
    %cst_156 = arith.constant dense<0xFF800000> : vector<9xf32>
    %456 = vector.multi_reduction <maximumf>, %455, %cst_156 [1] : vector<9x9xf32> to vector<9xf32>
    %457 = vector.shape_cast %456 : vector<9xf32> to vector<9x1xf32>
    %458 = vector.broadcast %457 : vector<9x1xf32> to vector<9x9xf32>
    %459 = arith.subf %455, %458 : vector<9x9xf32>
    %460 = math.exp %459 : vector<9x9xf32>
    %cst_157 = arith.constant dense<0.000000e+00> : vector<9xf32>
    %461 = vector.multi_reduction <add>, %460, %cst_157 [1] : vector<9x9xf32> to vector<9xf32>
    %462 = vector.shape_cast %461 : vector<9xf32> to vector<9x1xf32>
    %463 = vector.broadcast %462 : vector<9x1xf32> to vector<9x9xf32>
    %464 = arith.divf %460, %463 : vector<9x9xf32>
    %cst_158 = arith.constant dense<0.000000e+00> : vector<9x16xf32>
    %465 = tpu.matmul %464, %452, %cst_158 {dimension_numbers = #tpu.dot_dimension_numbers<[1], [0], [0], [1], [0, 0, 1, 1], [], []>} : vector<9x9xf32>, vector<9x16xf32>, vector<9x16xf32> -> vector<9x16xf32>
    %466 = tpu.concatenate %449, %465 in 1 : vector<9x16xf32>, vector<9x16xf32> -> vector<9x32xf32>
    %cst_159 = arith.constant dense<0.000000e+00> : vector<9x32xf32>
    %467 = tpu.matmul %466, %399, %cst_159 {dimension_numbers = #tpu.dot_dimension_numbers<[1], [0], [0], [1], [0, 0, 1, 1], [], []>} : vector<9x32xf32>, vector<32x32xf32>, vector<9x32xf32> -> vector<9x32xf32>
    %468 = tpu.concatenate %433, %467 in 0 : vector<9x32xf32>, vector<9x32xf32> -> vector<18x32xf32>
    %469 = arith.addf %368, %468 : vector<18x32xf32>
    %470 = vector.extract_strided_slice %370 {offsets = [2, 0], sizes = [1, 32], strides = [1, 1]} : vector<5x32xf32> to vector<1x32xf32>
    %471 = vector.extract_strided_slice %370 {offsets = [3, 0], sizes = [1, 32], strides = [1, 1]} : vector<5x32xf32> to vector<1x32xf32>
    %cst_160 = arith.constant dense<0.000000e+00> : vector<18xf32>
    %472 = vector.multi_reduction <add>, %469, %cst_160 [1] : vector<18x32xf32> to vector<18xf32>
    %473 = vector.shape_cast %472 : vector<18xf32> to vector<18x1xf32>
    %cst_161 = arith.constant 3.200000e+01 : f32
    %474 = vector.broadcast %cst_161 : f32 to vector<18x1xf32>
    %475 = arith.divf %473, %474 : vector<18x1xf32>
    %476 = vector.broadcast %475 : vector<18x1xf32> to vector<18x32xf32>
    %477 = arith.subf %469, %476 : vector<18x32xf32>
    %478 = arith.mulf %477, %477 : vector<18x32xf32>
    %cst_162 = arith.constant dense<0.000000e+00> : vector<18xf32>
    %479 = vector.multi_reduction <add>, %478, %cst_162 [1] : vector<18x32xf32> to vector<18xf32>
    %480 = vector.shape_cast %479 : vector<18xf32> to vector<18x1xf32>
    %cst_163 = arith.constant 3.200000e+01 : f32
    %481 = vector.broadcast %cst_163 : f32 to vector<18x1xf32>
    %482 = arith.divf %480, %481 : vector<18x1xf32>
    %483 = vector.broadcast %475 : vector<18x1xf32> to vector<18x32xf32>
    %484 = arith.subf %469, %483 : vector<18x32xf32>
    %cst_164 = arith.constant 9.99999974E-6 : f32
    %485 = vector.broadcast %cst_164 : f32 to vector<18x1xf32>
    %486 = arith.addf %482, %485 : vector<18x1xf32>
    %487 = math.rsqrt %486 : vector<18x1xf32>
    %488 = vector.broadcast %487 : vector<18x1xf32> to vector<18x32xf32>
    %489 = arith.mulf %484, %488 : vector<18x32xf32>
    %490 = vector.broadcast %470 : vector<1x32xf32> to vector<18x32xf32>
    %491 = arith.mulf %489, %490 : vector<18x32xf32>
    %492 = vector.broadcast %471 : vector<1x32xf32> to vector<18x32xf32>
    %493 = arith.addf %491, %492 : vector<18x32xf32>
    %c1_165 = arith.constant 1 : index
    %c0_166 = arith.constant 0 : index
    %c0_167 = arith.constant 0 : index
    %494 = vector.load %arg11[%c1_165, %c0_166, %c0_167] : memref<2x32x64xf32, #tpu.memory_space<vmem>>, vector<1x32x64xf32>
    %495 = vector.shape_cast %494 : vector<1x32x64xf32> to vector<32x64xf32>
    %cst_168 = arith.constant dense<0.000000e+00> : vector<18x64xf32>
    %496 = tpu.matmul %493, %495, %cst_168 {dimension_numbers = #tpu.dot_dimension_numbers<[1], [0], [0], [1], [0, 0, 1, 1], [], []>} : vector<18x32xf32>, vector<32x64xf32>, vector<18x64xf32> -> vector<18x64xf32>
    %c1_169 = arith.constant 1 : index
    %c0_170 = arith.constant 0 : index
    %c0_171 = arith.constant 0 : index
    %497 = vector.load %arg12[%c1_169, %c0_170, %c0_171] : memref<2x1x64xf32, #tpu.memory_space<vmem>>, vector<1x1x64xf32>
    %498 = vector.shape_cast %497 : vector<1x1x64xf32> to vector<1x64xf32>
    %499 = vector.broadcast %498 : vector<1x64xf32> to vector<18x64xf32>
    %500 = arith.addf %496, %499 : vector<18x64xf32>
    %cst_172 = arith.constant 5.000000e-01 : f32
    %501 = vector.broadcast %cst_172 : f32 to vector<18x64xf32>
    %502 = arith.mulf %501, %500 : vector<18x64xf32>
    %cst_173 = arith.constant 4.471500e-02 : f32
    %503 = vector.broadcast %cst_173 : f32 to vector<18x64xf32>
    %504 = arith.mulf %503, %500 : vector<18x64xf32>
    %505 = arith.mulf %504, %500 : vector<18x64xf32>
    %506 = arith.mulf %505, %500 : vector<18x64xf32>
    %507 = arith.addf %500, %506 : vector<18x64xf32>
    %cst_174 = arith.constant 0.797884583 : f32
    %508 = vector.broadcast %cst_174 : f32 to vector<18x64xf32>
    %509 = arith.mulf %508, %507 : vector<18x64xf32>
    %510 = math.tanh %509 : vector<18x64xf32>
    %cst_175 = arith.constant 1.000000e+00 : f32
    %511 = vector.broadcast %cst_175 : f32 to vector<18x64xf32>
    %512 = arith.addf %511, %510 : vector<18x64xf32>
    %513 = arith.mulf %502, %512 : vector<18x64xf32>
    %c1_176 = arith.constant 1 : index
    %c0_177 = arith.constant 0 : index
    %c0_178 = arith.constant 0 : index
    %514 = vector.load %arg13[%c1_176, %c0_177, %c0_178] : memref<2x64x32xf32, #tpu.memory_space<vmem>>, vector<1x64x32xf32>
    %515 = vector.shape_cast %514 : vector<1x64x32xf32> to vector<64x32xf32>
    %cst_179 = arith.constant dense<0.000000e+00> : vector<18x32xf32>
    %516 = tpu.matmul %513, %515, %cst_179 {dimension_numbers = #tpu.dot_dimension_numbers<[1], [0], [0], [1], [0, 0, 1, 1], [], []>} : vector<18x64xf32>, vector<64x32xf32>, vector<18x32xf32> -> vector<18x32xf32>
    %517 = vector.extract_strided_slice %370 {offsets = [4, 0], sizes = [1, 32], strides = [1, 1]} : vector<5x32xf32> to vector<1x32xf32>
    %518 = vector.broadcast %517 : vector<1x32xf32> to vector<18x32xf32>
    %519 = arith.addf %516, %518 : vector<18x32xf32>
    %520 = arith.addf %519, %469 : vector<18x32xf32>
    %c1_180 = arith.constant 1 : index
    %c0_181 = arith.constant 0 : index
    %521 = memref.load %arg16[%c1_180, %c0_181] : memref<2x14xf32, #tpu.memory_space<smem>>
    %522 = vector.broadcast %521 : f32 to vector<8x64xf32>
    %523 = arith.mulf %522, %357 : vector<8x64xf32>
    %c1_182 = arith.constant 1 : index
    %c1_183 = arith.constant 1 : index
    %524 = memref.load %arg16[%c1_182, %c1_183] : memref<2x14xf32, #tpu.memory_space<smem>>
    %525 = vector.broadcast %524 : f32 to vector<8x64xf32>
    %526 = arith.addf %523, %525 : vector<8x64xf32>
    %cst_184 = arith.constant 0.000000e+00 : f32
    %527 = vector.broadcast %cst_184 : f32 to vector<8x64xf32>
    %528 = arith.maximumf %526, %527 : vector<8x64xf32>
    %cst_185 = arith.constant 0.000000e+00 : f32
    %529 = vector.broadcast %cst_185 : f32 to vector<8x1xf32>
    %530 = vector.extract_strided_slice %528 {offsets = [0, 0], sizes = [8, 32], strides = [1, 1]} : vector<8x64xf32> to vector<8x32xf32>
    %531 = vector.extract_strided_slice %530 {offsets = [0, 0], sizes = [8, 31], strides = [1, 1]} : vector<8x32xf32> to vector<8x31xf32>
    %532 = tpu.concatenate %529, %531 in 1 : vector<8x1xf32>, vector<8x31xf32> -> vector<8x32xf32>
    %533 = vector.extract_strided_slice %528 {offsets = [0, 32], sizes = [8, 32], strides = [1, 1]} : vector<8x64xf32> to vector<8x32xf32>
    %534 = vector.extract_strided_slice %533 {offsets = [0, 0], sizes = [8, 31], strides = [1, 1]} : vector<8x32xf32> to vector<8x31xf32>
    %535 = tpu.concatenate %529, %534 in 1 : vector<8x1xf32>, vector<8x31xf32> -> vector<8x32xf32>
    %536 = tpu.concatenate %532, %535 in 1 : vector<8x32xf32>, vector<8x32xf32> -> vector<8x64xf32>
    %cst_186 = arith.constant 0.000000e+00 : f32
    %537 = vector.broadcast %cst_186 : f32 to vector<8x1xf32>
    %538 = vector.extract_strided_slice %528 {offsets = [0, 0], sizes = [8, 32], strides = [1, 1]} : vector<8x64xf32> to vector<8x32xf32>
    %539 = vector.extract_strided_slice %538 {offsets = [0, 1], sizes = [8, 31], strides = [1, 1]} : vector<8x32xf32> to vector<8x31xf32>
    %540 = tpu.concatenate %539, %537 in 1 : vector<8x31xf32>, vector<8x1xf32> -> vector<8x32xf32>
    %541 = vector.extract_strided_slice %528 {offsets = [0, 32], sizes = [8, 32], strides = [1, 1]} : vector<8x64xf32> to vector<8x32xf32>
    %542 = vector.extract_strided_slice %541 {offsets = [0, 1], sizes = [8, 31], strides = [1, 1]} : vector<8x32xf32> to vector<8x31xf32>
    %543 = tpu.concatenate %542, %537 in 1 : vector<8x31xf32>, vector<8x1xf32> -> vector<8x32xf32>
    %544 = tpu.concatenate %540, %543 in 1 : vector<8x32xf32>, vector<8x32xf32> -> vector<8x64xf32>
    %cst_187 = arith.constant 0.000000e+00 : f32
    %545 = vector.broadcast %cst_187 : f32 to vector<8x64xf32>
    %cst_188 = arith.constant 0.000000e+00 : f32
    %546 = vector.broadcast %cst_188 : f32 to vector<1x64xf32>
    %547 = vector.extract_strided_slice %536 {offsets = [0, 0], sizes = [7, 64], strides = [1, 1]} : vector<8x64xf32> to vector<7x64xf32>
    %548 = tpu.concatenate %546, %547 in 0 : vector<1x64xf32>, vector<7x64xf32> -> vector<8x64xf32>
    %c1_189 = arith.constant 1 : index
    %c2_190 = arith.constant 2 : index
    %549 = memref.load %arg16[%c1_189, %c2_190] : memref<2x14xf32, #tpu.memory_space<smem>>
    %550 = vector.broadcast %549 : f32 to vector<8x64xf32>
    %551 = arith.mulf %550, %548 : vector<8x64xf32>
    %552 = arith.addf %545, %551 : vector<8x64xf32>
    %c1_191 = arith.constant 1 : index
    %c5_192 = arith.constant 5 : index
    %553 = memref.load %arg16[%c1_191, %c5_192] : memref<2x14xf32, #tpu.memory_space<smem>>
    %554 = vector.broadcast %553 : f32 to vector<8x64xf32>
    %555 = arith.mulf %554, %536 : vector<8x64xf32>
    %556 = arith.addf %552, %555 : vector<8x64xf32>
    %cst_193 = arith.constant 0.000000e+00 : f32
    %557 = vector.broadcast %cst_193 : f32 to vector<1x64xf32>
    %558 = vector.extract_strided_slice %536 {offsets = [1, 0], sizes = [7, 64], strides = [1, 1]} : vector<8x64xf32> to vector<7x64xf32>
    %559 = tpu.concatenate %558, %557 in 0 : vector<7x64xf32>, vector<1x64xf32> -> vector<8x64xf32>
    %c1_194 = arith.constant 1 : index
    %c8_195 = arith.constant 8 : index
    %560 = memref.load %arg16[%c1_194, %c8_195] : memref<2x14xf32, #tpu.memory_space<smem>>
    %561 = vector.broadcast %560 : f32 to vector<8x64xf32>
    %562 = arith.mulf %561, %559 : vector<8x64xf32>
    %563 = arith.addf %556, %562 : vector<8x64xf32>
    %cst_196 = arith.constant 0.000000e+00 : f32
    %564 = vector.broadcast %cst_196 : f32 to vector<1x64xf32>
    %565 = vector.extract_strided_slice %528 {offsets = [0, 0], sizes = [7, 64], strides = [1, 1]} : vector<8x64xf32> to vector<7x64xf32>
    %566 = tpu.concatenate %564, %565 in 0 : vector<1x64xf32>, vector<7x64xf32> -> vector<8x64xf32>
    %c1_197 = arith.constant 1 : index
    %c3_198 = arith.constant 3 : index
    %567 = memref.load %arg16[%c1_197, %c3_198] : memref<2x14xf32, #tpu.memory_space<smem>>
    %568 = vector.broadcast %567 : f32 to vector<8x64xf32>
    %569 = arith.mulf %568, %566 : vector<8x64xf32>
    %570 = arith.addf %563, %569 : vector<8x64xf32>
    %c1_199 = arith.constant 1 : index
    %c6_200 = arith.constant 6 : index
    %571 = memref.load %arg16[%c1_199, %c6_200] : memref<2x14xf32, #tpu.memory_space<smem>>
    %572 = vector.broadcast %571 : f32 to vector<8x64xf32>
    %573 = arith.mulf %572, %528 : vector<8x64xf32>
    %574 = arith.addf %570, %573 : vector<8x64xf32>
    %cst_201 = arith.constant 0.000000e+00 : f32
    %575 = vector.broadcast %cst_201 : f32 to vector<1x64xf32>
    %576 = vector.extract_strided_slice %528 {offsets = [1, 0], sizes = [7, 64], strides = [1, 1]} : vector<8x64xf32> to vector<7x64xf32>
    %577 = tpu.concatenate %576, %575 in 0 : vector<7x64xf32>, vector<1x64xf32> -> vector<8x64xf32>
    %c1_202 = arith.constant 1 : index
    %c9_203 = arith.constant 9 : index
    %578 = memref.load %arg16[%c1_202, %c9_203] : memref<2x14xf32, #tpu.memory_space<smem>>
    %579 = vector.broadcast %578 : f32 to vector<8x64xf32>
    %580 = arith.mulf %579, %577 : vector<8x64xf32>
    %581 = arith.addf %574, %580 : vector<8x64xf32>
    %cst_204 = arith.constant 0.000000e+00 : f32
    %582 = vector.broadcast %cst_204 : f32 to vector<1x64xf32>
    %583 = vector.extract_strided_slice %544 {offsets = [0, 0], sizes = [7, 64], strides = [1, 1]} : vector<8x64xf32> to vector<7x64xf32>
    %584 = tpu.concatenate %582, %583 in 0 : vector<1x64xf32>, vector<7x64xf32> -> vector<8x64xf32>
    %c1_205 = arith.constant 1 : index
    %c4_206 = arith.constant 4 : index
    %585 = memref.load %arg16[%c1_205, %c4_206] : memref<2x14xf32, #tpu.memory_space<smem>>
    %586 = vector.broadcast %585 : f32 to vector<8x64xf32>
    %587 = arith.mulf %586, %584 : vector<8x64xf32>
    %588 = arith.addf %581, %587 : vector<8x64xf32>
    %c1_207 = arith.constant 1 : index
    %c7_208 = arith.constant 7 : index
    %589 = memref.load %arg16[%c1_207, %c7_208] : memref<2x14xf32, #tpu.memory_space<smem>>
    %590 = vector.broadcast %589 : f32 to vector<8x64xf32>
    %591 = arith.mulf %590, %544 : vector<8x64xf32>
    %592 = arith.addf %588, %591 : vector<8x64xf32>
    %cst_209 = arith.constant 0.000000e+00 : f32
    %593 = vector.broadcast %cst_209 : f32 to vector<1x64xf32>
    %594 = vector.extract_strided_slice %544 {offsets = [1, 0], sizes = [7, 64], strides = [1, 1]} : vector<8x64xf32> to vector<7x64xf32>
    %595 = tpu.concatenate %594, %593 in 0 : vector<7x64xf32>, vector<1x64xf32> -> vector<8x64xf32>
    %c1_210 = arith.constant 1 : index
    %c10_211 = arith.constant 10 : index
    %596 = memref.load %arg16[%c1_210, %c10_211] : memref<2x14xf32, #tpu.memory_space<smem>>
    %597 = vector.broadcast %596 : f32 to vector<8x64xf32>
    %598 = arith.mulf %597, %595 : vector<8x64xf32>
    %599 = arith.addf %592, %598 : vector<8x64xf32>
    %c1_212 = arith.constant 1 : index
    %c11_213 = arith.constant 11 : index
    %600 = memref.load %arg16[%c1_212, %c11_213] : memref<2x14xf32, #tpu.memory_space<smem>>
    %601 = vector.broadcast %600 : f32 to vector<8x64xf32>
    %602 = arith.addf %599, %601 : vector<8x64xf32>
    %cst_214 = arith.constant 0.000000e+00 : f32
    %603 = vector.broadcast %cst_214 : f32 to vector<8x64xf32>
    %604 = arith.maximumf %602, %603 : vector<8x64xf32>
    %c1_215 = arith.constant 1 : index
    %c12_216 = arith.constant 12 : index
    %605 = memref.load %arg16[%c1_215, %c12_216] : memref<2x14xf32, #tpu.memory_space<smem>>
    %606 = vector.broadcast %605 : f32 to vector<8x64xf32>
    %607 = arith.mulf %606, %357 : vector<8x64xf32>
    %c1_217 = arith.constant 1 : index
    %c13_218 = arith.constant 13 : index
    %608 = memref.load %arg16[%c1_217, %c13_218] : memref<2x14xf32, #tpu.memory_space<smem>>
    %609 = vector.broadcast %608 : f32 to vector<8x64xf32>
    %610 = arith.addf %607, %609 : vector<8x64xf32>
    %611 = arith.addf %604, %610 : vector<8x64xf32>
    %cst_219 = arith.constant 0.000000e+00 : f32
    %612 = vector.broadcast %cst_219 : f32 to vector<8x64xf32>
    %613 = arith.maximumf %611, %612 : vector<8x64xf32>
    %c1_220 = arith.constant 1 : index
    %c0_221 = arith.constant 0 : index
    %c0_222 = arith.constant 0 : index
    %614 = vector.load %arg14[%c1_220, %c0_221, %c0_222] : memref<2x8x8xf32, #tpu.memory_space<vmem>>, vector<1x8x8xf32>
    %615 = vector.shape_cast %614 : vector<1x8x8xf32> to vector<8x8xf32>
    %cst_223 = arith.constant dense<0.000000e+00> : vector<8x64xf32>
    %616 = tpu.matmul %615, %613, %cst_223 {dimension_numbers = #tpu.dot_dimension_numbers<[1], [0], [0], [1], [0, 0, 1, 1], [], []>} : vector<8x8xf32>, vector<8x64xf32>, vector<8x64xf32> -> vector<8x64xf32>
    %c1_224 = arith.constant 1 : index
    %c0_225 = arith.constant 0 : index
    %c0_226 = arith.constant 0 : index
    %617 = vector.load %arg15[%c1_224, %c0_225, %c0_226] : memref<2x8x1xf32, #tpu.memory_space<vmem>>, vector<1x8x1xf32>
    %618 = vector.shape_cast %617 : vector<1x8x1xf32> to vector<8x1xf32>
    %619 = vector.broadcast %618 : vector<8x1xf32> to vector<8x64xf32>
    %620 = arith.addf %616, %619 : vector<8x64xf32>
    %621 = vector.extract_strided_slice %520 {offsets = [1, 0], sizes = [1, 32], strides = [1, 1]} : vector<18x32xf32> to vector<1x32xf32>
    %622 = vector.extract_strided_slice %620 {offsets = [0, 0], sizes = [1, 32], strides = [1, 1]} : vector<8x64xf32> to vector<1x32xf32>
    %623 = vector.extract_strided_slice %520 {offsets = [2, 0], sizes = [1, 32], strides = [1, 1]} : vector<18x32xf32> to vector<1x32xf32>
    %624 = vector.extract_strided_slice %620 {offsets = [1, 0], sizes = [1, 32], strides = [1, 1]} : vector<8x64xf32> to vector<1x32xf32>
    %625 = vector.extract_strided_slice %520 {offsets = [3, 0], sizes = [1, 32], strides = [1, 1]} : vector<18x32xf32> to vector<1x32xf32>
    %626 = vector.extract_strided_slice %620 {offsets = [2, 0], sizes = [1, 32], strides = [1, 1]} : vector<8x64xf32> to vector<1x32xf32>
    %627 = vector.extract_strided_slice %520 {offsets = [4, 0], sizes = [1, 32], strides = [1, 1]} : vector<18x32xf32> to vector<1x32xf32>
    %628 = vector.extract_strided_slice %620 {offsets = [3, 0], sizes = [1, 32], strides = [1, 1]} : vector<8x64xf32> to vector<1x32xf32>
    %629 = vector.extract_strided_slice %520 {offsets = [5, 0], sizes = [1, 32], strides = [1, 1]} : vector<18x32xf32> to vector<1x32xf32>
    %630 = vector.extract_strided_slice %620 {offsets = [4, 0], sizes = [1, 32], strides = [1, 1]} : vector<8x64xf32> to vector<1x32xf32>
    %631 = vector.extract_strided_slice %520 {offsets = [6, 0], sizes = [1, 32], strides = [1, 1]} : vector<18x32xf32> to vector<1x32xf32>
    %632 = vector.extract_strided_slice %620 {offsets = [5, 0], sizes = [1, 32], strides = [1, 1]} : vector<8x64xf32> to vector<1x32xf32>
    %633 = vector.extract_strided_slice %520 {offsets = [7, 0], sizes = [1, 32], strides = [1, 1]} : vector<18x32xf32> to vector<1x32xf32>
    %634 = vector.extract_strided_slice %620 {offsets = [6, 0], sizes = [1, 32], strides = [1, 1]} : vector<8x64xf32> to vector<1x32xf32>
    %635 = vector.extract_strided_slice %520 {offsets = [8, 0], sizes = [1, 32], strides = [1, 1]} : vector<18x32xf32> to vector<1x32xf32>
    %636 = vector.extract_strided_slice %620 {offsets = [7, 0], sizes = [1, 32], strides = [1, 1]} : vector<8x64xf32> to vector<1x32xf32>
    %637 = vector.extract_strided_slice %520 {offsets = [10, 0], sizes = [1, 32], strides = [1, 1]} : vector<18x32xf32> to vector<1x32xf32>
    %638 = vector.extract_strided_slice %620 {offsets = [0, 32], sizes = [1, 32], strides = [1, 1]} : vector<8x64xf32> to vector<1x32xf32>
    %639 = vector.extract_strided_slice %520 {offsets = [11, 0], sizes = [1, 32], strides = [1, 1]} : vector<18x32xf32> to vector<1x32xf32>
    %640 = vector.extract_strided_slice %620 {offsets = [1, 32], sizes = [1, 32], strides = [1, 1]} : vector<8x64xf32> to vector<1x32xf32>
    %641 = vector.extract_strided_slice %520 {offsets = [12, 0], sizes = [1, 32], strides = [1, 1]} : vector<18x32xf32> to vector<1x32xf32>
    %642 = vector.extract_strided_slice %620 {offsets = [2, 32], sizes = [1, 32], strides = [1, 1]} : vector<8x64xf32> to vector<1x32xf32>
    %643 = vector.extract_strided_slice %520 {offsets = [13, 0], sizes = [1, 32], strides = [1, 1]} : vector<18x32xf32> to vector<1x32xf32>
    %644 = vector.extract_strided_slice %620 {offsets = [3, 32], sizes = [1, 32], strides = [1, 1]} : vector<8x64xf32> to vector<1x32xf32>
    %645 = vector.extract_strided_slice %520 {offsets = [14, 0], sizes = [1, 32], strides = [1, 1]} : vector<18x32xf32> to vector<1x32xf32>
    %646 = vector.extract_strided_slice %620 {offsets = [4, 32], sizes = [1, 32], strides = [1, 1]} : vector<8x64xf32> to vector<1x32xf32>
    %647 = vector.extract_strided_slice %520 {offsets = [15, 0], sizes = [1, 32], strides = [1, 1]} : vector<18x32xf32> to vector<1x32xf32>
    %648 = vector.extract_strided_slice %620 {offsets = [5, 32], sizes = [1, 32], strides = [1, 1]} : vector<8x64xf32> to vector<1x32xf32>
    %649 = vector.extract_strided_slice %520 {offsets = [16, 0], sizes = [1, 32], strides = [1, 1]} : vector<18x32xf32> to vector<1x32xf32>
    %650 = vector.extract_strided_slice %620 {offsets = [6, 32], sizes = [1, 32], strides = [1, 1]} : vector<8x64xf32> to vector<1x32xf32>
    %651 = vector.extract_strided_slice %520 {offsets = [17, 0], sizes = [1, 32], strides = [1, 1]} : vector<18x32xf32> to vector<1x32xf32>
    %652 = vector.extract_strided_slice %620 {offsets = [7, 32], sizes = [1, 32], strides = [1, 1]} : vector<8x64xf32> to vector<1x32xf32>
    %653 = tpu.concatenate %621, %623, %625, %627, %629, %631, %633, %635, %637, %639, %641, %643, %645, %647, %649, %651 in 1 : vector<1x32xf32>, vector<1x32xf32>, vector<1x32xf32>, vector<1x32xf32>, vector<1x32xf32>, vector<1x32xf32>, vector<1x32xf32>, vector<1x32xf32>, vector<1x32xf32>, vector<1x32xf32>, vector<1x32xf32>, vector<1x32xf32>, vector<1x32xf32>, vector<1x32xf32>, vector<1x32xf32>, vector<1x32xf32> -> vector<1x512xf32>
    %654 = tpu.concatenate %622, %624, %626, %628, %630, %632, %634, %636, %638, %640, %642, %644, %646, %648, %650, %652 in 1 : vector<1x32xf32>, vector<1x32xf32>, vector<1x32xf32>, vector<1x32xf32>, vector<1x32xf32>, vector<1x32xf32>, vector<1x32xf32>, vector<1x32xf32>, vector<1x32xf32>, vector<1x32xf32>, vector<1x32xf32>, vector<1x32xf32>, vector<1x32xf32>, vector<1x32xf32>, vector<1x32xf32>, vector<1x32xf32> -> vector<1x512xf32>
    %655 = tpu.concatenate %653, %654 in 0 : vector<1x512xf32>, vector<1x512xf32> -> vector<2x512xf32>
    %c0_227 = arith.constant 0 : index
    %c0_228 = arith.constant 0 : index
    %656 = vector.load %arg17[%c0_227, %c0_228] : memref<2x512xf32, #tpu.memory_space<vmem>>, vector<2x512xf32>
    tpu.vector_store %arg17[%c0_227, %c0_228], %655 {strides = array<i32>} : memref<2x512xf32, #tpu.memory_space<vmem>>, vector<2x512xf32>,
    return
  }
  func.func @transform_0(%arg0: i32) -> (i32, i32) {
    %c0_i32 = arith.constant 0 : i32
    %c0_i32_0 = arith.constant 0 : i32
    %c0_i32_1 = arith.constant 0 : i32
    return %c0_i32, %c0_i32_0 : i32, i32
  }
  func.func @transform_1(%arg0: i32) -> (i32, i32) {
    %c0_i32 = arith.constant 0 : i32
    %c0_i32_0 = arith.constant 0 : i32
    %c0_i32_1 = arith.constant 0 : i32
    return %c0_i32, %c0_i32_0 : i32, i32
  }
  func.func @transform_2(%arg0: i32) -> (i32, i32) {
    %c0_i32 = arith.constant 0 : i32
    %c0_i32_0 = arith.constant 0 : i32
    %c0_i32_1 = arith.constant 0 : i32
    return %c0_i32, %c0_i32_0 : i32, i32
  }
  func.func @transform_3(%arg0: i32) -> (i32, i32) {
    %c0_i32 = arith.constant 0 : i32
    %c0_i32_0 = arith.constant 0 : i32
    %c0_i32_1 = arith.constant 0 : i32
    return %c0_i32, %c0_i32_0 : i32, i32
  }
  func.func @transform_4(%arg0: i32) -> (i32, i32) {
    %c0_i32 = arith.constant 0 : i32
    %c0_i32_0 = arith.constant 0 : i32
    %c0_i32_1 = arith.constant 0 : i32
    return %c0_i32, %c0_i32_0 : i32, i32
  }
  func.func @transform_5(%arg0: i32) -> (i32, i32) {
    %c0_i32 = arith.constant 0 : i32
    %c0_i32_0 = arith.constant 0 : i32
    %c0_i32_1 = arith.constant 0 : i32
    return %c0_i32, %c0_i32_0 : i32, i32
  }
  func.func @transform_6(%arg0: i32) -> (i32, i32) {
    %c0_i32 = arith.constant 0 : i32
    %c0_i32_0 = arith.constant 0 : i32
    %c0_i32_1 = arith.constant 0 : i32
    return %c0_i32, %c0_i32_0 : i32, i32
  }
  func.func @transform_7(%arg0: i32) -> (i32, i32, i32) {
    %c0_i32 = arith.constant 0 : i32
    %c0_i32_0 = arith.constant 0 : i32
    %c0_i32_1 = arith.constant 0 : i32
    %c0_i32_2 = arith.constant 0 : i32
    return %c0_i32, %c0_i32_0, %c0_i32_1 : i32, i32, i32
  }
  func.func @transform_8(%arg0: i32) -> (i32, i32, i32) {
    %c0_i32 = arith.constant 0 : i32
    %c0_i32_0 = arith.constant 0 : i32
    %c0_i32_1 = arith.constant 0 : i32
    %c0_i32_2 = arith.constant 0 : i32
    return %c0_i32, %c0_i32_0, %c0_i32_1 : i32, i32, i32
  }
  func.func @transform_9(%arg0: i32) -> (i32, i32, i32) {
    %c0_i32 = arith.constant 0 : i32
    %c0_i32_0 = arith.constant 0 : i32
    %c0_i32_1 = arith.constant 0 : i32
    %c0_i32_2 = arith.constant 0 : i32
    return %c0_i32, %c0_i32_0, %c0_i32_1 : i32, i32, i32
  }
  func.func @transform_10(%arg0: i32) -> (i32, i32, i32) {
    %c0_i32 = arith.constant 0 : i32
    %c0_i32_0 = arith.constant 0 : i32
    %c0_i32_1 = arith.constant 0 : i32
    %c0_i32_2 = arith.constant 0 : i32
    return %c0_i32, %c0_i32_0, %c0_i32_1 : i32, i32, i32
  }
  func.func @transform_11(%arg0: i32) -> (i32, i32, i32) {
    %c0_i32 = arith.constant 0 : i32
    %c0_i32_0 = arith.constant 0 : i32
    %c0_i32_1 = arith.constant 0 : i32
    %c0_i32_2 = arith.constant 0 : i32
    return %c0_i32, %c0_i32_0, %c0_i32_1 : i32, i32, i32
  }
  func.func @transform_12(%arg0: i32) -> (i32, i32, i32) {
    %c0_i32 = arith.constant 0 : i32
    %c0_i32_0 = arith.constant 0 : i32
    %c0_i32_1 = arith.constant 0 : i32
    %c0_i32_2 = arith.constant 0 : i32
    return %c0_i32, %c0_i32_0, %c0_i32_1 : i32, i32, i32
  }
  func.func @transform_13(%arg0: i32) -> (i32, i32, i32) {
    %c0_i32 = arith.constant 0 : i32
    %c0_i32_0 = arith.constant 0 : i32
    %c0_i32_1 = arith.constant 0 : i32
    %c0_i32_2 = arith.constant 0 : i32
    return %c0_i32, %c0_i32_0, %c0_i32_1 : i32, i32, i32
  }
  func.func @transform_14(%arg0: i32) -> (i32, i32, i32) {
    %c0_i32 = arith.constant 0 : i32
    %c0_i32_0 = arith.constant 0 : i32
    %c0_i32_1 = arith.constant 0 : i32
    %c0_i32_2 = arith.constant 0 : i32
    return %c0_i32, %c0_i32_0, %c0_i32_1 : i32, i32, i32
  }
  func.func @transform_15(%arg0: i32) -> (i32, i32) {
    %c0_i32 = arith.constant 0 : i32
    %c0_i32_0 = arith.constant 0 : i32
    %c0_i32_1 = arith.constant 0 : i32
    return %c0_i32, %c0_i32_0 : i32, i32
  }
  func.func @transform_16(%arg0: i32) -> (i32, i32) {
    %c0_i32 = arith.constant 0 : i32
    %c0_i32_0 = arith.constant 0 : i32
    %c0_i32_1 = arith.constant 0 : i32
    return %c0_i32, %c0_i32_0 : i32, i32
  }
}

</mosaic_0001>

<llo_original>
// kernel: squeeze.2
$region0: #{squeeze.2}
  %s0 = inlined_call_operand.vmem [shape: f32[512], index: 0, kind: input, shape index: {}]
  %s1 = inlined_call_operand.hbm [shape: f32[2,8,32], index: 1, kind: output, shape index: {}]
  $region1: #{squeeze.2} parent=0
    #allocation0 [shape = 'u8[8192]{0}', space=vmem, size = 0x2000, scoped, tag = 'operand span for operand 1']
    #allocation1 [shape = 's32[1]{0}', space=sflag, size = 0x4, scoped, tag = 'scoped memory for squeeze.2']
    #allocation2 [shape = 'u8[4096]{0}', space=vmem, size = 0x1000, scoped, tag = 'scoped mem for input reshape']
    %2 = vsyncpa [#allocation1], 0
    %s4 = sshllo.u32 0, 4
    %v5 = vld [vmem:[%s0] sm:%s4]
    %6 = vst [vmem:[#allocation2] sm:%s4] %v5
    %v7 = vld [vmem:[#allocation2] sm:$0xf]
    %vm8 = vcmask 261120
    %9 = vst.msk [vmem:[#allocation0] ss:$4 sm:$0xf] %vm8, %v7
    %v10 = vld [vmem:[#allocation2] sm:$0xf]
    %11 = vrot.lane.b32.xlu0 %v10, 96
    %v12 = vpop.permute.xlu0 %11
    %vm13 = vcmask 261120
    %s14 = scalar_lea.vmem [#allocation0], 1
    %15 = vst.msk [vmem:[%s14] ss:$4 sm:$0xf] %vm13, %v12
    %v16 = vld [vmem:[#allocation2] sm:$0xf]
    %17 = vrot.lane.b32.xlu0 %v16, 64
    %v18 = vpop.permute.xlu0 %17
    %vm19 = vcmask 261120
    %s20 = scalar_lea.vmem [#allocation0], 2
    %21 = vst.msk [vmem:[%s20] ss:$4 sm:$0xf] %vm19, %v18
    %v22 = vld [vmem:[#allocation2] sm:$0xf]
    %23 = vrot.lane.b32.xlu0 %v22, 32
    %v24 = vpop.permute.xlu0 %23
    %vm25 = vcmask 261120
    %s26 = scalar_lea.vmem [#allocation0], 3
    %27 = vst.msk [vmem:[%s26] ss:$4 sm:$0xf] %vm25, %v24
    %s29 = ssub.s32 256, 256
    %30 = vsyncadd [#allocation1], %s29
    %s32 = sshll.u32 [#allocation0], 4
    %s33 = int_to_ptr.vmem [resolvable:$true] %s32
    %35 = dma.vmem_to_hbm [thread:$0]  %s33, 256, %s1, [#allocation1]
    %36 = dma.done [#allocation1], 256
    %37 = vsyncpa [#allocation1], 1

// kernel: forward.1
$region0: #{forward.1}
  #allocation0 [shape = 'u32[]', space=smem, size = 0x4, offset = 0x4, fixed_abs, tag = 'smem constant byte address 0x4 - core index']
  #allocation1 [shape = 'u32[144,128]{1,0:T(1,128)}', space=vmem, size = 0x12000, scoped, tag = 'internal scratch']
  %s0 = inlined_call_operand.vmem [shape: f32[8,256], index: 0, kind: input, shape index: {}]
  %s1 = inlined_call_operand.vmem [shape: f32[2,32], index: 1, kind: input, shape index: {}]
  %s2 = inlined_call_operand.vmem [shape: f32[2,32], index: 2, kind: input, shape index: {}]
  %s3 = inlined_call_operand.vmem [shape: f32[8,24], index: 3, kind: input, shape index: {}]
  %s4 = inlined_call_operand.vmem [shape: f32[8,1], index: 4, kind: input, shape index: {}]
  %s5 = inlined_call_operand.vmem [shape: f32[8,40], index: 5, kind: input, shape index: {}]
  %s6 = inlined_call_operand.vmem [shape: f32[8,1], index: 6, kind: input, shape index: {}]
  %s7 = inlined_call_operand.vmem [shape: f32[2,32,96], index: 7, kind: input, shape index: {}]
  %s8 = inlined_call_operand.vmem [shape: f32[2,32,32], index: 8, kind: input, shape index: {}]
  %s9 = inlined_call_operand.vmem [shape: f32[2,5,32], index: 9, kind: input, shape index: {}]
  %s10 = inlined_call_operand.vmem [shape: f32[2,32,64], index: 10, kind: input, shape index: {}]
  %s11 = inlined_call_operand.vmem [shape: f32[2,1,64], index: 11, kind: input, shape index: {}]
  %s12 = inlined_call_operand.vmem [shape: f32[2,64,32], index: 12, kind: input, shape index: {}]
  %s13 = inlined_call_operand.vmem [shape: f32[2,8,8], index: 13, kind: input, shape index: {}]
  %s14 = inlined_call_operand.vmem [shape: f32[2,8,1], index: 14, kind: input, shape index: {}]
  %s15 = inlined_call_operand.vmem [shape: f32[2,14], index: 15, kind: input, shape index: {}]
  %s16 = inlined_call_operand.vmem [shape: f32[2,512], index: 16, kind: output, shape index: {}]
  %s17 = sld [smem:[#allocation0]]
  $region78: #{forward.1} parent=0
    _
  %s19 = ssub.s32 1, %s17
  %s20 = scalar_select 0, %s19, %s17
  $region1: #{forward.1} parent=0
    #allocation2 [shape = 'u8[1024]{0}', space=smem, size = 0x400, scoped, tag = 'input window, operand 15, single buffered']
    #allocation3 [shape = 's32[1]{0}', space=sflag, size = 0x4, scoped, tag = 'scoped memory for forward.1']
    %21 = vsyncpa [#allocation3], 0
    // Predicated region
    $region2: #{forward.1} parent=1 // pred_check
      _
    $region3: #{forward.1} parent=1 // pred_check_branch
      %23 = sbr.rel (0) target = $region5
    $region4: #{forward.1} parent=1 // pred_region
      _
    $region5: #{forward.1} parent=1 // pred_fallthru
      _
    // Predicated region
    $region6: #{forward.1} parent=1 // pred_check
      _
    $region7: #{forward.1} parent=1 // pred_check_branch
      %25 = sbr.rel (0) target = $region9
    $region8: #{forward.1} parent=1 // pred_region
      _
    $region9: #{forward.1} parent=1 // pred_fallthru
      _
    // Predicated region
    $region10: #{forward.1} parent=1 // pred_check
      _
    $region11: #{forward.1} parent=1 // pred_check_branch
      %27 = sbr.rel (0) target = $region13
    $region12: #{forward.1} parent=1 // pred_region
      _
    $region13: #{forward.1} parent=1 // pred_fallthru
      _
    // Predicated region
    $region14: #{forward.1} parent=1 // pred_check
      _
    $region15: #{forward.1} parent=1 // pred_check_branch
      %29 = sbr.rel (0) target = $region17
    $region16: #{forward.1} parent=1 // pred_region
      _
    $region17: #{forward.1} parent=1 // pred_fallthru
      _
    // Predicated region
    $region18: #{forward.1} parent=1 // pred_check
      _
    $region19: #{forward.1} parent=1 // pred_check_branch
      %31 = sbr.rel (0) target = $region21
    $region20: #{forward.1} parent=1 // pred_region
      _
    $region21: #{forward.1} parent=1 // pred_fallthru
      _
    // Predicated region
    $region22: #{forward.1} parent=1 // pred_check
      _
    $region23: #{forward.1} parent=1 // pred_check_branch
      %33 = sbr.rel (0) target = $region25
    $region24: #{forward.1} parent=1 // pred_region
      _
    $region25: #{forward.1} parent=1 // pred_fallthru
      _
    // Predicated region
    $region26: #{forward.1} parent=1 // pred_check
      _
    $region27: #{forward.1} parent=1 // pred_check_branch
      %35 = sbr.rel (0) target = $region29
    $region28: #{forward.1} parent=1 // pred_region
      _
    $region29: #{forward.1} parent=1 // pred_fallthru
      _
    // Predicated region
    $region30: #{forward.1} parent=1 // pred_check
      _
    $region31: #{forward.1} parent=1 // pred_check_branch
      %37 = sbr.rel (0) target = $region33
    $region32: #{forward.1} parent=1 // pred_region
      _
    $region33: #{forward.1} parent=1 // pred_fallthru
      _
    // Predicated region
    $region34: #{forward.1} parent=1 // pred_check
      _
    $region35: #{forward.1} parent=1 // pred_check_branch
      %39 = sbr.rel (0) target = $region37
    $region36: #{forward.1} parent=1 // pred_region
      _
    $region37: #{forward.1} parent=1 // pred_fallthru
      _
    // Predicated region
    $region38: #{forward.1} parent=1 // pred_check
      _
    $region39: #{forward.1} parent=1 // pred_check_branch
      %41 = sbr.rel (0) target = $region41
    $region40: #{forward.1} parent=1 // pred_region
      _
    $region41: #{forward.1} parent=1 // pred_fallthru
      _
    // Predicated region
    $region42: #{forward.1} parent=1 // pred_check
      _
    $region43: #{forward.1} parent=1 // pred_check_branch
      %43 = sbr.rel (0) target = $region45
    $region44: #{forward.1} parent=1 // pred_region
      _
    $region45: #{forward.1} parent=1 // pred_fallthru
      _
    // Predicated region
    $region46: #{forward.1} parent=1 // pred_check
      _
    $region47: #{forward.1} parent=1 // pred_check_branch
      %45 = sbr.rel (0) target = $region49
    $region48: #{forward.1} parent=1 // pred_region
      _
    $region49: #{forward.1} parent=1 // pred_fallthru
      _
    // Predicated region
    $region50: #{forward.1} parent=1 // pred_check
      _
    $region51: #{forward.1} parent=1 // pred_check_branch
      %47 = sbr.rel (0) target = $region53
    $region52: #{forward.1} parent=1 // pred_region
      _
    $region53: #{forward.1} parent=1 // pred_fallthru
      _
    // Predicated region
    $region54: #{forward.1} parent=1 // pred_check
      _
    $region55: #{forward.1} parent=1 // pred_check_branch
      %49 = sbr.rel (0) target = $region57
    $region56: #{forward.1} parent=1 // pred_region
      _
    $region57: #{forward.1} parent=1 // pred_fallthru
      _
    // Predicated region
    $region58: #{forward.1} parent=1 // pred_check
      _
    $region59: #{forward.1} parent=1 // pred_check_branch
      %51 = sbr.rel (0) target = $region61
    $region60: #{forward.1} parent=1 // pred_region
      _
    $region61: #{forward.1} parent=1 // pred_fallthru
      _
    // Predicated region
    $region62: #{forward.1} parent=1 // pred_check
      _
    $region63: #{forward.1} parent=1 // pred_check_branch
      %53 = sbr.rel (0) target = $region65
    $region64: #{forward.1} parent=1 // pred_region
      %s55 = ssub.s32 32, 32
      %56 = vsyncadd [#allocation3], %s55
      %s58 = sshll.u32 %s15, 4
      %s59 = int_to_ptr.vmem [resolvable:$true] %s58
      %61 = dma.vmem_to_smem %s59, 32, [#allocation2], [#allocation3]
    $region65: #{forward.1} parent=1 // pred_fallthru
      _
    // Predicated region
    $region66: #{forward.1} parent=1 // pred_check
      _
    $region67: #{forward.1} parent=1 // pred_check_branch
      %63 = sbr.rel (0) target = $region69
    $region68: #{forward.1} parent=1 // pred_region
      %64 = dma.done [#allocation3], 32
    $region69: #{forward.1} parent=1 // pred_fallthru
      _
    %65 = sfence
    %v66 = vld [vmem:[%s0] sm:$0xff]
    %v67 = vld [vmem:[%s0 + $0x8] sm:$0xff]
    %69 = vrot.lane.b32.xlu0 %v66, 1
    %v70 = vpop.permute.xlu0 %69
    %vm72 = vcmask 7168
    %v73 = vsel %vm72, 0.0, %v70
    %75 = vrot.lane.b32.xlu0 %v67, 1
    %v76 = vpop.permute.xlu0 %75
    %v78 = vsel %vm72, 0.0, %v76
    %79 = vrot.lane.b32.xlu0 %v66, 127
    %v80 = vpop.permute.xlu0 %79
    %vm82 = vcmask 1039360
    %v83 = vsel %vm82, %v80, 0.0
    %84 = vrot.lane.b32.xlu0 %v67, 127
    %v85 = vpop.permute.xlu0 %84
    %v87 = vsel %vm82, %v85, 0.0
    %v88 = vld [vmem:[%s3] sm:$0xff]
    %v89 = vld [vmem:[%s4] sm:$0xff]
    %91 = vset.pattern.permute.xlu0 0
    %92 = vperm.xlu0 %91, %v89
    %v93 = vpop.permute.xlu0 %92
    %vm95 = vcmask 195584
    %v97 = vsel %vm95, %v88, 0
    %99 = vmatprep.subr.mxu0 %v78
    %100 = vmatpush1.msra.mxu0 %v73
    %101 = vmatprep.subr.mxu0 %v67
    %102 = vmatpush1.msra.mxu0 %v66
    %103 = vmatprep.subr.mxu0 %v87
    %104 = vmatpush1.msra.mxu0 %v83
    %105 = vmatprep.subr.mxu0 0.0
    %106 = vmatpush1.msra.mxu0 0.0
    %107 = vmatprep.subr.mxu0 0.0
    %108 = vmatpush1.msra.mxu0 0.0
    %109 = vmatprep.subr.mxu0 0.0
    %110 = vmatpush1.msra.mxu0 0.0
    %111 = vmatprep.subr.mxu0 0.0
    %112 = vmatpush1.msra.mxu0 0.0
    %113 = vmatprep.subr.mxu0 0.0
    %114 = vmatpush1.msra.mxu0 0.0
    %115 = vmatprep.subr.mxu0 0.0
    %116 = vmatpush1.msra.mxu0 0.0
    %117 = vmatprep.subr.mxu0 0.0
    %118 = vmatpush1.msra.mxu0 0.0
    %119 = vmatprep.subr.mxu0 0.0
    %120 = vmatpush1.msra.mxu0 0.0
    %121 = vmatprep.subr.mxu0 0.0
    %122 = vmatpush1.msra.mxu0 0.0
    %123 = vmatprep.subr.mxu0 0.0
    %124 = vmatpush1.msra.mxu0 0.0
    %125 = vmatprep.subr.mxu0 0.0
    %126 = vmatpush1.msra.mxu0 0.0
    %127 = vmatprep.subr.mxu0 0.0
    %128 = vmatpush1.msra.mxu0 0.0
    %129 = vmatprep.subr.mxu0 0.0
    %130 = vmatpush1.msra.mxu0 0.0
    %131 = vmatprep.subr.mxu0 0.0
    %132 = vmatpush1.msra.mxu0 0.0
    %133 = vmatprep.subr.mxu0 0.0
    %134 = vmatpush1.msra.mxu0 0.0
    %135 = vmatprep.subr.mxu0 0.0
    %136 = vmatpush1.msra.mxu0 0.0
    %137 = vmatprep.subr.mxu0 0.0
    %138 = vmatpush1.msra.mxu0 0.0
    %139 = vmatprep.subr.mxu0 0.0
    %140 = vmatpush1.msra.mxu0 0.0
    %141 = vmatprep.subr.mxu0 0.0
    %142 = vmatpush1.msra.mxu0 0.0
    %143 = vmatprep.subr.mxu0 0.0
    %144 = vmatpush1.msra.mxu0 0.0
    %145 = vmatprep.subr.mxu0 0.0
    %146 = vmatpush1.msra.mxu0 0.0
    %147 = vmatprep.subr.mxu0 0.0
    %148 = vmatpush1.msra.mxu0 0.0
    %149 = vmatprep.subr.mxu0 0.0
    %150 = vmatpush1.msra.mxu0 0.0
    %151 = vmatprep.subr.mxu0 0.0
    %152 = vmatpush1.msra.mxu0 0.0
    %153 = vmatprep.subr.mxu0 0.0
    %154 = vmatpush1.msra.mxu0 0.0
    %155 = vmatprep.subr.mxu0 0.0
    %156 = vmatpush1.msra.mxu0 0.0
    %157 = vmatprep.subr.mxu0 0.0
    %158 = vmatpush1.msra.mxu0 0.0
    %159 = vmatprep.subr.mxu0 0.0
    %160 = vmatpush1.msra.mxu0 0.0
    %161 = vmatprep.subr.mxu0 0.0
    %162 = vmatpush1.msra.mxu0 0.0
    %163 = vmatprep.mubr.f32.mxu0 0.0
    %164 = vmatmul.mubr.f32.gmra.mrb[0].mxu0 %v97
    %v165 = vpop.f32.mrb[0].mxu0
    %v166 = vadd.f32 %v93, %v165
    %v167 = vpop.f32.mrb[0].mxu0
    %v168 = vadd.f32 %v93, %v167
    %169 = vdwg.mxu0
    %v170 = vmax.f32 %v166, 0.0
    %v171 = vmax.f32 %v168, 0.0
    %173 = vrot.lane.b32.xlu0 %v170, 127
    %v174 = vpop.permute.xlu0 %173
    %v176 = vsel %vm82, %v174, 0.0
    %178 = vrot.lane.b32.xlu0 %v171, 127
    %v179 = vpop.permute.xlu0 %178
    %v181 = vsel %vm82, %v179, 0.0
    %v182 = vmax.f32 %v170, %v176
    %v183 = vmax.f32 %v171, %v181
    %v184 = vlaneseq
    %v185 = vshrl.u32 %v184, 7
    %v186 = vadd.s32 %v185, 8
    %v187 = vadd.s32 %v185, 16
    %v188 = vadd.s32 %v185, 24
    %v189 = vadd.s32 %v185, 32
    %v190 = vadd.s32 %v185, 40
    %v191 = vadd.s32 %v185, 48
    %v192 = vadd.s32 %v185, 56
    %v193 = vadd.s32 %v185, 64
    %v194 = vadd.s32 %v185, 72
    %v195 = vadd.s32 %v185, 80
    %v196 = vadd.s32 %v185, 88
    %v197 = vadd.s32 %v185, 96
    %v198 = vadd.s32 %v185, 104
    %v199 = vadd.s32 %v185, 112
    %v200 = vadd.s32 %v185, 120
    %v201 = vadd.s32 %v185, 128
    %v202 = vadd.s32 %v185, 136
    %v203 = vadd.s32 %v185, 144
    %v204 = vadd.s32 %v185, 152
    %v205 = vadd.s32 %v185, 160
    %v206 = vadd.s32 %v185, 168
    %v207 = vadd.s32 %v185, 176
    %v208 = vadd.s32 %v185, 184
    %v209 = vadd.s32 %v185, 192
    %v210 = vadd.s32 %v185, 200
    %v211 = vadd.s32 %v185, 208
    %v212 = vadd.s32 %v185, 216
    %v213 = vadd.s32 %v185, 224
    %v214 = vadd.s32 %v185, 232
    %v215 = vadd.s32 %v185, 240
    %v216 = vadd.s32 %v185, 248
    %v217 = vlaneseq
    %v218 = vand.u32 %v217, 127
    %v219 = vmul.u32 %v218, 2
    %vm220 = vcmp.eq.s32.totalorder %v185, %v219
    %vm221 = vcmp.eq.s32.totalorder %v186, %v219
    %vm222 = vcmp.eq.s32.totalorder %v187, %v219
    %vm223 = vcmp.eq.s32.totalorder %v188, %v219
    %vm224 = vcmp.eq.s32.totalorder %v189, %v219
    %vm225 = vcmp.eq.s32.totalorder %v190, %v219
    %vm226 = vcmp.eq.s32.totalorder %v191, %v219
    %vm227 = vcmp.eq.s32.totalorder %v192, %v219
    %vm228 = vcmp.eq.s32.totalorder %v193, %v219
    %vm229 = vcmp.eq.s32.totalorder %v194, %v219
    %vm230 = vcmp.eq.s32.totalorder %v195, %v219
    %vm231 = vcmp.eq.s32.totalorder %v196, %v219
    %vm232 = vcmp.eq.s32.totalorder %v197, %v219
    %vm233 = vcmp.eq.s32.totalorder %v198, %v219
    %vm234 = vcmp.eq.s32.totalorder %v199, %v219
    %vm235 = vcmp.eq.s32.totalorder %v200, %v219
    %vm236 = vcmp.eq.s32.totalorder %v201, %v219
    %vm237 = vcmp.eq.s32.totalorder %v202, %v219
    %vm238 = vcmp.eq.s32.totalorder %v203, %v219
    %vm239 = vcmp.eq.s32.totalorder %v204, %v219
    %vm240 = vcmp.eq.s32.totalorder %v205, %v219
    %vm241 = vcmp.eq.s32.totalorder %v206, %v219
    %vm242 = vcmp.eq.s32.totalorder %v207, %v219
    %vm243 = vcmp.eq.s32.totalorder %v208, %v219
    %vm244 = vcmp.eq.s32.totalorder %v209, %v219
    %vm245 = vcmp.eq.s32.totalorder %v210, %v219
    %vm246 = vcmp.eq.s32.totalorder %v211, %v219
    %vm247 = vcmp.eq.s32.totalorder %v212, %v219
    %vm248 = vcmp.eq.s32.totalorder %v213, %v219
    %vm249 = vcmp.eq.s32.totalorder %v214, %v219
    %vm250 = vcmp.eq.s32.totalorder %v215, %v219
    %vm251 = vcmp.eq.s32.totalorder %v216, %v219
    %v252 = vsel %vm220, 1, 0
    %v253 = vsel %vm221, 1, 0
    %v254 = vsel %vm222, 1, 0
    %v255 = vsel %vm223, 1, 0
    %v256 = vsel %vm224, 1, 0
    %v257 = vsel %vm225, 1, 0
    %v258 = vsel %vm226, 1, 0
    %v259 = vsel %vm227, 1, 0
    %v260 = vsel %vm228, 1, 0
    %v261 = vsel %vm229, 1, 0
    %v262 = vsel %vm230, 1, 0
    %v263 = vsel %vm231, 1, 0
    %v264 = vsel %vm232, 1, 0
    %v265 = vsel %vm233, 1, 0
    %v266 = vsel %vm234, 1, 0
    %v267 = vsel %vm235, 1, 0
    %v268 = vsel %vm236, 1, 0
    %v269 = vsel %vm237, 1, 0
    %v270 = vsel %vm238, 1, 0
    %v271 = vsel %vm239, 1, 0
    %v272 = vsel %vm240, 1, 0
    %v273 = vsel %vm241, 1, 0
    %v274 = vsel %vm242, 1, 0
    %v275 = vsel %vm243, 1, 0
    %v276 = vsel %vm244, 1, 0
    %v277 = vsel %vm245, 1, 0
    %v278 = vsel %vm246, 1, 0
    %v279 = vsel %vm247, 1, 0
    %v280 = vsel %vm248, 1, 0
    %v281 = vsel %vm249, 1, 0
    %v282 = vsel %vm250, 1, 0
    %v283 = vsel %vm251, 1, 0
    %v284 = vcvt.s32.f32 %v252
    %v285 = vcvt.s32.f32 %v253
    %v286 = vcvt.s32.f32 %v254
    %v287 = vcvt.s32.f32 %v255
    %v288 = vcvt.s32.f32 %v256
    %v289 = vcvt.s32.f32 %v257
    %v290 = vcvt.s32.f32 %v258
    %v291 = vcvt.s32.f32 %v259
    %v292 = vcvt.s32.f32 %v260
    %v293 = vcvt.s32.f32 %v261
    %v294 = vcvt.s32.f32 %v262
    %v295 = vcvt.s32.f32 %v263
    %v296 = vcvt.s32.f32 %v264
    %v297 = vcvt.s32.f32 %v265
    %v298 = vcvt.s32.f32 %v266
    %v299 = vcvt.s32.f32 %v267
    %v300 = vcvt.s32.f32 %v268
    %v301 = vcvt.s32.f32 %v269
    %v302 = vcvt.s32.f32 %v270
    %v303 = vcvt.s32.f32 %v271
    %v304 = vcvt.s32.f32 %v272
    %v305 = vcvt.s32.f32 %v273
    %v306 = vcvt.s32.f32 %v274
    %v307 = vcvt.s32.f32 %v275
    %v308 = vcvt.s32.f32 %v276
    %v309 = vcvt.s32.f32 %v277
    %v310 = vcvt.s32.f32 %v278
    %v311 = vcvt.s32.f32 %v279
    %v312 = vcvt.s32.f32 %v280
    %v313 = vcvt.s32.f32 %v281
    %v314 = vcvt.s32.f32 %v282
    %v315 = vcvt.s32.f32 %v283
    %316 = vmatprep.subr.mxu0 0.0
    %317 = vmatpush1.msra.mxu0 %v284
    %318 = vmatprep.subr.mxu0 0.0
    %319 = vmatpush1.msra.mxu0 %v285
    %320 = vmatprep.subr.mxu0 0.0
    %321 = vmatpush1.msra.mxu0 %v286
    %322 = vmatprep.subr.mxu0 0.0
    %323 = vmatpush1.msra.mxu0 %v287
    %324 = vmatprep.subr.mxu0 0.0
    %325 = vmatpush1.msra.mxu0 %v288
    %326 = vmatprep.subr.mxu0 0.0
    %327 = vmatpush1.msra.mxu0 %v289
    %328 = vmatprep.subr.mxu0 0.0
    %329 = vmatpush1.msra.mxu0 %v290
    %330 = vmatprep.subr.mxu0 0.0
    %331 = vmatpush1.msra.mxu0 %v291
    %332 = vmatprep.subr.mxu0 0.0
    %333 = vmatpush1.msra.mxu0 %v292
    %334 = vmatprep.subr.mxu0 0.0
    %335 = vmatpush1.msra.mxu0 %v293
    %336 = vmatprep.subr.mxu0 0.0
    %337 = vmatpush1.msra.mxu0 %v294
    %338 = vmatprep.subr.mxu0 0.0
    %339 = vmatpush1.msra.mxu0 %v295
    %340 = vmatprep.subr.mxu0 0.0
    %341 = vmatpush1.msra.mxu0 %v296
    %342 = vmatprep.subr.mxu0 0.0
    %343 = vmatpush1.msra.mxu0 %v297
    %344 = vmatprep.subr.mxu0 0.0
    %345 = vmatpush1.msra.mxu0 %v298
    %346 = vmatprep.subr.mxu0 0.0
    %347 = vmatpush1.msra.mxu0 %v299
    %348 = vmatprep.subr.mxu0 0.0
    %349 = vmatpush1.msra.mxu0 %v300
    %350 = vmatprep.subr.mxu0 0.0
    %351 = vmatpush1.msra.mxu0 %v301
    %352 = vmatprep.subr.mxu0 0.0
    %353 = vmatpush1.msra.mxu0 %v302
    %354 = vmatprep.subr.mxu0 0.0
    %355 = vmatpush1.msra.mxu0 %v303
    %356 = vmatprep.subr.mxu0 0.0
    %357 = vmatpush1.msra.mxu0 %v304
    %358 = vmatprep.subr.mxu0 0.0
    %359 = vmatpush1.msra.mxu0 %v305
    %360 = vmatprep.subr.mxu0 0.0
    %361 = vmatpush1.msra.mxu0 %v306
    %362 = vmatprep.subr.mxu0 0.0
    %363 = vmatpush1.msra.mxu0 %v307
    %364 = vmatprep.subr.mxu0 0.0
    %365 = vmatpush1.msra.mxu0 %v308
    %366 = vmatprep.subr.mxu0 0.0
    %367 = vmatpush1.msra.mxu0 %v309
    %368 = vmatprep.subr.mxu0 0.0
    %369 = vmatpush1.msra.mxu0 %v310
    %370 = vmatprep.subr.mxu0 0.0
    %371 = vmatpush1.msra.mxu0 %v311
    %372 = vmatprep.subr.mxu0 0.0
    %373 = vmatpush1.msra.mxu0 %v312
    %374 = vmatprep.subr.mxu0 0.0
    %375 = vmatpush1.msra.mxu0 %v313
    %376 = vmatprep.subr.mxu0 0.0
    %377 = vmatpush1.msra.mxu0 %v314
    %378 = vmatprep.subr.mxu0 0.0
    %379 = vmatpush1.msra.mxu0 %v315
    %380 = vmatprep.mubr.f32.mxu0 %v183
    %381 = vmatmul.mubr.f32.gmra.mrb[0].mxu0 %v182
    %v382 = vpop.f32.mrb[0].mxu0
    %v383 = vadd.f32 0.0, %v382
    %v384 = vpop.f32.mrb[0].mxu0
    %385 = vdwg.mxu0
    %387 = vrot.lane.b32.xlu0 %v383, 2
    %v388 = vpop.permute.xlu0 %387
    %vm390 = vcmask 15360
    %v391 = vsel %vm390, 0.0, %v388
    %392 = vrot.lane.b32.xlu0 %v383, 66
    %v393 = vpop.permute.xlu0 %392
    %v395 = vsel %vm390, 0.0, %v393
    %397 = vrot.lane.b32.xlu0 %v395, 64
    %v398 = vpop.permute.xlu0 %397
    %vm400 = vcmask 523264
    %v401 = vsel %vm400, %v391, %v398
    %402 = vrot.lane.b32.xlu0 %v383, 1
    %v403 = vpop.permute.xlu0 %402
    %v405 = vsel %vm72, 0.0, %v403
    %406 = vrot.lane.b32.xlu0 %v383, 65
    %v407 = vpop.permute.xlu0 %406
    %v409 = vsel %vm72, 0.0, %v407
    %411 = vrot.lane.b32.xlu0 %v409, 64
    %v412 = vpop.permute.xlu0 %411
    %v414 = vsel %vm400, %v405, %v412
    %415 = vrot.lane.b32.xlu0 %v383, 127
    %v416 = vpop.permute.xlu0 %415
    %vm418 = vcmask 515072
    %v419 = vsel %vm418, %v416, 0.0
    %420 = vrot.lane.b32.xlu0 %v383, 63
    %v421 = vpop.permute.xlu0 %420
    %v423 = vsel %vm418, %v421, 0.0
    %425 = vrot.lane.b32.xlu0 %v423, 64
    %v426 = vpop.permute.xlu0 %425
    %v428 = vsel %vm400, %v419, %v426
    %429 = vrot.lane.b32.xlu0 %v383, 126
    %v430 = vpop.permute.xlu0 %429
    %vm432 = vcmask 506880
    %v433 = vsel %vm432, %v430, 0.0
    %434 = vrot.lane.b32.xlu0 %v383, 62
    %v435 = vpop.permute.xlu0 %434
    %v437 = vsel %vm432, %v435, 0.0
    %439 = vrot.lane.b32.xlu0 %v437, 64
    %v440 = vpop.permute.xlu0 %439
    %v442 = vsel %vm400, %v433, %v440
    %v443 = vld [vmem:[%s5] sm:$0xff]
    %v444 = vld [vmem:[%s6] sm:$0xff]
    %446 = vset.pattern.permute.xlu0 0
    %447 = vperm.xlu0 %446, %v444
    %v448 = vpop.permute.xlu0 %447
    %vm450 = vcmask 326656
    %v452 = vsel %vm450, %v443, 0
    %454 = vmatprep.subr.mxu0 0.0
    %455 = vmatpush1.msra.mxu0 %v401
    %456 = vmatprep.subr.mxu0 0.0
    %457 = vmatpush1.msra.mxu0 %v414
    %458 = vmatprep.subr.mxu0 0.0
    %459 = vmatpush1.msra.mxu0 %v383
    %460 = vmatprep.subr.mxu0 0.0
    %461 = vmatpush1.msra.mxu0 %v428
    %462 = vmatprep.subr.mxu0 0.0
    %463 = vmatpush1.msra.mxu0 %v442
    %464 = vmatprep.subr.mxu0 0.0
    %465 = vmatpush1.msra.mxu0 0.0
    %466 = vmatprep.subr.mxu0 0.0
    %467 = vmatpush1.msra.mxu0 0.0
    %468 = vmatprep.subr.mxu0 0.0
    %469 = vmatpush1.msra.mxu0 0.0
    %470 = vmatprep.subr.mxu0 0.0
    %471 = vmatpush1.msra.mxu0 0.0
    %472 = vmatprep.subr.mxu0 0.0
    %473 = vmatpush1.msra.mxu0 0.0
    %474 = vmatprep.subr.mxu0 0.0
    %475 = vmatpush1.msra.mxu0 0.0
    %476 = vmatprep.subr.mxu0 0.0
    %477 = vmatpush1.msra.mxu0 0.0
    %478 = vmatprep.subr.mxu0 0.0
    %479 = vmatpush1.msra.mxu0 0.0
    %480 = vmatprep.subr.mxu0 0.0
    %481 = vmatpush1.msra.mxu0 0.0
    %482 = vmatprep.subr.mxu0 0.0
    %483 = vmatpush1.msra.mxu0 0.0
    %484 = vmatprep.subr.mxu0 0.0
    %485 = vmatpush1.msra.mxu0 0.0
    %486 = vmatprep.subr.mxu0 0.0
    %487 = vmatpush1.msra.mxu0 0.0
    %488 = vmatprep.subr.mxu0 0.0
    %489 = vmatpush1.msra.mxu0 0.0
    %490 = vmatprep.subr.mxu0 0.0
    %491 = vmatpush1.msra.mxu0 0.0
    %492 = vmatprep.subr.mxu0 0.0
    %493 = vmatpush1.msra.mxu0 0.0
    %494 = vmatprep.subr.mxu0 0.0
    %495 = vmatpush1.msra.mxu0 0.0
    %496 = vmatprep.subr.mxu0 0.0
    %497 = vmatpush1.msra.mxu0 0.0
    %498 = vmatprep.subr.mxu0 0.0
    %499 = vmatpush1.msra.mxu0 0.0
    %500 = vmatprep.subr.mxu0 0.0
    %501 = vmatpush1.msra.mxu0 0.0
    %502 = vmatprep.subr.mxu0 0.0
    %503 = vmatpush1.msra.mxu0 0.0
    %504 = vmatprep.subr.mxu0 0.0
    %505 = vmatpush1.msra.mxu0 0.0
    %506 = vmatprep.subr.mxu0 0.0
    %507 = vmatpush1.msra.mxu0 0.0
    %508 = vmatprep.subr.mxu0 0.0
    %509 = vmatpush1.msra.mxu0 0.0
    %510 = vmatprep.subr.mxu0 0.0
    %511 = vmatpush1.msra.mxu0 0.0
    %512 = vmatprep.subr.mxu0 0.0
    %513 = vmatpush1.msra.mxu0 0.0
    %514 = vmatprep.subr.mxu0 0.0
    %515 = vmatpush1.msra.mxu0 0.0
    %516 = vmatprep.subr.mxu0 0.0
    %517 = vmatpush1.msra.mxu0 0.0
    %518 = vmatprep.mubr.f32.mxu0 0.0
    %519 = vmatmul.mubr.f32.gmra.mrb[0].mxu0 %v452
    %v520 = vpop.f32.mrb[0].mxu0
    %v521 = vadd.f32 %v448, %v520
    %v522 = vpop.f32.mrb[0].mxu0
    %523 = vdwg.mxu0
    %v524 = vmax.f32 %v521, 0.0
    %526 = vrot.lane.b32.xlu0 %v524, 127
    %v527 = vpop.permute.xlu0 %526
    %v529 = vsel %vm418, %v527, 0.0
    %530 = vrot.lane.b32.xlu0 %v524, 63
    %v531 = vpop.permute.xlu0 %530
    %v533 = vsel %vm418, %v531, 0.0
    %535 = vrot.lane.b32.xlu0 %v533, 64
    %v536 = vpop.permute.xlu0 %535
    %v538 = vsel %vm400, %v529, %v536
    %v539 = vmax.f32 %v524, %v538
    %540 = vmatprep.subr.mxu0 0.0
    %541 = vmatpush1.msra.mxu0 %v284
    %542 = vmatprep.subr.mxu0 0.0
    %543 = vmatpush1.msra.mxu0 %v285
    %544 = vmatprep.subr.mxu0 0.0
    %545 = vmatpush1.msra.mxu0 %v286
    %546 = vmatprep.subr.mxu0 0.0
    %547 = vmatpush1.msra.mxu0 %v287
    %548 = vmatprep.subr.mxu0 0.0
    %549 = vmatpush1.msra.mxu0 %v288
    %550 = vmatprep.subr.mxu0 0.0
    %551 = vmatpush1.msra.mxu0 %v289
    %552 = vmatprep.subr.mxu0 0.0
    %553 = vmatpush1.msra.mxu0 %v290
    %554 = vmatprep.subr.mxu0 0.0
    %555 = vmatpush1.msra.mxu0 %v291
    %556 = vmatprep.subr.mxu0 0.0
    %557 = vmatpush1.msra.mxu0 %v292
    %558 = vmatprep.subr.mxu0 0.0
    %559 = vmatpush1.msra.mxu0 %v293
    %560 = vmatprep.subr.mxu0 0.0
    %561 = vmatpush1.msra.mxu0 %v294
    %562 = vmatprep.subr.mxu0 0.0
    %563 = vmatpush1.msra.mxu0 %v295
    %564 = vmatprep.subr.mxu0 0.0
    %565 = vmatpush1.msra.mxu0 %v296
    %566 = vmatprep.subr.mxu0 0.0
    %567 = vmatpush1.msra.mxu0 %v297
    %568 = vmatprep.subr.mxu0 0.0
    %569 = vmatpush1.msra.mxu0 %v298
    %570 = vmatprep.subr.mxu0 0.0
    %571 = vmatpush1.msra.mxu0 %v299
    %572 = vmatprep.subr.mxu0 0.0
    %573 = vmatpush1.msra.mxu0 0.0
    %574 = vmatprep.subr.mxu0 0.0
    %575 = vmatpush1.msra.mxu0 0.0
    %576 = vmatprep.subr.mxu0 0.0
    %577 = vmatpush1.msra.mxu0 0.0
    %578 = vmatprep.subr.mxu0 0.0
    %579 = vmatpush1.msra.mxu0 0.0
    %580 = vmatprep.subr.mxu0 0.0
    %581 = vmatpush1.msra.mxu0 0.0
    %582 = vmatprep.subr.mxu0 0.0
    %583 = vmatpush1.msra.mxu0 0.0
    %584 = vmatprep.subr.mxu0 0.0
    %585 = vmatpush1.msra.mxu0 0.0
    %586 = vmatprep.subr.mxu0 0.0
    %587 = vmatpush1.msra.mxu0 0.0
    %588 = vmatprep.subr.mxu0 0.0
    %589 = vmatpush1.msra.mxu0 0.0
    %590 = vmatprep.subr.mxu0 0.0
    %591 = vmatpush1.msra.mxu0 0.0
    %592 = vmatprep.subr.mxu0 0.0
    %593 = vmatpush1.msra.mxu0 0.0
    %594 = vmatprep.subr.mxu0 0.0
    %595 = vmatpush1.msra.mxu0 0.0
    %596 = vmatprep.subr.mxu0 0.0
    %597 = vmatpush1.msra.mxu0 0.0
    %598 = vmatprep.subr.mxu0 0.0
    %599 = vmatpush1.msra.mxu0 0.0
    %600 = vmatprep.subr.mxu0 0.0
    %601 = vmatpush1.msra.mxu0 0.0
    %602 = vmatprep.subr.mxu0 0.0
    %603 = vmatpush1.msra.mxu0 0.0
    %604 = vmatprep.mubr.f32.mxu0 0.0
    %605 = vmatmul.mubr.f32.gmra.mrb[0].mxu0 %v539
    %v606 = vpop.f32.mrb[0].mxu0
    %v607 = vadd.f32 0.0, %v606
    %v608 = vpop.f32.mrb[0].mxu0
    %609 = vdwg.mxu0
    %v610 = vld [vmem:[%s1] sm:$0x1]
    %v612 = vrot.slane %v607, 7
    %vm614 = vcmask 1040384
    %v615 = vsel %vm614, %v610, %v612
    %v616 = vld [vmem:[%s2] sm:$0x1]
    %v617 = vlaneseq
    %v618 = vshrl.u32 %v617, 7
    %v619 = vsub.s32 0, %v618
    %v620 = vrot.slane %v616, %v619
    %v621 = vadd.f32 %v615, %v620
    %v622 = vadd.f32 %v612, %v620
    %v623 = vld [vmem:[%s1 + $0x1] sm:$0x1]
    %624 = vrot.lane.b32.xlu0 %v612, 96
    %v625 = vpop.permute.xlu0 %624
    %v627 = vsel %vm614, %v623, %v625
    %v628 = vld [vmem:[%s2 + $0x1] sm:$0x1]
    %v629 = vlaneseq
    %v630 = vshrl.u32 %v629, 7
    %v631 = vsub.s32 0, %v630
    %v632 = vrot.slane %v628, %v631
    %v633 = vadd.f32 %v627, %v632
    %v634 = vadd.f32 %v625, %v632
    %v637 = vrot.slane %v633, 7
    %v638 = vrot.slane %v634, 7
    %v639 = vsel %vm614, %v637, %v638
    %v642 = vsel %vm614, %v622, %v637
    %v643 = vld [vmem:[%s9] sm:$0x1f]
    %vm644 = vcmask 261120
    %v645 = vsel %vm644, %v621, 0.0
    %646 = vadd.xlane.f32.xlu0 %v645
    %v647 = vpop.xlane.xlu0 %646
    %v648 = vsel %vm644, %v642, 0.0
    %649 = vadd.xlane.f32.xlu0 %v648
    %v650 = vpop.xlane.xlu0 %649
    %vm651 = vcmask 254976
    %v652 = vsel %vm651, %v639, 0.0
    %653 = vadd.xlane.f32.xlu0 %v652
    %v654 = vpop.xlane.xlu0 %653
    %v655 = vrcp.pop 32.0
    %v656 = vmul.f32 %v647, %v655
    %v657 = vmul.f32 %v650, %v655
    %v658 = vmul.f32 %v654, %v655
    %v659 = vsub.f32 %v621, %v656
    %v660 = vsub.f32 %v642, %v657
    %v661 = vsub.f32 %v639, %v658
    %v662 = vmul.f32 %v659, %v659
    %v663 = vmul.f32 %v660, %v660
    %v664 = vmul.f32 %v661, %v661
    %v665 = vsel %vm644, %v662, 0.0
    %666 = vadd.xlane.f32.xlu0 %v665
    %v667 = vpop.xlane.xlu0 %666
    %v668 = vsel %vm644, %v663, 0.0
    %669 = vadd.xlane.f32.xlu0 %v668
    %v670 = vpop.xlane.xlu0 %669
    %v671 = vsel %vm651, %v664, 0.0
    %672 = vadd.xlane.f32.xlu0 %v671
    %v673 = vpop.xlane.xlu0 %672
    %v674 = vmul.f32 %v667, %v655
    %v675 = vmul.f32 %v670, %v655
    %v676 = vmul.f32 %v673, %v655
    %v677 = vadd.f32 %v674, 1e-05
    %v678 = vadd.f32 %v675, 1e-05
    %v679 = vadd.f32 %v676, 1e-05
    %v680 = vrsqrt.pop %v677
    %v681 = vrsqrt.pop %v678
    %v682 = vrsqrt.pop %v679
    %v683 = vmul.f32 %v659, %v680
    %v684 = vmul.f32 %v660, %v681
    %v685 = vmul.f32 %v661, %v682
    %v686 = vlaneseq
    %v687 = vshrl.u32 %v686, 7
    %v688 = vsub.s32 0, %v687
    %v689 = vrot.slane %v643, %v688
    %v690 = vmul.f32 %v683, %v689
    %v691 = vmul.f32 %v684, %v689
    %v692 = vmul.f32 %v685, %v689
    %v693 = vlaneseq
    %v694 = vshrl.u32 %v693, 7
    %v695 = vsub.s32 1, %v694
    %v696 = vrot.slane %v643, %v695
    %v697 = vadd.f32 %v690, %v696
    %v698 = vadd.f32 %v691, %v696
    %v699 = vadd.f32 %v692, %v696
    %v700 = vld [vmem:[%s7] sm:$0xff]
    %v701 = vld [vmem:[%s7 + $0x8] sm:$0xff]
    %v702 = vld [vmem:[%s7 + $0x10] sm:$0xff]
    %v703 = vld [vmem:[%s7 + $0x18] sm:$0xff]
    %v705 = vsel %vm644, %v697, 0
    %v708 = vsel %vm644, %v698, 0
    %v711 = vsel %vm644, %v699, 0
    %713 = vmatprep.subr.mxu0 0.0
    %714 = vmatpush1.msra.mxu0 %v700
    %715 = vmatprep.subr.mxu0 0.0
    %716 = vmatpush1.msra.mxu0 %v701
    %717 = vmatprep.subr.mxu0 0.0
    %718 = vmatpush1.msra.mxu0 %v702
    %719 = vmatprep.subr.mxu0 0.0
    %720 = vmatpush1.msra.mxu0 %v703
    %721 = vmatprep.subr.mxu0 0.0
    %722 = vmatpush1.msra.mxu0 0.0
    %723 = vmatprep.subr.mxu0 0.0
    %724 = vmatpush1.msra.mxu0 0.0
    %725 = vmatprep.subr.mxu0 0.0
    %726 = vmatpush1.msra.mxu0 0.0
    %727 = vmatprep.subr.mxu0 0.0
    %728 = vmatpush1.msra.mxu0 0.0
    %729 = vmatprep.subr.mxu0 0.0
    %730 = vmatpush1.msra.mxu0 0.0
    %731 = vmatprep.subr.mxu0 0.0
    %732 = vmatpush1.msra.mxu0 0.0
    %733 = vmatprep.subr.mxu0 0.0
    %734 = vmatpush1.msra.mxu0 0.0
    %735 = vmatprep.subr.mxu0 0.0
    %736 = vmatpush1.msra.mxu0 0.0
    %737 = vmatprep.subr.mxu0 0.0
    %738 = vmatpush1.msra.mxu0 0.0
    %739 = vmatprep.subr.mxu0 0.0
    %740 = vmatpush1.msra.mxu0 0.0
    %741 = vmatprep.subr.mxu0 0.0
    %742 = vmatpush1.msra.mxu0 0.0
    %743 = vmatprep.subr.mxu0 0.0
    %744 = vmatpush1.msra.mxu0 0.0
    %745 = vmatprep.subr.mxu0 0.0
    %746 = vmatpush1.msra.mxu0 0.0
    %747 = vmatprep.subr.mxu0 0.0
    %748 = vmatpush1.msra.mxu0 0.0
    %749 = vmatprep.subr.mxu0 0.0
    %750 = vmatpush1.msra.mxu0 0.0
    %751 = vmatprep.subr.mxu0 0.0
    %752 = vmatpush1.msra.mxu0 0.0
    %753 = vmatprep.subr.mxu0 0.0
    %754 = vmatpush1.msra.mxu0 0.0
    %755 = vmatprep.subr.mxu0 0.0
    %756 = vmatpush1.msra.mxu0 0.0
    %757 = vmatprep.subr.mxu0 0.0
    %758 = vmatpush1.msra.mxu0 0.0
    %759 = vmatprep.subr.mxu0 0.0
    %760 = vmatpush1.msra.mxu0 0.0
    %761 = vmatprep.subr.mxu0 0.0
    %762 = vmatpush1.msra.mxu0 0.0
    %763 = vmatprep.subr.mxu0 0.0
    %764 = vmatpush1.msra.mxu0 0.0
    %765 = vmatprep.subr.mxu0 0.0
    %766 = vmatpush1.msra.mxu0 0.0
    %767 = vmatprep.subr.mxu0 0.0
    %768 = vmatpush1.msra.mxu0 0.0
    %769 = vmatprep.subr.mxu0 0.0
    %770 = vmatpush1.msra.mxu0 0.0
    %771 = vmatprep.subr.mxu0 0.0
    %772 = vmatpush1.msra.mxu0 0.0
    %773 = vmatprep.subr.mxu0 0.0
    %774 = vmatpush1.msra.mxu0 0.0
    %775 = vmatprep.subr.mxu0 0.0
    %776 = vmatpush1.msra.mxu0 0.0
    %777 = vmatprep.mubr.f32.mxu0 0.0
    %778 = vmatmul.mubr.f32.gmra.mrb[0].mxu0 %v705
    %v779 = vpop.f32.mrb[0].mxu0
    %v780 = vadd.f32 0.0, %v779
    %v781 = vpop.f32.mrb[0].mxu0
    %782 = vmatprep.mubr.f32.mxu0 0.0
    %783 = vmatmul.mubr.f32.gmra.mrb[0].mxu0 %v708
    %v784 = vpop.f32.mrb[0].mxu0
    %v785 = vadd.f32 0.0, %v784
    %v786 = vpop.f32.mrb[0].mxu0
    %787 = vmatprep.mubr.f32.mxu0 0.0
    %788 = vmatmul.mubr.f32.gmra.mrb[0].mxu0 %v711
    %v789 = vpop.f32.mrb[0].mxu0
    %v790 = vadd.f32 0.0, %v789
    %v791 = vpop.f32.mrb[0].mxu0
    %792 = vdwg.mxu0
    %v793 = vld [vmem:[%s8] sm:$0xff]
    %v794 = vld [vmem:[%s8 + $0x8] sm:$0xff]
    %v795 = vld [vmem:[%s8 + $0x10] sm:$0xff]
    %v796 = vld [vmem:[%s8 + $0x18] sm:$0xff]
    %799 = vrot.lane.b32.xlu0 %v780, 96
    %v800 = vpop.permute.xlu0 %799
    %801 = vrot.lane.b32.xlu0 %v785, 96
    %v802 = vpop.permute.xlu0 %801
    %vm803 = vcmask 130048
    %v804 = vsel %vm803, %v780, 0
    %v806 = vsel %vm803, %v785, 0
    %v808 = vsel %vm803, %v800, 0
    %v810 = vsel %vm803, %v802, 0
    %812 = vmatprep.subr.mxu0 0.0
    %813 = vmatpush1.xpose.msra.mxu0 %v808
    %814 = vmatprep.subr.mxu0 0.0
    %815 = vmatpush1.xpose.msra.mxu0 %v810
    %816 = vmatprep.subr.mxu0 0.0
    %817 = vmatpush1.xpose.msra.mxu0 0.0
    %818 = vmatprep.subr.mxu0 0.0
    %819 = vmatpush1.xpose.msra.mxu0 0.0
    %820 = vmatprep.subr.mxu0 0.0
    %821 = vmatpush1.xpose.msra.mxu0 0.0
    %822 = vmatprep.subr.mxu0 0.0
    %823 = vmatpush1.xpose.msra.mxu0 0.0
    %824 = vmatprep.subr.mxu0 0.0
    %825 = vmatpush1.xpose.msra.mxu0 0.0
    %826 = vmatprep.subr.mxu0 0.0
    %827 = vmatpush1.xpose.msra.mxu0 0.0
    %828 = vmatprep.subr.mxu0 0.0
    %829 = vmatpush1.xpose.msra.mxu0 0.0
    %830 = vmatprep.subr.mxu0 0.0
    %831 = vmatpush1.xpose.msra.mxu0 0.0
    %832 = vmatprep.subr.mxu0 0.0
    %833 = vmatpush1.xpose.msra.mxu0 0.0
    %834 = vmatprep.subr.mxu0 0.0
    %835 = vmatpush1.xpose.msra.mxu0 0.0
    %836 = vmatprep.subr.mxu0 0.0
    %837 = vmatpush1.xpose.msra.mxu0 0.0
    %838 = vmatprep.subr.mxu0 0.0
    %839 = vmatpush1.xpose.msra.mxu0 0.0
    %840 = vmatprep.subr.mxu0 0.0
    %841 = vmatpush1.xpose.msra.mxu0 0.0
    %842 = vmatprep.subr.mxu0 0.0
    %843 = vmatpush1.xpose.msra.mxu0 0.0
    %844 = vmatprep.subr.mxu0 0.0
    %845 = vmatpush1.xpose.msra.mxu0 0.0
    %846 = vmatprep.subr.mxu0 0.0
    %847 = vmatpush1.xpose.msra.mxu0 0.0
    %848 = vmatprep.subr.mxu0 0.0
    %849 = vmatpush1.xpose.msra.mxu0 0.0
    %850 = vmatprep.subr.mxu0 0.0
    %851 = vmatpush1.xpose.msra.mxu0 0.0
    %852 = vmatprep.subr.mxu0 0.0
    %853 = vmatpush1.xpose.msra.mxu0 0.0
    %854 = vmatprep.subr.mxu0 0.0
    %855 = vmatpush1.xpose.msra.mxu0 0.0
    %856 = vmatprep.subr.mxu0 0.0
    %857 = vmatpush1.xpose.msra.mxu0 0.0
    %858 = vmatprep.subr.mxu0 0.0
    %859 = vmatpush1.xpose.msra.mxu0 0.0
    %860 = vmatprep.subr.mxu0 0.0
    %861 = vmatpush1.xpose.msra.mxu0 0.0
    %862 = vmatprep.subr.mxu0 0.0
    %863 = vmatpush1.xpose.msra.mxu0 0.0
    %864 = vmatprep.subr.mxu0 0.0
    %865 = vmatpush1.xpose.msra.mxu0 0.0
    %866 = vmatprep.subr.mxu0 0.0
    %867 = vmatpush1.xpose.msra.mxu0 0.0
    %868 = vmatprep.subr.mxu0 0.0
    %869 = vmatpush1.xpose.msra.mxu0 0.0
    %870 = vmatprep.subr.mxu0 0.0
    %871 = vmatpush1.xpose.msra.mxu0 0.0
    %872 = vmatprep.subr.mxu0 0.0
    %873 = vmatpush1.xpose.msra.mxu0 0.0
    %874 = vmatprep.subr.mxu0 0.0
    %875 = vmatpush1.xpose.msra.mxu0 0.0
    %876 = vmatprep.mubr.f32.mxu0 0.0
    %877 = vmatmul.mubr.f32.gmra.mrb[0].mxu0 %v804
    %v878 = vpop.f32.mrb[0].mxu0
    %v879 = vadd.f32 0.0, %v878
    %v880 = vpop.f32.mrb[0].mxu0
    %881 = vmatprep.mubr.f32.mxu0 0.0
    %882 = vmatmul.mubr.f32.gmra.mrb[0].mxu0 %v806
    %v883 = vpop.f32.mrb[0].mxu0
    %v884 = vadd.f32 0.0, %v883
    %v885 = vpop.f32.mrb[0].mxu0
    %886 = vdwg.mxu0
    %v887 = vmul.f32 %v879, 0.25
    %v888 = vmul.f32 %v884, 0.25
    %vm889 = vcmask 72704
    %v890 = vsel %vm889, %v887, -inf
    %891 = vmax.xlane.f32.xlu0 %v890
    %v892 = vpop.xlane.xlu0 %891
    %vm893 = vcmask 65536
    %v894 = vsel %vm893, %v888, -inf
    %895 = vmax.xlane.f32.xlu0 %v894
    %v896 = vpop.xlane.xlu0 %895
    %v897 = vsub.f32 %v887, %v892
    %v898 = vsub.f32 %v888, %v896
    %v899 = vmul.f32 %v897, 1.442695
    %v900 = vpow.pop %v899
    %v901 = vmul.f32 %v898, 1.442695
    %v902 = vpow.pop %v901
    %v903 = vsel %vm889, %v900, 0.0
    %904 = vadd.xlane.f32.xlu0 %v903
    %v905 = vpop.xlane.xlu0 %904
    %v906 = vsel %vm893, %v902, 0.0
    %907 = vadd.xlane.f32.xlu0 %v906
    %v908 = vpop.xlane.xlu0 %907
    %v909 = vrcp.pop %v905
    %v910 = vmul.f32 %v900, %v909
    %v911 = vrcp.pop %v908
    %v912 = vmul.f32 %v902, %v911
    %913 = vrot.lane.b32.xlu0 %v780, 64
    %v914 = vpop.permute.xlu0 %913
    %915 = vrot.lane.b32.xlu0 %v785, 64
    %v916 = vpop.permute.xlu0 %915
    %v919 = vsel %vm889, %v910, 0
    %v922 = vsel %vm889, %v912, 0
    %v924 = vsel %vm614, %v916, 0
    %926 = vmatprep.subr.mxu0 0.0
    %927 = vmatpush1.msra.mxu0 %v914
    %928 = vmatprep.subr.mxu0 0.0
    %929 = vmatpush1.msra.mxu0 %v924
    %930 = vmatprep.subr.mxu0 0.0
    %931 = vmatpush1.msra.mxu0 0.0
    %932 = vmatprep.subr.mxu0 0.0
    %933 = vmatpush1.msra.mxu0 0.0
    %934 = vmatprep.subr.mxu0 0.0
    %935 = vmatpush1.msra.mxu0 0.0
    %936 = vmatprep.subr.mxu0 0.0
    %937 = vmatpush1.msra.mxu0 0.0
    %938 = vmatprep.subr.mxu0 0.0
    %939 = vmatpush1.msra.mxu0 0.0
    %940 = vmatprep.subr.mxu0 0.0
    %941 = vmatpush1.msra.mxu0 0.0
    %942 = vmatprep.subr.mxu0 0.0
    %943 = vmatpush1.msra.mxu0 0.0
    %944 = vmatprep.subr.mxu0 0.0
    %945 = vmatpush1.msra.mxu0 0.0
    %946 = vmatprep.subr.mxu0 0.0
    %947 = vmatpush1.msra.mxu0 0.0
    %948 = vmatprep.subr.mxu0 0.0
    %949 = vmatpush1.msra.mxu0 0.0
    %950 = vmatprep.subr.mxu0 0.0
    %951 = vmatpush1.msra.mxu0 0.0
    %952 = vmatprep.subr.mxu0 0.0
    %953 = vmatpush1.msra.mxu0 0.0
    %954 = vmatprep.subr.mxu0 0.0
    %955 = vmatpush1.msra.mxu0 0.0
    %956 = vmatprep.subr.mxu0 0.0
    %957 = vmatpush1.msra.mxu0 0.0
    %958 = vmatprep.subr.mxu0 0.0
    %959 = vmatpush1.msra.mxu0 0.0
    %960 = vmatprep.subr.mxu0 0.0
    %961 = vmatpush1.msra.mxu0 0.0
    %962 = vmatprep.subr.mxu0 0.0
    %963 = vmatpush1.msra.mxu0 0.0
    %964 = vmatprep.subr.mxu0 0.0
    %965 = vmatpush1.msra.mxu0 0.0
    %966 = vmatprep.subr.mxu0 0.0
    %967 = vmatpush1.msra.mxu0 0.0
    %968 = vmatprep.subr.mxu0 0.0
    %969 = vmatpush1.msra.mxu0 0.0
    %970 = vmatprep.subr.mxu0 0.0
    %971 = vmatpush1.msra.mxu0 0.0
    %972 = vmatprep.subr.mxu0 0.0
    %973 = vmatpush1.msra.mxu0 0.0
    %974 = vmatprep.subr.mxu0 0.0
    %975 = vmatpush1.msra.mxu0 0.0
    %976 = vmatprep.subr.mxu0 0.0
    %977 = vmatpush1.msra.mxu0 0.0
    %978 = vmatprep.subr.mxu0 0.0
    %979 = vmatpush1.msra.mxu0 0.0
    %980 = vmatprep.subr.mxu0 0.0
    %981 = vmatpush1.msra.mxu0 0.0
    %982 = vmatprep.subr.mxu0 0.0
    %983 = vmatpush1.msra.mxu0 0.0
    %984 = vmatprep.subr.mxu0 0.0
    %985 = vmatpush1.msra.mxu0 0.0
    %986 = vmatprep.subr.mxu0 0.0
    %987 = vmatpush1.msra.mxu0 0.0
    %988 = vmatprep.subr.mxu0 0.0
    %989 = vmatpush1.msra.mxu0 0.0
    %990 = vmatprep.mubr.f32.mxu0 0.0
    %991 = vmatmul.mubr.f32.gmra.mrb[0].mxu0 %v919
    %v992 = vpop.f32.mrb[0].mxu0
    %v993 = vadd.f32 0.0, %v992
    %v994 = vpop.f32.mrb[0].mxu0
    %995 = vmatprep.mubr.f32.mxu0 0.0
    %996 = vmatmul.mubr.f32.gmra.mrb[0].mxu0 %v922
    %v997 = vpop.f32.mrb[0].mxu0
    %v998 = vadd.f32 0.0, %v997
    %v999 = vpop.f32.mrb[0].mxu0
    %1000 = vdwg.mxu0
    %1001 = vrot.lane.b32.xlu0 %v780, 112
    %v1002 = vpop.permute.xlu0 %1001
    %1003 = vrot.lane.b32.xlu0 %v785, 112
    %v1004 = vpop.permute.xlu0 %1003
    %1005 = vrot.lane.b32.xlu0 %v780, 80
    %v1006 = vpop.permute.xlu0 %1005
    %1007 = vrot.lane.b32.xlu0 %v785, 80
    %v1008 = vpop.permute.xlu0 %1007
    %v1009 = vsel %vm803, %v1002, 0
    %v1011 = vsel %vm803, %v1004, 0
    %v1013 = vsel %vm803, %v1006, 0
    %v1015 = vsel %vm803, %v1008, 0
    %1017 = vmatprep.subr.mxu0 0.0
    %1018 = vmatpush1.xpose.msra.mxu0 %v1013
    %1019 = vmatprep.subr.mxu0 0.0
    %1020 = vmatpush1.xpose.msra.mxu0 %v1015
    %1021 = vmatprep.subr.mxu0 0.0
    %1022 = vmatpush1.xpose.msra.mxu0 0.0
    %1023 = vmatprep.subr.mxu0 0.0
    %1024 = vmatpush1.xpose.msra.mxu0 0.0
    %1025 = vmatprep.subr.mxu0 0.0
    %1026 = vmatpush1.xpose.msra.mxu0 0.0
    %1027 = vmatprep.subr.mxu0 0.0
    %1028 = vmatpush1.xpose.msra.mxu0 0.0
    %1029 = vmatprep.subr.mxu0 0.0
    %1030 = vmatpush1.xpose.msra.mxu0 0.0
    %1031 = vmatprep.subr.mxu0 0.0
    %1032 = vmatpush1.xpose.msra.mxu0 0.0
    %1033 = vmatprep.subr.mxu0 0.0
    %1034 = vmatpush1.xpose.msra.mxu0 0.0
    %1035 = vmatprep.subr.mxu0 0.0
    %1036 = vmatpush1.xpose.msra.mxu0 0.0
    %1037 = vmatprep.subr.mxu0 0.0
    %1038 = vmatpush1.xpose.msra.mxu0 0.0
    %1039 = vmatprep.subr.mxu0 0.0
    %1040 = vmatpush1.xpose.msra.mxu0 0.0
    %1041 = vmatprep.subr.mxu0 0.0
    %1042 = vmatpush1.xpose.msra.mxu0 0.0
    %1043 = vmatprep.subr.mxu0 0.0
    %1044 = vmatpush1.xpose.msra.mxu0 0.0
    %1045 = vmatprep.subr.mxu0 0.0
    %1046 = vmatpush1.xpose.msra.mxu0 0.0
    %1047 = vmatprep.subr.mxu0 0.0
    %1048 = vmatpush1.xpose.msra.mxu0 0.0
    %1049 = vmatprep.subr.mxu0 0.0
    %1050 = vmatpush1.xpose.msra.mxu0 0.0
    %1051 = vmatprep.subr.mxu0 0.0
    %1052 = vmatpush1.xpose.msra.mxu0 0.0
    %1053 = vmatprep.subr.mxu0 0.0
    %1054 = vmatpush1.xpose.msra.mxu0 0.0
    %1055 = vmatprep.subr.mxu0 0.0
    %1056 = vmatpush1.xpose.msra.mxu0 0.0
    %1057 = vmatprep.subr.mxu0 0.0
    %1058 = vmatpush1.xpose.msra.mxu0 0.0
    %1059 = vmatprep.subr.mxu0 0.0
    %1060 = vmatpush1.xpose.msra.mxu0 0.0
    %1061 = vmatprep.subr.mxu0 0.0
    %1062 = vmatpush1.xpose.msra.mxu0 0.0
    %1063 = vmatprep.subr.mxu0 0.0
    %1064 = vmatpush1.xpose.msra.mxu0 0.0
    %1065 = vmatprep.subr.mxu0 0.0
    %1066 = vmatpush1.xpose.msra.mxu0 0.0
    %1067 = vmatprep.subr.mxu0 0.0
    %1068 = vmatpush1.xpose.msra.mxu0 0.0
    %1069 = vmatprep.subr.mxu0 0.0
    %1070 = vmatpush1.xpose.msra.mxu0 0.0
    %1071 = vmatprep.subr.mxu0 0.0
    %1072 = vmatpush1.xpose.msra.mxu0 0.0
    %1073 = vmatprep.subr.mxu0 0.0
    %1074 = vmatpush1.xpose.msra.mxu0 0.0
    %1075 = vmatprep.subr.mxu0 0.0
    %1076 = vmatpush1.xpose.msra.mxu0 0.0
    %1077 = vmatprep.subr.mxu0 0.0
    %1078 = vmatpush1.xpose.msra.mxu0 0.0
    %1079 = vmatprep.subr.mxu0 0.0
    %1080 = vmatpush1.xpose.msra.mxu0 0.0
    %1081 = vmatprep.mubr.f32.mxu0 0.0
    %1082 = vmatmul.mubr.f32.gmra.mrb[0].mxu0 %v1009
    %v1083 = vpop.f32.mrb[0].mxu0
    %v1084 = vadd.f32 0.0, %v1083
    %v1085 = vpop.f32.mrb[0].mxu0
    %1086 = vmatprep.mubr.f32.mxu0 0.0
    %1087 = vmatmul.mubr.f32.gmra.mrb[0].mxu0 %v1011
    %v1088 = vpop.f32.mrb[0].mxu0
    %v1089 = vadd.f32 0.0, %v1088
    %v1090 = vpop.f32.mrb[0].mxu0
    %1091 = vdwg.mxu0
    %v1092 = vmul.f32 %v1084, 0.25
    %v1093 = vmul.f32 %v1089, 0.25
    %v1094 = vsel %vm889, %v1092, -inf
    %1095 = vmax.xlane.f32.xlu0 %v1094
    %v1096 = vpop.xlane.xlu0 %1095
    %v1097 = vsel %vm893, %v1093, -inf
    %1098 = vmax.xlane.f32.xlu0 %v1097
    %v1099 = vpop.xlane.xlu0 %1098
    %v1100 = vsub.f32 %v1092, %v1096
    %v1101 = vsub.f32 %v1093, %v1099
    %v1102 = vmul.f32 %v1100, 1.442695
    %v1103 = vpow.pop %v1102
    %v1104 = vmul.f32 %v1101, 1.442695
    %v1105 = vpow.pop %v1104
    %v1106 = vsel %vm889, %v1103, 0.0
    %1107 = vadd.xlane.f32.xlu0 %v1106
    %v1108 = vpop.xlane.xlu0 %1107
    %v1109 = vsel %vm893, %v1105, 0.0
    %1110 = vadd.xlane.f32.xlu0 %v1109
    %v1111 = vpop.xlane.xlu0 %1110
    %v1112 = vrcp.pop %v1108
    %v1113 = vmul.f32 %v1103, %v1112
    %v1114 = vrcp.pop %v1111
    %v1115 = vmul.f32 %v1105, %v1114
    %1116 = vrot.lane.b32.xlu0 %v780, 48
    %v1117 = vpop.permute.xlu0 %1116
    %1118 = vrot.lane.b32.xlu0 %v785, 48
    %v1119 = vpop.permute.xlu0 %1118
    %v1122 = vsel %vm889, %v1113, 0
    %v1125 = vsel %vm889, %v1115, 0
    %v1127 = vsel %vm614, %v1119, 0
    %1129 = vmatprep.subr.mxu0 0.0
    %1130 = vmatpush1.msra.mxu0 %v1117
    %1131 = vmatprep.subr.mxu0 0.0
    %1132 = vmatpush1.msra.mxu0 %v1127
    %1133 = vmatprep.subr.mxu0 0.0
    %1134 = vmatpush1.msra.mxu0 0.0
    %1135 = vmatprep.subr.mxu0 0.0
    %1136 = vmatpush1.msra.mxu0 0.0
    %1137 = vmatprep.subr.mxu0 0.0
    %1138 = vmatpush1.msra.mxu0 0.0
    %1139 = vmatprep.subr.mxu0 0.0
    %1140 = vmatpush1.msra.mxu0 0.0
    %1141 = vmatprep.subr.mxu0 0.0
    %1142 = vmatpush1.msra.mxu0 0.0
    %1143 = vmatprep.subr.mxu0 0.0
    %1144 = vmatpush1.msra.mxu0 0.0
    %1145 = vmatprep.subr.mxu0 0.0
    %1146 = vmatpush1.msra.mxu0 0.0
    %1147 = vmatprep.subr.mxu0 0.0
    %1148 = vmatpush1.msra.mxu0 0.0
    %1149 = vmatprep.subr.mxu0 0.0
    %1150 = vmatpush1.msra.mxu0 0.0
    %1151 = vmatprep.subr.mxu0 0.0
    %1152 = vmatpush1.msra.mxu0 0.0
    %1153 = vmatprep.subr.mxu0 0.0
    %1154 = vmatpush1.msra.mxu0 0.0
    %1155 = vmatprep.subr.mxu0 0.0
    %1156 = vmatpush1.msra.mxu0 0.0
    %1157 = vmatprep.subr.mxu0 0.0
    %1158 = vmatpush1.msra.mxu0 0.0
    %1159 = vmatprep.subr.mxu0 0.0
    %1160 = vmatpush1.msra.mxu0 0.0
    %1161 = vmatprep.subr.mxu0 0.0
    %1162 = vmatpush1.msra.mxu0 0.0
    %1163 = vmatprep.subr.mxu0 0.0
    %1164 = vmatpush1.msra.mxu0 0.0
    %1165 = vmatprep.subr.mxu0 0.0
    %1166 = vmatpush1.msra.mxu0 0.0
    %1167 = vmatprep.subr.mxu0 0.0
    %1168 = vmatpush1.msra.mxu0 0.0
    %1169 = vmatprep.subr.mxu0 0.0
    %1170 = vmatpush1.msra.mxu0 0.0
    %1171 = vmatprep.subr.mxu0 0.0
    %1172 = vmatpush1.msra.mxu0 0.0
    %1173 = vmatprep.subr.mxu0 0.0
    %1174 = vmatpush1.msra.mxu0 0.0
    %1175 = vmatprep.subr.mxu0 0.0
    %1176 = vmatpush1.msra.mxu0 0.0
    %1177 = vmatprep.subr.mxu0 0.0
    %1178 = vmatpush1.msra.mxu0 0.0
    %1179 = vmatprep.subr.mxu0 0.0
    %1180 = vmatpush1.msra.mxu0 0.0
    %1181 = vmatprep.subr.mxu0 0.0
    %1182 = vmatpush1.msra.mxu0 0.0
    %1183 = vmatprep.subr.mxu0 0.0
    %1184 = vmatpush1.msra.mxu0 0.0
    %1185 = vmatprep.subr.mxu0 0.0
    %1186 = vmatpush1.msra.mxu0 0.0
    %1187 = vmatprep.subr.mxu0 0.0
    %1188 = vmatpush1.msra.mxu0 0.0
    %1189 = vmatprep.subr.mxu0 0.0
    %1190 = vmatpush1.msra.mxu0 0.0
    %1191 = vmatprep.subr.mxu0 0.0
    %1192 = vmatpush1.msra.mxu0 0.0
    %1193 = vmatprep.mubr.f32.mxu0 0.0
    %1194 = vmatmul.mubr.f32.gmra.mrb[0].mxu0 %v1122
    %v1195 = vpop.f32.mrb[0].mxu0
    %v1196 = vadd.f32 0.0, %v1195
    %v1197 = vpop.f32.mrb[0].mxu0
    %1198 = vmatprep.mubr.f32.mxu0 0.0
    %1199 = vmatmul.mubr.f32.gmra.mrb[0].mxu0 %v1125
    %v1200 = vpop.f32.mrb[0].mxu0
    %v1201 = vadd.f32 0.0, %v1200
    %v1202 = vpop.f32.mrb[0].mxu0
    %1203 = vdwg.mxu0
    %1206 = vrot.lane.b32.xlu0 %v1196, 16
    %v1207 = vpop.permute.xlu0 %1206
    %1208 = vrot.lane.b32.xlu0 %v1201, 16
    %v1209 = vpop.permute.xlu0 %1208
    %v1212 = vsel %vm803, %v993, %v1207
    %v1213 = vsel %vm803, %v998, %v1209
    %v1215 = vsel %vm644, %v1212, 0
    %v1218 = vsel %vm644, %v1213, 0
    %1220 = vmatprep.subr.mxu0 0.0
    %1221 = vmatpush1.msra.mxu0 %v793
    %1222 = vmatprep.subr.mxu0 0.0
    %1223 = vmatpush1.msra.mxu0 %v794
    %1224 = vmatprep.subr.mxu0 0.0
    %1225 = vmatpush1.msra.mxu0 %v795
    %1226 = vmatprep.subr.mxu0 0.0
    %1227 = vmatpush1.msra.mxu0 %v796
    %1228 = vmatprep.subr.mxu0 0.0
    %1229 = vmatpush1.msra.mxu0 0.0
    %1230 = vmatprep.subr.mxu0 0.0
    %1231 = vmatpush1.msra.mxu0 0.0
    %1232 = vmatprep.subr.mxu0 0.0
    %1233 = vmatpush1.msra.mxu0 0.0
    %1234 = vmatprep.subr.mxu0 0.0
    %1235 = vmatpush1.msra.mxu0 0.0
    %1236 = vmatprep.subr.mxu0 0.0
    %1237 = vmatpush1.msra.mxu0 0.0
    %1238 = vmatprep.subr.mxu0 0.0
    %1239 = vmatpush1.msra.mxu0 0.0
    %1240 = vmatprep.subr.mxu0 0.0
    %1241 = vmatpush1.msra.mxu0 0.0
    %1242 = vmatprep.subr.mxu0 0.0
    %1243 = vmatpush1.msra.mxu0 0.0
    %1244 = vmatprep.subr.mxu0 0.0
    %1245 = vmatpush1.msra.mxu0 0.0
    %1246 = vmatprep.subr.mxu0 0.0
    %1247 = vmatpush1.msra.mxu0 0.0
    %1248 = vmatprep.subr.mxu0 0.0
    %1249 = vmatpush1.msra.mxu0 0.0
    %1250 = vmatprep.subr.mxu0 0.0
    %1251 = vmatpush1.msra.mxu0 0.0
    %1252 = vmatprep.subr.mxu0 0.0
    %1253 = vmatpush1.msra.mxu0 0.0
    %1254 = vmatprep.subr.mxu0 0.0
    %1255 = vmatpush1.msra.mxu0 0.0
    %1256 = vmatprep.subr.mxu0 0.0
    %1257 = vmatpush1.msra.mxu0 0.0
    %1258 = vmatprep.subr.mxu0 0.0
    %1259 = vmatpush1.msra.mxu0 0.0
    %1260 = vmatprep.subr.mxu0 0.0
    %1261 = vmatpush1.msra.mxu0 0.0
    %1262 = vmatprep.subr.mxu0 0.0
    %1263 = vmatpush1.msra.mxu0 0.0
    %1264 = vmatprep.subr.mxu0 0.0
    %1265 = vmatpush1.msra.mxu0 0.0
    %1266 = vmatprep.subr.mxu0 0.0
    %1267 = vmatpush1.msra.mxu0 0.0
    %1268 = vmatprep.subr.mxu0 0.0
    %1269 = vmatpush1.msra.mxu0 0.0
    %1270 = vmatprep.subr.mxu0 0.0
    %1271 = vmatpush1.msra.mxu0 0.0
    %1272 = vmatprep.subr.mxu0 0.0
    %1273 = vmatpush1.msra.mxu0 0.0
    %1274 = vmatprep.subr.mxu0 0.0
    %1275 = vmatpush1.msra.mxu0 0.0
    %1276 = vmatprep.subr.mxu0 0.0
    %1277 = vmatpush1.msra.mxu0 0.0
    %1278 = vmatprep.subr.mxu0 0.0
    %1279 = vmatpush1.msra.mxu0 0.0
    %1280 = vmatprep.subr.mxu0 0.0
    %1281 = vmatpush1.msra.mxu0 0.0
    %1282 = vmatprep.subr.mxu0 0.0
    %1283 = vmatpush1.msra.mxu0 0.0
    %1284 = vmatprep.mubr.f32.mxu0 0.0
    %1285 = vmatmul.mubr.f32.gmra.mrb[0].mxu0 %v1215
    %v1286 = vpop.f32.mrb[0].mxu0
    %v1287 = vadd.f32 0.0, %v1286
    %v1288 = vpop.f32.mrb[0].mxu0
    %1289 = vmatprep.mubr.f32.mxu0 0.0
    %1290 = vmatmul.mubr.f32.gmra.mrb[0].mxu0 %v1218
    %v1291 = vpop.f32.mrb[0].mxu0
    %v1292 = vadd.f32 0.0, %v1291
    %v1293 = vpop.f32.mrb[0].mxu0
    %1294 = vdwg.mxu0
    %vm1296 = vcmask 1046528
    %v1297 = vrot.slane %v785, 1
    %v1298 = vrot.slane %v790, 1
    %v1299 = vsel %vm1296, %v1297, %v1298
    %1300 = vrot.lane.b32.xlu0 %v1299, 96
    %v1301 = vpop.permute.xlu0 %1300
    %1302 = vrot.lane.b32.xlu0 %v1298, 96
    %v1303 = vpop.permute.xlu0 %1302
    %v1304 = vsel %vm803, %v1299, 0
    %v1306 = vsel %vm803, %v1298, 0
    %v1308 = vsel %vm803, %v1301, 0
    %v1310 = vsel %vm803, %v1303, 0
    %1312 = vmatprep.subr.mxu0 0.0
    %1313 = vmatpush1.xpose.msra.mxu0 %v1308
    %1314 = vmatprep.subr.mxu0 0.0
    %1315 = vmatpush1.xpose.msra.mxu0 %v1310
    %1316 = vmatprep.subr.mxu0 0.0
    %1317 = vmatpush1.xpose.msra.mxu0 0.0
    %1318 = vmatprep.subr.mxu0 0.0
    %1319 = vmatpush1.xpose.msra.mxu0 0.0
    %1320 = vmatprep.subr.mxu0 0.0
    %1321 = vmatpush1.xpose.msra.mxu0 0.0
    %1322 = vmatprep.subr.mxu0 0.0
    %1323 = vmatpush1.xpose.msra.mxu0 0.0
    %1324 = vmatprep.subr.mxu0 0.0
    %1325 = vmatpush1.xpose.msra.mxu0 0.0
    %1326 = vmatprep.subr.mxu0 0.0
    %1327 = vmatpush1.xpose.msra.mxu0 0.0
    %1328 = vmatprep.subr.mxu0 0.0
    %1329 = vmatpush1.xpose.msra.mxu0 0.0
    %1330 = vmatprep.subr.mxu0 0.0
    %1331 = vmatpush1.xpose.msra.mxu0 0.0
    %1332 = vmatprep.subr.mxu0 0.0
    %1333 = vmatpush1.xpose.msra.mxu0 0.0
    %1334 = vmatprep.subr.mxu0 0.0
    %1335 = vmatpush1.xpose.msra.mxu0 0.0
    %1336 = vmatprep.subr.mxu0 0.0
    %1337 = vmatpush1.xpose.msra.mxu0 0.0
    %1338 = vmatprep.subr.mxu0 0.0
    %1339 = vmatpush1.xpose.msra.mxu0 0.0
    %1340 = vmatprep.subr.mxu0 0.0
    %1341 = vmatpush1.xpose.msra.mxu0 0.0
    %1342 = vmatprep.subr.mxu0 0.0
    %1343 = vmatpush1.xpose.msra.mxu0 0.0
    %1344 = vmatprep.subr.mxu0 0.0
    %1345 = vmatpush1.xpose.msra.mxu0 0.0
    %1346 = vmatprep.subr.mxu0 0.0
    %1347 = vmatpush1.xpose.msra.mxu0 0.0
    %1348 = vmatprep.subr.mxu0 0.0
    %1349 = vmatpush1.xpose.msra.mxu0 0.0
    %1350 = vmatprep.subr.mxu0 0.0
    %1351 = vmatpush1.xpose.msra.mxu0 0.0
    %1352 = vmatprep.subr.mxu0 0.0
    %1353 = vmatpush1.xpose.msra.mxu0 0.0
    %1354 = vmatprep.subr.mxu0 0.0
    %1355 = vmatpush1.xpose.msra.mxu0 0.0
    %1356 = vmatprep.subr.mxu0 0.0
    %1357 = vmatpush1.xpose.msra.mxu0 0.0
    %1358 = vmatprep.subr.mxu0 0.0
    %1359 = vmatpush1.xpose.msra.mxu0 0.0
    %1360 = vmatprep.subr.mxu0 0.0
    %1361 = vmatpush1.xpose.msra.mxu0 0.0
    %1362 = vmatprep.subr.mxu0 0.0
    %1363 = vmatpush1.xpose.msra.mxu0 0.0
    %1364 = vmatprep.subr.mxu0 0.0
    %1365 = vmatpush1.xpose.msra.mxu0 0.0
    %1366 = vmatprep.subr.mxu0 0.0
    %1367 = vmatpush1.xpose.msra.mxu0 0.0
    %1368 = vmatprep.subr.mxu0 0.0
    %1369 = vmatpush1.xpose.msra.mxu0 0.0
    %1370 = vmatprep.subr.mxu0 0.0
    %1371 = vmatpush1.xpose.msra.mxu0 0.0
    %1372 = vmatprep.subr.mxu0 0.0
    %1373 = vmatpush1.xpose.msra.mxu0 0.0
    %1374 = vmatprep.subr.mxu0 0.0
    %1375 = vmatpush1.xpose.msra.mxu0 0.0
    %1376 = vmatprep.mubr.f32.mxu0 0.0
    %1377 = vmatmul.mubr.f32.gmra.mrb[0].mxu0 %v1304
    %v1378 = vpop.f32.mrb[0].mxu0
    %v1379 = vadd.f32 0.0, %v1378
    %v1380 = vpop.f32.mrb[0].mxu0
    %1381 = vmatprep.mubr.f32.mxu0 0.0
    %1382 = vmatmul.mubr.f32.gmra.mrb[0].mxu0 %v1306
    %v1383 = vpop.f32.mrb[0].mxu0
    %v1384 = vadd.f32 0.0, %v1383
    %v1385 = vpop.f32.mrb[0].mxu0
    %1386 = vdwg.mxu0
    %v1387 = vmul.f32 %v1379, 0.25
    %v1388 = vmul.f32 %v1384, 0.25
    %v1389 = vsel %vm889, %v1387, -inf
    %1390 = vmax.xlane.f32.xlu0 %v1389
    %v1391 = vpop.xlane.xlu0 %1390
    %v1392 = vsel %vm893, %v1388, -inf
    %1393 = vmax.xlane.f32.xlu0 %v1392
    %v1394 = vpop.xlane.xlu0 %1393
    %v1395 = vsub.f32 %v1387, %v1391
    %v1396 = vsub.f32 %v1388, %v1394
    %v1397 = vmul.f32 %v1395, 1.442695
    %v1398 = vpow.pop %v1397
    %v1399 = vmul.f32 %v1396, 1.442695
    %v1400 = vpow.pop %v1399
    %v1401 = vsel %vm889, %v1398, 0.0
    %1402 = vadd.xlane.f32.xlu0 %v1401
    %v1403 = vpop.xlane.xlu0 %1402
    %v1404 = vsel %vm893, %v1400, 0.0
    %1405 = vadd.xlane.f32.xlu0 %v1404
    %v1406 = vpop.xlane.xlu0 %1405
    %v1407 = vrcp.pop %v1403
    %v1408 = vmul.f32 %v1398, %v1407
    %v1409 = vrcp.pop %v1406
    %v1410 = vmul.f32 %v1400, %v1409
    %1411 = vrot.lane.b32.xlu0 %v1299, 64
    %v1412 = vpop.permute.xlu0 %1411
    %1413 = vrot.lane.b32.xlu0 %v1298, 64
    %v1414 = vpop.permute.xlu0 %1413
    %v1417 = vsel %vm889, %v1408, 0
    %v1420 = vsel %vm889, %v1410, 0
    %v1422 = vsel %vm614, %v1414, 0
    %1424 = vmatprep.subr.mxu0 0.0
    %1425 = vmatpush1.msra.mxu0 %v1412
    %1426 = vmatprep.subr.mxu0 0.0
    %1427 = vmatpush1.msra.mxu0 %v1422
    %1428 = vmatprep.subr.mxu0 0.0
    %1429 = vmatpush1.msra.mxu0 0.0
    %1430 = vmatprep.subr.mxu0 0.0
    %1431 = vmatpush1.msra.mxu0 0.0
    %1432 = vmatprep.subr.mxu0 0.0
    %1433 = vmatpush1.msra.mxu0 0.0
    %1434 = vmatprep.subr.mxu0 0.0
    %1435 = vmatpush1.msra.mxu0 0.0
    %1436 = vmatprep.subr.mxu0 0.0
    %1437 = vmatpush1.msra.mxu0 0.0
    %1438 = vmatprep.subr.mxu0 0.0
    %1439 = vmatpush1.msra.mxu0 0.0
    %1440 = vmatprep.subr.mxu0 0.0
    %1441 = vmatpush1.msra.mxu0 0.0
    %1442 = vmatprep.subr.mxu0 0.0
    %1443 = vmatpush1.msra.mxu0 0.0
    %1444 = vmatprep.subr.mxu0 0.0
    %1445 = vmatpush1.msra.mxu0 0.0
    %1446 = vmatprep.subr.mxu0 0.0
    %1447 = vmatpush1.msra.mxu0 0.0
    %1448 = vmatprep.subr.mxu0 0.0
    %1449 = vmatpush1.msra.mxu0 0.0
    %1450 = vmatprep.subr.mxu0 0.0
    %1451 = vmatpush1.msra.mxu0 0.0
    %1452 = vmatprep.subr.mxu0 0.0
    %1453 = vmatpush1.msra.mxu0 0.0
    %1454 = vmatprep.subr.mxu0 0.0
    %1455 = vmatpush1.msra.mxu0 0.0
    %1456 = vmatprep.subr.mxu0 0.0
    %1457 = vmatpush1.msra.mxu0 0.0
    %1458 = vmatprep.subr.mxu0 0.0
    %1459 = vmatpush1.msra.mxu0 0.0
    %1460 = vmatprep.subr.mxu0 0.0
    %1461 = vmatpush1.msra.mxu0 0.0
    %1462 = vmatprep.subr.mxu0 0.0
    %1463 = vmatpush1.msra.mxu0 0.0
    %1464 = vmatprep.subr.mxu0 0.0
    %1465 = vmatpush1.msra.mxu0 0.0
    %1466 = vmatprep.subr.mxu0 0.0
    %1467 = vmatpush1.msra.mxu0 0.0
    %1468 = vmatprep.subr.mxu0 0.0
    %1469 = vmatpush1.msra.mxu0 0.0
    %1470 = vmatprep.subr.mxu0 0.0
    %1471 = vmatpush1.msra.mxu0 0.0
    %1472 = vmatprep.subr.mxu0 0.0
    %1473 = vmatpush1.msra.mxu0 0.0
    %1474 = vmatprep.subr.mxu0 0.0
    %1475 = vmatpush1.msra.mxu0 0.0
    %1476 = vmatprep.subr.mxu0 0.0
    %1477 = vmatpush1.msra.mxu0 0.0
    %1478 = vmatprep.subr.mxu0 0.0
    %1479 = vmatpush1.msra.mxu0 0.0
    %1480 = vmatprep.subr.mxu0 0.0
    %1481 = vmatpush1.msra.mxu0 0.0
    %1482 = vmatprep.subr.mxu0 0.0
    %1483 = vmatpush1.msra.mxu0 0.0
    %1484 = vmatprep.subr.mxu0 0.0
    %1485 = vmatpush1.msra.mxu0 0.0
    %1486 = vmatprep.subr.mxu0 0.0
    %1487 = vmatpush1.msra.mxu0 0.0
    %1488 = vmatprep.mubr.f32.mxu0 0.0
    %1489 = vmatmul.mubr.f32.gmra.mrb[0].mxu0 %v1417
    %v1490 = vpop.f32.mrb[0].mxu0
    %v1491 = vadd.f32 0.0, %v1490
    %v1492 = vpop.f32.mrb[0].mxu0
    %1493 = vmatprep.mubr.f32.mxu0 0.0
    %1494 = vmatmul.mubr.f32.gmra.mrb[0].mxu0 %v1420
    %v1495 = vpop.f32.mrb[0].mxu0
    %v1496 = vadd.f32 0.0, %v1495
    %v1497 = vpop.f32.mrb[0].mxu0
    %1498 = vdwg.mxu0
    %1499 = vrot.lane.b32.xlu0 %v1299, 112
    %v1500 = vpop.permute.xlu0 %1499
    %1501 = vrot.lane.b32.xlu0 %v1298, 112
    %v1502 = vpop.permute.xlu0 %1501
    %1503 = vrot.lane.b32.xlu0 %v1299, 80
    %v1504 = vpop.permute.xlu0 %1503
    %1505 = vrot.lane.b32.xlu0 %v1298, 80
    %v1506 = vpop.permute.xlu0 %1505
    %v1507 = vsel %vm803, %v1500, 0
    %v1509 = vsel %vm803, %v1502, 0
    %v1511 = vsel %vm803, %v1504, 0
    %v1513 = vsel %vm803, %v1506, 0
    %1515 = vmatprep.subr.mxu0 0.0
    %1516 = vmatpush1.xpose.msra.mxu0 %v1511
    %1517 = vmatprep.subr.mxu0 0.0
    %1518 = vmatpush1.xpose.msra.mxu0 %v1513
    %1519 = vmatprep.subr.mxu0 0.0
    %1520 = vmatpush1.xpose.msra.mxu0 0.0
    %1521 = vmatprep.subr.mxu0 0.0
    %1522 = vmatpush1.xpose.msra.mxu0 0.0
    %1523 = vmatprep.subr.mxu0 0.0
    %1524 = vmatpush1.xpose.msra.mxu0 0.0
    %1525 = vmatprep.subr.mxu0 0.0
    %1526 = vmatpush1.xpose.msra.mxu0 0.0
    %1527 = vmatprep.subr.mxu0 0.0
    %1528 = vmatpush1.xpose.msra.mxu0 0.0
    %1529 = vmatprep.subr.mxu0 0.0
    %1530 = vmatpush1.xpose.msra.mxu0 0.0
    %1531 = vmatprep.subr.mxu0 0.0
    %1532 = vmatpush1.xpose.msra.mxu0 0.0
    %1533 = vmatprep.subr.mxu0 0.0
    %1534 = vmatpush1.xpose.msra.mxu0 0.0
    %1535 = vmatprep.subr.mxu0 0.0
    %1536 = vmatpush1.xpose.msra.mxu0 0.0
    %1537 = vmatprep.subr.mxu0 0.0
    %1538 = vmatpush1.xpose.msra.mxu0 0.0
    %1539 = vmatprep.subr.mxu0 0.0
    %1540 = vmatpush1.xpose.msra.mxu0 0.0
    %1541 = vmatprep.subr.mxu0 0.0
    %1542 = vmatpush1.xpose.msra.mxu0 0.0
    %1543 = vmatprep.subr.mxu0 0.0
    %1544 = vmatpush1.xpose.msra.mxu0 0.0
    %1545 = vmatprep.subr.mxu0 0.0
    %1546 = vmatpush1.xpose.msra.mxu0 0.0
    %1547 = vmatprep.subr.mxu0 0.0
    %1548 = vmatpush1.xpose.msra.mxu0 0.0
    %1549 = vmatprep.subr.mxu0 0.0
    %1550 = vmatpush1.xpose.msra.mxu0 0.0
    %1551 = vmatprep.subr.mxu0 0.0
    %1552 = vmatpush1.xpose.msra.mxu0 0.0
    %1553 = vmatprep.subr.mxu0 0.0
    %1554 = vmatpush1.xpose.msra.mxu0 0.0
    %1555 = vmatprep.subr.mxu0 0.0
    %1556 = vmatpush1.xpose.msra.mxu0 0.0
    %1557 = vmatprep.subr.mxu0 0.0
    %1558 = vmatpush1.xpose.msra.mxu0 0.0
    %1559 = vmatprep.subr.mxu0 0.0
    %1560 = vmatpush1.xpose.msra.mxu0 0.0
    %1561 = vmatprep.subr.mxu0 0.0
    %1562 = vmatpush1.xpose.msra.mxu0 0.0
    %1563 = vmatprep.subr.mxu0 0.0
    %1564 = vmatpush1.xpose.msra.mxu0 0.0
    %1565 = vmatprep.subr.mxu0 0.0
    %1566 = vmatpush1.xpose.msra.mxu0 0.0
    %1567 = vmatprep.subr.mxu0 0.0
    %1568 = vmatpush1.xpose.msra.mxu0 0.0
    %1569 = vmatprep.subr.mxu0 0.0
    %1570 = vmatpush1.xpose.msra.mxu0 0.0
    %1571 = vmatprep.subr.mxu0 0.0
    %1572 = vmatpush1.xpose.msra.mxu0 0.0
    %1573 = vmatprep.subr.mxu0 0.0
    %1574 = vmatpush1.xpose.msra.mxu0 0.0
    %1575 = vmatprep.subr.mxu0 0.0
    %1576 = vmatpush1.xpose.msra.mxu0 0.0
    %1577 = vmatprep.subr.mxu0 0.0
    %1578 = vmatpush1.xpose.msra.mxu0 0.0
    %1579 = vmatprep.mubr.f32.mxu0 0.0
    %1580 = vmatmul.mubr.f32.gmra.mrb[0].mxu0 %v1507
    %v1581 = vpop.f32.mrb[0].mxu0
    %v1582 = vadd.f32 0.0, %v1581
    %v1583 = vpop.f32.mrb[0].mxu0
    %1584 = vmatprep.mubr.f32.mxu0 0.0
    %1585 = vmatmul.mubr.f32.gmra.mrb[0].mxu0 %v1509
    %v1586 = vpop.f32.mrb[0].mxu0
    %v1587 = vadd.f32 0.0, %v1586
    %v1588 = vpop.f32.mrb[0].mxu0
    %1589 = vdwg.mxu0
    %v1590 = vmul.f32 %v1582, 0.25
    %v1591 = vmul.f32 %v1587, 0.25
    %v1592 = vsel %vm889, %v1590, -inf
    %1593 = vmax.xlane.f32.xlu0 %v1592
    %v1594 = vpop.xlane.xlu0 %1593
    %v1595 = vsel %vm893, %v1591, -inf
    %1596 = vmax.xlane.f32.xlu0 %v1595
    %v1597 = vpop.xlane.xlu0 %1596
    %v1598 = vsub.f32 %v1590, %v1594
    %v1599 = vsub.f32 %v1591, %v1597
    %v1600 = vmul.f32 %v1598, 1.442695
    %v1601 = vpow.pop %v1600
    %v1602 = vmul.f32 %v1599, 1.442695
    %v1603 = vpow.pop %v1602
    %v1604 = vsel %vm889, %v1601, 0.0
    %1605 = vadd.xlane.f32.xlu0 %v1604
    %v1606 = vpop.xlane.xlu0 %1605
    %v1607 = vsel %vm893, %v1603, 0.0
    %1608 = vadd.xlane.f32.xlu0 %v1607
    %v1609 = vpop.xlane.xlu0 %1608
    %v1610 = vrcp.pop %v1606
    %v1611 = vmul.f32 %v1601, %v1610
    %v1612 = vrcp.pop %v1609
    %v1613 = vmul.f32 %v1603, %v1612
    %1614 = vrot.lane.b32.xlu0 %v1299, 48
    %v1615 = vpop.permute.xlu0 %1614
    %1616 = vrot.lane.b32.xlu0 %v1298, 48
    %v1617 = vpop.permute.xlu0 %1616
    %v1620 = vsel %vm889, %v1611, 0
    %v1623 = vsel %vm889, %v1613, 0
    %v1625 = vsel %vm614, %v1617, 0
    %1627 = vmatprep.subr.mxu0 0.0
    %1628 = vmatpush1.msra.mxu0 %v1615
    %1629 = vmatprep.subr.mxu0 0.0
    %1630 = vmatpush1.msra.mxu0 %v1625
    %1631 = vmatprep.subr.mxu0 0.0
    %1632 = vmatpush1.msra.mxu0 0.0
    %1633 = vmatprep.subr.mxu0 0.0
    %1634 = vmatpush1.msra.mxu0 0.0
    %1635 = vmatprep.subr.mxu0 0.0
    %1636 = vmatpush1.msra.mxu0 0.0
    %1637 = vmatprep.subr.mxu0 0.0
    %1638 = vmatpush1.msra.mxu0 0.0
    %1639 = vmatprep.subr.mxu0 0.0
    %1640 = vmatpush1.msra.mxu0 0.0
    %1641 = vmatprep.subr.mxu0 0.0
    %1642 = vmatpush1.msra.mxu0 0.0
    %1643 = vmatprep.subr.mxu0 0.0
    %1644 = vmatpush1.msra.mxu0 0.0
    %1645 = vmatprep.subr.mxu0 0.0
    %1646 = vmatpush1.msra.mxu0 0.0
    %1647 = vmatprep.subr.mxu0 0.0
    %1648 = vmatpush1.msra.mxu0 0.0
    %1649 = vmatprep.subr.mxu0 0.0
    %1650 = vmatpush1.msra.mxu0 0.0
    %1651 = vmatprep.subr.mxu0 0.0
    %1652 = vmatpush1.msra.mxu0 0.0
    %1653 = vmatprep.subr.mxu0 0.0
    %1654 = vmatpush1.msra.mxu0 0.0
    %1655 = vmatprep.subr.mxu0 0.0
    %1656 = vmatpush1.msra.mxu0 0.0
    %1657 = vmatprep.subr.mxu0 0.0
    %1658 = vmatpush1.msra.mxu0 0.0
    %1659 = vmatprep.subr.mxu0 0.0
    %1660 = vmatpush1.msra.mxu0 0.0
    %1661 = vmatprep.subr.mxu0 0.0
    %1662 = vmatpush1.msra.mxu0 0.0
    %1663 = vmatprep.subr.mxu0 0.0
    %1664 = vmatpush1.msra.mxu0 0.0
    %1665 = vmatprep.subr.mxu0 0.0
    %1666 = vmatpush1.msra.mxu0 0.0
    %1667 = vmatprep.subr.mxu0 0.0
    %1668 = vmatpush1.msra.mxu0 0.0
    %1669 = vmatprep.subr.mxu0 0.0
    %1670 = vmatpush1.msra.mxu0 0.0
    %1671 = vmatprep.subr.mxu0 0.0
    %1672 = vmatpush1.msra.mxu0 0.0
    %1673 = vmatprep.subr.mxu0 0.0
    %1674 = vmatpush1.msra.mxu0 0.0
    %1675 = vmatprep.subr.mxu0 0.0
    %1676 = vmatpush1.msra.mxu0 0.0
    %1677 = vmatprep.subr.mxu0 0.0
    %1678 = vmatpush1.msra.mxu0 0.0
    %1679 = vmatprep.subr.mxu0 0.0
    %1680 = vmatpush1.msra.mxu0 0.0
    %1681 = vmatprep.subr.mxu0 0.0
    %1682 = vmatpush1.msra.mxu0 0.0
    %1683 = vmatprep.subr.mxu0 0.0
    %1684 = vmatpush1.msra.mxu0 0.0
    %1685 = vmatprep.subr.mxu0 0.0
    %1686 = vmatpush1.msra.mxu0 0.0
    %1687 = vmatprep.subr.mxu0 0.0
    %1688 = vmatpush1.msra.mxu0 0.0
    %1689 = vmatprep.subr.mxu0 0.0
    %1690 = vmatpush1.msra.mxu0 0.0
    %1691 = vmatprep.mubr.f32.mxu0 0.0
    %1692 = vmatmul.mubr.f32.gmra.mrb[0].mxu0 %v1620
    %v1693 = vpop.f32.mrb[0].mxu0
    %v1694 = vadd.f32 0.0, %v1693
    %v1695 = vpop.f32.mrb[0].mxu0
    %1696 = vmatprep.mubr.f32.mxu0 0.0
    %1697 = vmatmul.mubr.f32.gmra.mrb[0].mxu0 %v1623
    %v1698 = vpop.f32.mrb[0].mxu0
    %v1699 = vadd.f32 0.0, %v1698
    %v1700 = vpop.f32.mrb[0].mxu0
    %1701 = vdwg.mxu0
    %1704 = vrot.lane.b32.xlu0 %v1694, 16
    %v1705 = vpop.permute.xlu0 %1704
    %1706 = vrot.lane.b32.xlu0 %v1699, 16
    %v1707 = vpop.permute.xlu0 %1706
    %v1710 = vsel %vm803, %v1491, %v1705
    %v1711 = vsel %vm803, %v1496, %v1707
    %v1713 = vsel %vm644, %v1710, 0
    %v1716 = vsel %vm644, %v1711, 0
    %1718 = vmatprep.subr.mxu0 0.0
    %1719 = vmatpush1.msra.mxu0 %v793
    %1720 = vmatprep.subr.mxu0 0.0
    %1721 = vmatpush1.msra.mxu0 %v794
    %1722 = vmatprep.subr.mxu0 0.0
    %1723 = vmatpush1.msra.mxu0 %v795
    %1724 = vmatprep.subr.mxu0 0.0
    %1725 = vmatpush1.msra.mxu0 %v796
    %1726 = vmatprep.subr.mxu0 0.0
    %1727 = vmatpush1.msra.mxu0 0.0
    %1728 = vmatprep.subr.mxu0 0.0
    %1729 = vmatpush1.msra.mxu0 0.0
    %1730 = vmatprep.subr.mxu0 0.0
    %1731 = vmatpush1.msra.mxu0 0.0
    %1732 = vmatprep.subr.mxu0 0.0
    %1733 = vmatpush1.msra.mxu0 0.0
    %1734 = vmatprep.subr.mxu0 0.0
    %1735 = vmatpush1.msra.mxu0 0.0
    %1736 = vmatprep.subr.mxu0 0.0
    %1737 = vmatpush1.msra.mxu0 0.0
    %1738 = vmatprep.subr.mxu0 0.0
    %1739 = vmatpush1.msra.mxu0 0.0
    %1740 = vmatprep.subr.mxu0 0.0
    %1741 = vmatpush1.msra.mxu0 0.0
    %1742 = vmatprep.subr.mxu0 0.0
    %1743 = vmatpush1.msra.mxu0 0.0
    %1744 = vmatprep.subr.mxu0 0.0
    %1745 = vmatpush1.msra.mxu0 0.0
    %1746 = vmatprep.subr.mxu0 0.0
    %1747 = vmatpush1.msra.mxu0 0.0
    %1748 = vmatprep.subr.mxu0 0.0
    %1749 = vmatpush1.msra.mxu0 0.0
    %1750 = vmatprep.subr.mxu0 0.0
    %1751 = vmatpush1.msra.mxu0 0.0
    %1752 = vmatprep.subr.mxu0 0.0
    %1753 = vmatpush1.msra.mxu0 0.0
    %1754 = vmatprep.subr.mxu0 0.0
    %1755 = vmatpush1.msra.mxu0 0.0
    %1756 = vmatprep.subr.mxu0 0.0
    %1757 = vmatpush1.msra.mxu0 0.0
    %1758 = vmatprep.subr.mxu0 0.0
    %1759 = vmatpush1.msra.mxu0 0.0
    %1760 = vmatprep.subr.mxu0 0.0
    %1761 = vmatpush1.msra.mxu0 0.0
    %1762 = vmatprep.subr.mxu0 0.0
    %1763 = vmatpush1.msra.mxu0 0.0
    %1764 = vmatprep.subr.mxu0 0.0
    %1765 = vmatpush1.msra.mxu0 0.0
    %1766 = vmatprep.subr.mxu0 0.0
    %1767 = vmatpush1.msra.mxu0 0.0
    %1768 = vmatprep.subr.mxu0 0.0
    %1769 = vmatpush1.msra.mxu0 0.0
    %1770 = vmatprep.subr.mxu0 0.0
    %1771 = vmatpush1.msra.mxu0 0.0
    %1772 = vmatprep.subr.mxu0 0.0
    %1773 = vmatpush1.msra.mxu0 0.0
    %1774 = vmatprep.subr.mxu0 0.0
    %1775 = vmatpush1.msra.mxu0 0.0
    %1776 = vmatprep.subr.mxu0 0.0
    %1777 = vmatpush1.msra.mxu0 0.0
    %1778 = vmatprep.subr.mxu0 0.0
    %1779 = vmatpush1.msra.mxu0 0.0
    %1780 = vmatprep.subr.mxu0 0.0
    %1781 = vmatpush1.msra.mxu0 0.0
    %1782 = vmatprep.mubr.f32.mxu0 0.0
    %1783 = vmatmul.mubr.f32.gmra.mrb[0].mxu0 %v1713
    %v1784 = vpop.f32.mrb[0].mxu0
    %v1785 = vadd.f32 0.0, %v1784
    %v1786 = vpop.f32.mrb[0].mxu0
    %1787 = vmatprep.mubr.f32.mxu0 0.0
    %1788 = vmatmul.mubr.f32.gmra.mrb[0].mxu0 %v1716
    %v1789 = vpop.f32.mrb[0].mxu0
    %v1790 = vadd.f32 0.0, %v1789
    %v1791 = vpop.f32.mrb[0].mxu0
    %1792 = vdwg.mxu0
    %v1795 = vrot.slane %v1785, 7
    %v1796 = vrot.slane %v1790, 7
    %v1797 = vsel %vm614, %v1795, %v1796
    %v1800 = vsel %vm614, %v1292, %v1795
    %v1801 = vadd.f32 %v621, %v1287
    %v1802 = vadd.f32 %v642, %v1800
    %v1803 = vadd.f32 %v639, %v1797
    %v1804 = vsel %vm644, %v1801, 0.0
    %1805 = vadd.xlane.f32.xlu0 %v1804
    %v1806 = vpop.xlane.xlu0 %1805
    %v1807 = vsel %vm644, %v1802, 0.0
    %1808 = vadd.xlane.f32.xlu0 %v1807
    %v1809 = vpop.xlane.xlu0 %1808
    %v1810 = vsel %vm651, %v1803, 0.0
    %1811 = vadd.xlane.f32.xlu0 %v1810
    %v1812 = vpop.xlane.xlu0 %1811
    %v1813 = vmul.f32 %v1806, %v655
    %v1814 = vmul.f32 %v1809, %v655
    %v1815 = vmul.f32 %v1812, %v655
    %v1816 = vsub.f32 %v1801, %v1813
    %v1817 = vsub.f32 %v1802, %v1814
    %v1818 = vsub.f32 %v1803, %v1815
    %v1819 = vmul.f32 %v1816, %v1816
    %v1820 = vmul.f32 %v1817, %v1817
    %v1821 = vmul.f32 %v1818, %v1818
    %v1822 = vsel %vm644, %v1819, 0.0
    %1823 = vadd.xlane.f32.xlu0 %v1822
    %v1824 = vpop.xlane.xlu0 %1823
    %v1825 = vsel %vm644, %v1820, 0.0
    %1826 = vadd.xlane.f32.xlu0 %v1825
    %v1827 = vpop.xlane.xlu0 %1826
    %v1828 = vsel %vm651, %v1821, 0.0
    %1829 = vadd.xlane.f32.xlu0 %v1828
    %v1830 = vpop.xlane.xlu0 %1829
    %v1831 = vmul.f32 %v1824, %v655
    %v1832 = vmul.f32 %v1827, %v655
    %v1833 = vmul.f32 %v1830, %v655
    %v1834 = vadd.f32 %v1831, 1e-05
    %v1835 = vadd.f32 %v1832, 1e-05
    %v1836 = vadd.f32 %v1833, 1e-05
    %v1837 = vrsqrt.pop %v1834
    %v1838 = vrsqrt.pop %v1835
    %v1839 = vrsqrt.pop %v1836
    %v1840 = vmul.f32 %v1816, %v1837
    %v1841 = vmul.f32 %v1817, %v1838
    %v1842 = vmul.f32 %v1818, %v1839
    %v1843 = vlaneseq
    %v1844 = vshrl.u32 %v1843, 7
    %v1845 = vsub.s32 2, %v1844
    %v1846 = vrot.slane %v643, %v1845
    %v1847 = vmul.f32 %v1840, %v1846
    %v1848 = vmul.f32 %v1841, %v1846
    %v1849 = vmul.f32 %v1842, %v1846
    %v1850 = vlaneseq
    %v1851 = vshrl.u32 %v1850, 7
    %v1852 = vsub.s32 3, %v1851
    %v1853 = vrot.slane %v643, %v1852
    %v1854 = vadd.f32 %v1847, %v1853
    %v1855 = vadd.f32 %v1848, %v1853
    %v1856 = vadd.f32 %v1849, %v1853
    %v1857 = vld [vmem:[%s10] sm:$0xff]
    %v1858 = vld [vmem:[%s10 + $0x8] sm:$0xff]
    %v1859 = vld [vmem:[%s10 + $0x10] sm:$0xff]
    %v1860 = vld [vmem:[%s10 + $0x18] sm:$0xff]
    %v1861 = vld [vmem:[%s11] sm:$0x1]
    %v1863 = vlaneseq
    %v1864 = vshrl.u32 %v1863, 7
    %v1865 = vsub.s32 0, %v1864
    %v1866 = vrot.slane %v1861, %v1865
    %v1869 = vsel %vm644, %v1854, 0
    %v1872 = vsel %vm644, %v1855, 0
    %v1875 = vsel %vm644, %v1856, 0
    %1877 = vmatprep.subr.mxu0 0.0
    %1878 = vmatpush1.msra.mxu0 %v1857
    %1879 = vmatprep.subr.mxu0 0.0
    %1880 = vmatpush1.msra.mxu0 %v1858
    %1881 = vmatprep.subr.mxu0 0.0
    %1882 = vmatpush1.msra.mxu0 %v1859
    %1883 = vmatprep.subr.mxu0 0.0
    %1884 = vmatpush1.msra.mxu0 %v1860
    %1885 = vmatprep.subr.mxu0 0.0
    %1886 = vmatpush1.msra.mxu0 0.0
    %1887 = vmatprep.subr.mxu0 0.0
    %1888 = vmatpush1.msra.mxu0 0.0
    %1889 = vmatprep.subr.mxu0 0.0
    %1890 = vmatpush1.msra.mxu0 0.0
    %1891 = vmatprep.subr.mxu0 0.0
    %1892 = vmatpush1.msra.mxu0 0.0
    %1893 = vmatprep.subr.mxu0 0.0
    %1894 = vmatpush1.msra.mxu0 0.0
    %1895 = vmatprep.subr.mxu0 0.0
    %1896 = vmatpush1.msra.mxu0 0.0
    %1897 = vmatprep.subr.mxu0 0.0
    %1898 = vmatpush1.msra.mxu0 0.0
    %1899 = vmatprep.subr.mxu0 0.0
    %1900 = vmatpush1.msra.mxu0 0.0
    %1901 = vmatprep.subr.mxu0 0.0
    %1902 = vmatpush1.msra.mxu0 0.0
    %1903 = vmatprep.subr.mxu0 0.0
    %1904 = vmatpush1.msra.mxu0 0.0
    %1905 = vmatprep.subr.mxu0 0.0
    %1906 = vmatpush1.msra.mxu0 0.0
    %1907 = vmatprep.subr.mxu0 0.0
    %1908 = vmatpush1.msra.mxu0 0.0
    %1909 = vmatprep.subr.mxu0 0.0
    %1910 = vmatpush1.msra.mxu0 0.0
    %1911 = vmatprep.subr.mxu0 0.0
    %1912 = vmatpush1.msra.mxu0 0.0
    %1913 = vmatprep.subr.mxu0 0.0
    %1914 = vmatpush1.msra.mxu0 0.0
    %1915 = vmatprep.subr.mxu0 0.0
    %1916 = vmatpush1.msra.mxu0 0.0
    %1917 = vmatprep.subr.mxu0 0.0
    %1918 = vmatpush1.msra.mxu0 0.0
    %1919 = vmatprep.subr.mxu0 0.0
    %1920 = vmatpush1.msra.mxu0 0.0
    %1921 = vmatprep.subr.mxu0 0.0
    %1922 = vmatpush1.msra.mxu0 0.0
    %1923 = vmatprep.subr.mxu0 0.0
    %1924 = vmatpush1.msra.mxu0 0.0
    %1925 = vmatprep.subr.mxu0 0.0
    %1926 = vmatpush1.msra.mxu0 0.0
    %1927 = vmatprep.subr.mxu0 0.0
    %1928 = vmatpush1.msra.mxu0 0.0
    %1929 = vmatprep.subr.mxu0 0.0
    %1930 = vmatpush1.msra.mxu0 0.0
    %1931 = vmatprep.subr.mxu0 0.0
    %1932 = vmatpush1.msra.mxu0 0.0
    %1933 = vmatprep.subr.mxu0 0.0
    %1934 = vmatpush1.msra.mxu0 0.0
    %1935 = vmatprep.subr.mxu0 0.0
    %1936 = vmatpush1.msra.mxu0 0.0
    %1937 = vmatprep.subr.mxu0 0.0
    %1938 = vmatpush1.msra.mxu0 0.0
    %1939 = vmatprep.subr.mxu0 0.0
    %1940 = vmatpush1.msra.mxu0 0.0
    %1941 = vmatprep.mubr.f32.mxu0 0.0
    %1942 = vmatmul.mubr.f32.gmra.mrb[0].mxu0 %v1869
    %v1943 = vpop.f32.mrb[0].mxu0
    %v1944 = vadd.f32 %v1866, %v1943
    %v1945 = vpop.f32.mrb[0].mxu0
    %1946 = vmatprep.mubr.f32.mxu0 0.0
    %1947 = vmatmul.mubr.f32.gmra.mrb[0].mxu0 %v1872
    %v1948 = vpop.f32.mrb[0].mxu0
    %v1949 = vadd.f32 %v1866, %v1948
    %v1950 = vpop.f32.mrb[0].mxu0
    %1951 = vmatprep.mubr.f32.mxu0 0.0
    %1952 = vmatmul.mubr.f32.gmra.mrb[0].mxu0 %v1875
    %v1953 = vpop.f32.mrb[0].mxu0
    %v1954 = vadd.f32 %v1866, %v1953
    %v1955 = vpop.f32.mrb[0].mxu0
    %1956 = vdwg.mxu0
    %v1957 = vmul.f32 %v1944, 0.5
    %v1958 = vmul.f32 %v1949, 0.5
    %v1959 = vmul.f32 %v1954, 0.5
    %v1960 = vmul.f32 %v1944, 0.044715
    %v1961 = vmul.f32 %v1949, 0.044715
    %v1962 = vmul.f32 %v1954, 0.044715
    %v1963 = vmul.f32 %v1960, %v1944
    %v1964 = vmul.f32 %v1961, %v1949
    %v1965 = vmul.f32 %v1962, %v1954
    %v1966 = vmul.f32 %v1963, %v1944
    %v1967 = vmul.f32 %v1964, %v1949
    %v1968 = vmul.f32 %v1965, %v1954
    %v1969 = vadd.f32 %v1944, %v1966
    %v1970 = vadd.f32 %v1949, %v1967
    %v1971 = vadd.f32 %v1954, %v1968
    %v1972 = vmul.f32 %v1969, 0.7978846
    %v1973 = vmul.f32 %v1970, 0.7978846
    %v1974 = vmul.f32 %v1971, 0.7978846
    %v1975 = vtanh.pop %v1972
    %v1976 = vtanh.pop %v1973
    %v1977 = vtanh.pop %v1974
    %v1978 = vadd.f32 %v1975, 1.0
    %v1979 = vadd.f32 %v1976, 1.0
    %v1980 = vadd.f32 %v1977, 1.0
    %v1981 = vmul.f32 %v1957, %v1978
    %v1982 = vmul.f32 %v1958, %v1979
    %v1983 = vmul.f32 %v1959, %v1980
    %v1984 = vld [vmem:[%s12] sm:$0xff]
    %v1985 = vld [vmem:[%s12 + $0x8] sm:$0xff]
    %v1986 = vld [vmem:[%s12 + $0x10] sm:$0xff]
    %v1987 = vld [vmem:[%s12 + $0x18] sm:$0xff]
    %v1988 = vld [vmem:[%s12 + $0x20] sm:$0xff]
    %v1989 = vld [vmem:[%s12 + $0x28] sm:$0xff]
    %v1990 = vld [vmem:[%s12 + $0x30] sm:$0xff]
    %v1991 = vld [vmem:[%s12 + $0x38] sm:$0xff]
    %v1992 = vlaneseq
    %v1993 = vshrl.u32 %v1992, 7
    %v1994 = vsub.s32 4, %v1993
    %v1995 = vrot.slane %v643, %v1994
    %v1997 = vsel %vm400, %v1981, 0
    %v2000 = vsel %vm400, %v1982, 0
    %v2003 = vsel %vm400, %v1983, 0
    %2005 = vmatprep.subr.mxu0 0.0
    %2006 = vmatpush1.msra.mxu0 %v1984
    %2007 = vmatprep.subr.mxu0 0.0
    %2008 = vmatpush1.msra.mxu0 %v1985
    %2009 = vmatprep.subr.mxu0 0.0
    %2010 = vmatpush1.msra.mxu0 %v1986
    %2011 = vmatprep.subr.mxu0 0.0
    %2012 = vmatpush1.msra.mxu0 %v1987
    %2013 = vmatprep.subr.mxu0 0.0
    %2014 = vmatpush1.msra.mxu0 %v1988
    %2015 = vmatprep.subr.mxu0 0.0
    %2016 = vmatpush1.msra.mxu0 %v1989
    %2017 = vmatprep.subr.mxu0 0.0
    %2018 = vmatpush1.msra.mxu0 %v1990
    %2019 = vmatprep.subr.mxu0 0.0
    %2020 = vmatpush1.msra.mxu0 %v1991
    %2021 = vmatprep.subr.mxu0 0.0
    %2022 = vmatpush1.msra.mxu0 0.0
    %2023 = vmatprep.subr.mxu0 0.0
    %2024 = vmatpush1.msra.mxu0 0.0
    %2025 = vmatprep.subr.mxu0 0.0
    %2026 = vmatpush1.msra.mxu0 0.0
    %2027 = vmatprep.subr.mxu0 0.0
    %2028 = vmatpush1.msra.mxu0 0.0
    %2029 = vmatprep.subr.mxu0 0.0
    %2030 = vmatpush1.msra.mxu0 0.0
    %2031 = vmatprep.subr.mxu0 0.0
    %2032 = vmatpush1.msra.mxu0 0.0
    %2033 = vmatprep.subr.mxu0 0.0
    %2034 = vmatpush1.msra.mxu0 0.0
    %2035 = vmatprep.subr.mxu0 0.0
    %2036 = vmatpush1.msra.mxu0 0.0
    %2037 = vmatprep.subr.mxu0 0.0
    %2038 = vmatpush1.msra.mxu0 0.0
    %2039 = vmatprep.subr.mxu0 0.0
    %2040 = vmatpush1.msra.mxu0 0.0
    %2041 = vmatprep.subr.mxu0 0.0
    %2042 = vmatpush1.msra.mxu0 0.0
    %2043 = vmatprep.subr.mxu0 0.0
    %2044 = vmatpush1.msra.mxu0 0.0
    %2045 = vmatprep.subr.mxu0 0.0
    %2046 = vmatpush1.msra.mxu0 0.0
    %2047 = vmatprep.subr.mxu0 0.0
    %2048 = vmatpush1.msra.mxu0 0.0
    %2049 = vmatprep.subr.mxu0 0.0
    %2050 = vmatpush1.msra.mxu0 0.0
    %2051 = vmatprep.subr.mxu0 0.0
    %2052 = vmatpush1.msra.mxu0 0.0
    %2053 = vmatprep.subr.mxu0 0.0
    %2054 = vmatpush1.msra.mxu0 0.0
    %2055 = vmatprep.subr.mxu0 0.0
    %2056 = vmatpush1.msra.mxu0 0.0
    %2057 = vmatprep.subr.mxu0 0.0
    %2058 = vmatpush1.msra.mxu0 0.0
    %2059 = vmatprep.subr.mxu0 0.0
    %2060 = vmatpush1.msra.mxu0 0.0
    %2061 = vmatprep.subr.mxu0 0.0
    %2062 = vmatpush1.msra.mxu0 0.0
    %2063 = vmatprep.subr.mxu0 0.0
    %2064 = vmatpush1.msra.mxu0 0.0
    %2065 = vmatprep.subr.mxu0 0.0
    %2066 = vmatpush1.msra.mxu0 0.0
    %2067 = vmatprep.subr.mxu0 0.0
    %2068 = vmatpush1.msra.mxu0 0.0
    %2069 = vmatprep.mubr.f32.mxu0 0.0
    %2070 = vmatmul.mubr.f32.gmra.mrb[0].mxu0 %v1997
    %v2071 = vpop.f32.mrb[0].mxu0
    %v2072 = vadd.f32 %v1995, %v2071
    %v2073 = vpop.f32.mrb[0].mxu0
    %2074 = vmatprep.mubr.f32.mxu0 0.0
    %2075 = vmatmul.mubr.f32.gmra.mrb[0].mxu0 %v2000
    %v2076 = vpop.f32.mrb[0].mxu0
    %v2077 = vadd.f32 %v1995, %v2076
    %v2078 = vpop.f32.mrb[0].mxu0
    %2079 = vmatprep.mubr.f32.mxu0 0.0
    %2080 = vmatmul.mubr.f32.gmra.mrb[0].mxu0 %v2003
    %v2081 = vpop.f32.mrb[0].mxu0
    %v2082 = vadd.f32 %v1995, %v2081
    %v2083 = vpop.f32.mrb[0].mxu0
    %2084 = vdwg.mxu0
    %v2085 = vadd.f32 %v2072, %v1801
    %v2086 = vadd.f32 %v2077, %v1802
    %v2087 = vadd.f32 %v2082, %v1803
    %s2088 = sld [smem:[#allocation2]]
    %v2089 = vstv %s2088
    %v2090 = vmul.f32 %v2089, %v607
    %s2091 = sld [smem:[#allocation2 + $0x1]]
    %v2092 = vstv %s2091
    %v2093 = vadd.f32 %v2090, %v2092
    %v2094 = vmax.f32 %v2093, 0.0
    %2096 = vrot.lane.b32.xlu0 %v2094, 1
    %v2097 = vpop.permute.xlu0 %2096
    %v2099 = vsel %vm72, 0.0, %v2097
    %2100 = vrot.lane.b32.xlu0 %v2094, 97
    %v2101 = vpop.permute.xlu0 %2100
    %v2103 = vsel %vm72, 0.0, %v2101
    %2105 = vrot.lane.b32.xlu0 %v2103, 32
    %v2106 = vpop.permute.xlu0 %2105
    %v2108 = vsel %vm644, %v2099, %v2106
    %2109 = vrot.lane.b32.xlu0 %v2094, 127
    %v2110 = vpop.permute.xlu0 %2109
    %vm2112 = vcmask 252928
    %v2113 = vsel %vm2112, %v2110, 0.0
    %2114 = vrot.lane.b32.xlu0 %v2094, 95
    %v2115 = vpop.permute.xlu0 %2114
    %v2117 = vsel %vm2112, %v2115, 0.0
    %2119 = vrot.lane.b32.xlu0 %v2117, 32
    %v2120 = vpop.permute.xlu0 %2119
    %v2122 = vsel %vm644, %v2113, %v2120
    %v2124 = vrot.slane %v2108, 7
    %v2126 = vsel %vm614, 0.0, %v2124
    %s2127 = sld [smem:[#allocation2 + $0x2]]
    %v2128 = vstv %s2127
    %v2129 = vmul.f32 %v2128, %v2126
    %v2130 = vadd.f32 %v2129, 0.0
    %s2131 = sld [smem:[#allocation2 + $0x5]]
    %v2132 = vstv %s2131
    %v2133 = vmul.f32 %v2132, %v2108
    %v2134 = vadd.f32 %v2130, %v2133
    %v2135 = vrot.slane %v2108, 1
    %v2137 = vsel %vm1296, %v2135, 0.0
    %s2138 = sld [smem:[#allocation2 + $0x8]]
    %v2139 = vstv %s2138
    %v2140 = vmul.f32 %v2139, %v2137
    %v2141 = vadd.f32 %v2134, %v2140
    %v2142 = vrot.slane %v2094, 7
    %v2144 = vsel %vm614, 0.0, %v2142
    %s2145 = sld [smem:[#allocation2 + $0x3]]
    %v2146 = vstv %s2145
    %v2147 = vmul.f32 %v2146, %v2144
    %v2148 = vadd.f32 %v2141, %v2147
    %s2149 = sld [smem:[#allocation2 + $0x6]]
    %v2150 = vstv %s2149
    %v2151 = vmul.f32 %v2150, %v2094
    %v2152 = vadd.f32 %v2148, %v2151
    %v2153 = vrot.slane %v2094, 1
    %v2155 = vsel %vm1296, %v2153, 0.0
    %s2156 = sld [smem:[#allocation2 + $0x9]]
    %v2157 = vstv %s2156
    %v2158 = vmul.f32 %v2157, %v2155
    %v2159 = vadd.f32 %v2152, %v2158
    %v2161 = vrot.slane %v2122, 7
    %v2163 = vsel %vm614, 0.0, %v2161
    %s2164 = sld [smem:[#allocation2 + $0x4]]
    %v2165 = vstv %s2164
    %v2166 = vmul.f32 %v2165, %v2163
    %v2167 = vadd.f32 %v2159, %v2166
    %s2168 = sld [smem:[#allocation2 + $0x7]]
    %v2169 = vstv %s2168
    %v2170 = vmul.f32 %v2169, %v2122
    %v2171 = vadd.f32 %v2167, %v2170
    %v2172 = vrot.slane %v2122, 1
    %v2174 = vsel %vm1296, %v2172, 0.0
    %s2175 = sld [smem:[#allocation2 + $0xa]]
    %v2176 = vstv %s2175
    %v2177 = vmul.f32 %v2176, %v2174
    %v2178 = vadd.f32 %v2171, %v2177
    %s2179 = sld [smem:[#allocation2 + $0xb]]
    %v2180 = vstv %s2179
    %v2181 = vadd.f32 %v2178, %v2180
    %v2182 = vmax.f32 %v2181, 0.0
    %s2183 = sld [smem:[#allocation2 + $0xc]]
    %v2184 = vstv %s2183
    %v2185 = vmul.f32 %v2184, %v607
    %s2186 = sld [smem:[#allocation2 + $0xd]]
    %v2187 = vstv %s2186
    %v2188 = vadd.f32 %v2185, %v2187
    %v2189 = vadd.f32 %v2182, %v2188
    %v2190 = vmax.f32 %v2189, 0.0
    %v2191 = vld [vmem:[%s13] sm:$0xff]
    %v2192 = vld [vmem:[%s14] sm:$0xff]
    %2194 = vset.pattern.permute.xlu0 0
    %2195 = vperm.xlu0 %2194, %v2192
    %v2196 = vpop.permute.xlu0 %2195
    %vm2198 = vcmask 64512
    %v2200 = vsel %vm2198, %v2191, 0
    %2202 = vmatprep.subr.mxu0 0.0
    %2203 = vmatpush1.msra.mxu0 %v2190
    %2204 = vmatprep.subr.mxu0 0.0
    %2205 = vmatpush1.msra.mxu0 0.0
    %2206 = vmatprep.subr.mxu0 0.0
    %2207 = vmatpush1.msra.mxu0 0.0
    %2208 = vmatprep.subr.mxu0 0.0
    %2209 = vmatpush1.msra.mxu0 0.0
    %2210 = vmatprep.subr.mxu0 0.0
    %2211 = vmatpush1.msra.mxu0 0.0
    %2212 = vmatprep.subr.mxu0 0.0
    %2213 = vmatpush1.msra.mxu0 0.0
    %2214 = vmatprep.subr.mxu0 0.0
    %2215 = vmatpush1.msra.mxu0 0.0
    %2216 = vmatprep.subr.mxu0 0.0
    %2217 = vmatpush1.msra.mxu0 0.0
    %2218 = vmatprep.subr.mxu0 0.0
    %2219 = vmatpush1.msra.mxu0 0.0
    %2220 = vmatprep.subr.mxu0 0.0
    %2221 = vmatpush1.msra.mxu0 0.0
    %2222 = vmatprep.subr.mxu0 0.0
    %2223 = vmatpush1.msra.mxu0 0.0
    %2224 = vmatprep.subr.mxu0 0.0
    %2225 = vmatpush1.msra.mxu0 0.0
    %2226 = vmatprep.subr.mxu0 0.0
    %2227 = vmatpush1.msra.mxu0 0.0
    %2228 = vmatprep.subr.mxu0 0.0
    %2229 = vmatpush1.msra.mxu0 0.0
    %2230 = vmatprep.subr.mxu0 0.0
    %2231 = vmatpush1.msra.mxu0 0.0
    %2232 = vmatprep.subr.mxu0 0.0
    %2233 = vmatpush1.msra.mxu0 0.0
    %2234 = vmatprep.subr.mxu0 0.0
    %2235 = vmatpush1.msra.mxu0 0.0
    %2236 = vmatprep.subr.mxu0 0.0
    %2237 = vmatpush1.msra.mxu0 0.0
    %2238 = vmatprep.subr.mxu0 0.0
    %2239 = vmatpush1.msra.mxu0 0.0
    %2240 = vmatprep.subr.mxu0 0.0
    %2241 = vmatpush1.msra.mxu0 0.0
    %2242 = vmatprep.subr.mxu0 0.0
    %2243 = vmatpush1.msra.mxu0 0.0
    %2244 = vmatprep.subr.mxu0 0.0
    %2245 = vmatpush1.msra.mxu0 0.0
    %2246 = vmatprep.subr.mxu0 0.0
    %2247 = vmatpush1.msra.mxu0 0.0
    %2248 = vmatprep.subr.mxu0 0.0
    %2249 = vmatpush1.msra.mxu0 0.0
    %2250 = vmatprep.subr.mxu0 0.0
    %2251 = vmatpush1.msra.mxu0 0.0
    %2252 = vmatprep.subr.mxu0 0.0
    %2253 = vmatpush1.msra.mxu0 0.0
    %2254 = vmatprep.subr.mxu0 0.0
    %2255 = vmatpush1.msra.mxu0 0.0
    %2256 = vmatprep.subr.mxu0 0.0
    %2257 = vmatpush1.msra.mxu0 0.0
    %2258 = vmatprep.subr.mxu0 0.0
    %2259 = vmatpush1.msra.mxu0 0.0
    %2260 = vmatprep.subr.mxu0 0.0
    %2261 = vmatpush1.msra.mxu0 0.0
    %2262 = vmatprep.subr.mxu0 0.0
    %2263 = vmatpush1.msra.mxu0 0.0
    %2264 = vmatprep.subr.mxu0 0.0
    %2265 = vmatpush1.msra.mxu0 0.0
    %2266 = vmatprep.mubr.f32.mxu0 0.0
    %2267 = vmatmul.mubr.f32.gmra.mrb[0].mxu0 %v2200
    %v2268 = vpop.f32.mrb[0].mxu0
    %v2269 = vadd.f32 %v2196, %v2268
    %v2270 = vpop.f32.mrb[0].mxu0
    %2271 = vdwg.mxu0
    %v2273 = vrot.slane %v2269, 7
    %v2275 = vrot.slane %v2269, 6
    %2276 = vrot.lane.b32.xlu0 %v2275, 96
    %v2277 = vpop.permute.xlu0 %2276
    %v2279 = vsel %vm614, 0.0, %v2273
    %v2280 = vsel %vm614, %v2273, 0.0
    %vm2281 = vcmask 1041408
    %v2282 = vsel %vm2281, %v2280, %v2277
    %v2283 = vadd.f32 %v2085, %v2279
    %v2284 = vadd.f32 %v2086, %v2282
    %v2285 = vadd.f32 %v2087, %v2277
    %s2286 = scalar_lea.vmem %s9, 8
    %v2287 = vld [vmem:[%s2286] sm:$0x1f]
    %v2288 = vsel %vm644, %v2283, 0.0
    %2289 = vadd.xlane.f32.xlu0 %v2288
    %v2290 = vpop.xlane.xlu0 %2289
    %v2291 = vsel %vm644, %v2284, 0.0
    %2292 = vadd.xlane.f32.xlu0 %v2291
    %v2293 = vpop.xlane.xlu0 %2292
    %v2294 = vsel %vm651, %v2285, 0.0
    %2295 = vadd.xlane.f32.xlu0 %v2294
    %v2296 = vpop.xlane.xlu0 %2295
    %v2297 = vmul.f32 %v2290, %v655
    %v2298 = vmul.f32 %v2293, %v655
    %v2299 = vmul.f32 %v2296, %v655
    %v2300 = vsub.f32 %v2283, %v2297
    %v2301 = vsub.f32 %v2284, %v2298
    %v2302 = vsub.f32 %v2285, %v2299
    %v2303 = vmul.f32 %v2300, %v2300
    %v2304 = vmul.f32 %v2301, %v2301
    %v2305 = vmul.f32 %v2302, %v2302
    %v2306 = vsel %vm644, %v2303, 0.0
    %2307 = vadd.xlane.f32.xlu0 %v2306
    %v2308 = vpop.xlane.xlu0 %2307
    %v2309 = vsel %vm644, %v2304, 0.0
    %2310 = vadd.xlane.f32.xlu0 %v2309
    %v2311 = vpop.xlane.xlu0 %2310
    %v2312 = vsel %vm651, %v2305, 0.0
    %2313 = vadd.xlane.f32.xlu0 %v2312
    %v2314 = vpop.xlane.xlu0 %2313
    %v2315 = vmul.f32 %v2308, %v655
    %v2316 = vmul.f32 %v2311, %v655
    %v2317 = vmul.f32 %v2314, %v655
    %v2318 = vadd.f32 %v2315, 1e-05
    %v2319 = vadd.f32 %v2316, 1e-05
    %v2320 = vadd.f32 %v2317, 1e-05
    %v2321 = vrsqrt.pop %v2318
    %v2322 = vrsqrt.pop %v2319
    %v2323 = vrsqrt.pop %v2320
    %v2324 = vmul.f32 %v2300, %v2321
    %v2325 = vmul.f32 %v2301, %v2322
    %v2326 = vmul.f32 %v2302, %v2323
    %v2327 = vlaneseq
    %v2328 = vshrl.u32 %v2327, 7
    %v2329 = vsub.s32 0, %v2328
    %v2330 = vrot.slane %v2287, %v2329
    %v2331 = vmul.f32 %v2324, %v2330
    %v2332 = vmul.f32 %v2325, %v2330
    %v2333 = vmul.f32 %v2326, %v2330
    %v2334 = vlaneseq
    %v2335 = vshrl.u32 %v2334, 7
    %v2336 = vsub.s32 1, %v2335
    %v2337 = vrot.slane %v2287, %v2336
    %v2338 = vadd.f32 %v2331, %v2337
    %v2339 = vadd.f32 %v2332, %v2337
    %v2340 = vadd.f32 %v2333, %v2337
    %s2341 = scalar_lea.vmem %s7, 32
    %v2342 = vld [vmem:[%s2341] sm:$0xff]
    %v2343 = vld [vmem:[%s2341 + $0x8] sm:$0xff]
    %v2344 = vld [vmem:[%s2341 + $0x10] sm:$0xff]
    %v2345 = vld [vmem:[%s2341 + $0x18] sm:$0xff]
    %v2347 = vsel %vm644, %v2338, 0
    %v2350 = vsel %vm644, %v2339, 0
    %v2353 = vsel %vm644, %v2340, 0
    %2355 = vmatprep.subr.mxu0 0.0
    %2356 = vmatpush1.msra.mxu0 %v2342
    %2357 = vmatprep.subr.mxu0 0.0
    %2358 = vmatpush1.msra.mxu0 %v2343
    %2359 = vmatprep.subr.mxu0 0.0
    %2360 = vmatpush1.msra.mxu0 %v2344
    %2361 = vmatprep.subr.mxu0 0.0
    %2362 = vmatpush1.msra.mxu0 %v2345
    %2363 = vmatprep.subr.mxu0 0.0
    %2364 = vmatpush1.msra.mxu0 0.0
    %2365 = vmatprep.subr.mxu0 0.0
    %2366 = vmatpush1.msra.mxu0 0.0
    %2367 = vmatprep.subr.mxu0 0.0
    %2368 = vmatpush1.msra.mxu0 0.0
    %2369 = vmatprep.subr.mxu0 0.0
    %2370 = vmatpush1.msra.mxu0 0.0
    %2371 = vmatprep.subr.mxu0 0.0
    %2372 = vmatpush1.msra.mxu0 0.0
    %2373 = vmatprep.subr.mxu0 0.0
    %2374 = vmatpush1.msra.mxu0 0.0
    %2375 = vmatprep.subr.mxu0 0.0
    %2376 = vmatpush1.msra.mxu0 0.0
    %2377 = vmatprep.subr.mxu0 0.0
    %2378 = vmatpush1.msra.mxu0 0.0
    %2379 = vmatprep.subr.mxu0 0.0
    %2380 = vmatpush1.msra.mxu0 0.0
    %2381 = vmatprep.subr.mxu0 0.0
    %2382 = vmatpush1.msra.mxu0 0.0
    %2383 = vmatprep.subr.mxu0 0.0
    %2384 = vmatpush1.msra.mxu0 0.0
    %2385 = vmatprep.subr.mxu0 0.0
    %2386 = vmatpush1.msra.mxu0 0.0
    %2387 = vmatprep.subr.mxu0 0.0
    %2388 = vmatpush1.msra.mxu0 0.0
    %2389 = vmatprep.subr.mxu0 0.0
    %2390 = vmatpush1.msra.mxu0 0.0
    %2391 = vmatprep.subr.mxu0 0.0
    %2392 = vmatpush1.msra.mxu0 0.0
    %2393 = vmatprep.subr.mxu0 0.0
    %2394 = vmatpush1.msra.mxu0 0.0
    %2395 = vmatprep.subr.mxu0 0.0
    %2396 = vmatpush1.msra.mxu0 0.0
    %2397 = vmatprep.subr.mxu0 0.0
    %2398 = vmatpush1.msra.mxu0 0.0
    %2399 = vmatprep.subr.mxu0 0.0
    %2400 = vmatpush1.msra.mxu0 0.0
    %2401 = vmatprep.subr.mxu0 0.0
    %2402 = vmatpush1.msra.mxu0 0.0
    %2403 = vmatprep.subr.mxu0 0.0
    %2404 = vmatpush1.msra.mxu0 0.0
    %2405 = vmatprep.subr.mxu0 0.0
    %2406 = vmatpush1.msra.mxu0 0.0
    %2407 = vmatprep.subr.mxu0 0.0
    %2408 = vmatpush1.msra.mxu0 0.0
    %2409 = vmatprep.subr.mxu0 0.0
    %2410 = vmatpush1.msra.mxu0 0.0
    %2411 = vmatprep.subr.mxu0 0.0
    %2412 = vmatpush1.msra.mxu0 0.0
    %2413 = vmatprep.subr.mxu0 0.0
    %2414 = vmatpush1.msra.mxu0 0.0
    %2415 = vmatprep.subr.mxu0 0.0
    %2416 = vmatpush1.msra.mxu0 0.0
    %2417 = vmatprep.subr.mxu0 0.0
    %2418 = vmatpush1.msra.mxu0 0.0
    %2419 = vmatprep.mubr.f32.mxu0 0.0
    %2420 = vmatmul.mubr.f32.gmra.mrb[0].mxu0 %v2347
    %v2421 = vpop.f32.mrb[0].mxu0
    %v2422 = vadd.f32 0.0, %v2421
    %v2423 = vpop.f32.mrb[0].mxu0
    %2424 = vmatprep.mubr.f32.mxu0 0.0
    %2425 = vmatmul.mubr.f32.gmra.mrb[0].mxu0 %v2350
    %v2426 = vpop.f32.mrb[0].mxu0
    %v2427 = vadd.f32 0.0, %v2426
    %v2428 = vpop.f32.mrb[0].mxu0
    %2429 = vmatprep.mubr.f32.mxu0 0.0
    %2430 = vmatmul.mubr.f32.gmra.mrb[0].mxu0 %v2353
    %v2431 = vpop.f32.mrb[0].mxu0
    %v2432 = vadd.f32 0.0, %v2431
    %v2433 = vpop.f32.mrb[0].mxu0
    %2434 = vdwg.mxu0
    %s2435 = scalar_lea.vmem %s8, 32
    %v2436 = vld [vmem:[%s2435] sm:$0xff]
    %v2437 = vld [vmem:[%s2435 + $0x8] sm:$0xff]
    %v2438 = vld [vmem:[%s2435 + $0x10] sm:$0xff]
    %v2439 = vld [vmem:[%s2435 + $0x18] sm:$0xff]
    %2442 = vrot.lane.b32.xlu0 %v2422, 96
    %v2443 = vpop.permute.xlu0 %2442
    %2444 = vrot.lane.b32.xlu0 %v2427, 96
    %v2445 = vpop.permute.xlu0 %2444
    %v2446 = vsel %vm803, %v2422, 0
    %v2448 = vsel %vm803, %v2427, 0
    %v2450 = vsel %vm803, %v2443, 0
    %v2452 = vsel %vm803, %v2445, 0
    %2454 = vmatprep.subr.mxu0 0.0
    %2455 = vmatpush1.xpose.msra.mxu0 %v2450
    %2456 = vmatprep.subr.mxu0 0.0
    %2457 = vmatpush1.xpose.msra.mxu0 %v2452
    %2458 = vmatprep.subr.mxu0 0.0
    %2459 = vmatpush1.xpose.msra.mxu0 0.0
    %2460 = vmatprep.subr.mxu0 0.0
    %2461 = vmatpush1.xpose.msra.mxu0 0.0
    %2462 = vmatprep.subr.mxu0 0.0
    %2463 = vmatpush1.xpose.msra.mxu0 0.0
    %2464 = vmatprep.subr.mxu0 0.0
    %2465 = vmatpush1.xpose.msra.mxu0 0.0
    %2466 = vmatprep.subr.mxu0 0.0
    %2467 = vmatpush1.xpose.msra.mxu0 0.0
    %2468 = vmatprep.subr.mxu0 0.0
    %2469 = vmatpush1.xpose.msra.mxu0 0.0
    %2470 = vmatprep.subr.mxu0 0.0
    %2471 = vmatpush1.xpose.msra.mxu0 0.0
    %2472 = vmatprep.subr.mxu0 0.0
    %2473 = vmatpush1.xpose.msra.mxu0 0.0
    %2474 = vmatprep.subr.mxu0 0.0
    %2475 = vmatpush1.xpose.msra.mxu0 0.0
    %2476 = vmatprep.subr.mxu0 0.0
    %2477 = vmatpush1.xpose.msra.mxu0 0.0
    %2478 = vmatprep.subr.mxu0 0.0
    %2479 = vmatpush1.xpose.msra.mxu0 0.0
    %2480 = vmatprep.subr.mxu0 0.0
    %2481 = vmatpush1.xpose.msra.mxu0 0.0
    %2482 = vmatprep.subr.mxu0 0.0
    %2483 = vmatpush1.xpose.msra.mxu0 0.0
    %2484 = vmatprep.subr.mxu0 0.0
    %2485 = vmatpush1.xpose.msra.mxu0 0.0
    %2486 = vmatprep.subr.mxu0 0.0
    %2487 = vmatpush1.xpose.msra.mxu0 0.0
    %2488 = vmatprep.subr.mxu0 0.0
    %2489 = vmatpush1.xpose.msra.mxu0 0.0
    %2490 = vmatprep.subr.mxu0 0.0
    %2491 = vmatpush1.xpose.msra.mxu0 0.0
    %2492 = vmatprep.subr.mxu0 0.0
    %2493 = vmatpush1.xpose.msra.mxu0 0.0
    %2494 = vmatprep.subr.mxu0 0.0
    %2495 = vmatpush1.xpose.msra.mxu0 0.0
    %2496 = vmatprep.subr.mxu0 0.0
    %2497 = vmatpush1.xpose.msra.mxu0 0.0
    %2498 = vmatprep.subr.mxu0 0.0
    %2499 = vmatpush1.xpose.msra.mxu0 0.0
    %2500 = vmatprep.subr.mxu0 0.0
    %2501 = vmatpush1.xpose.msra.mxu0 0.0
    %2502 = vmatprep.subr.mxu0 0.0
    %2503 = vmatpush1.xpose.msra.mxu0 0.0
    %2504 = vmatprep.subr.mxu0 0.0
    %2505 = vmatpush1.xpose.msra.mxu0 0.0
    %2506 = vmatprep.subr.mxu0 0.0
    %2507 = vmatpush1.xpose.msra.mxu0 0.0
    %2508 = vmatprep.subr.mxu0 0.0
    %2509 = vmatpush1.xpose.msra.mxu0 0.0
    %2510 = vmatprep.subr.mxu0 0.0
    %2511 = vmatpush1.xpose.msra.mxu0 0.0
    %2512 = vmatprep.subr.mxu0 0.0
    %2513 = vmatpush1.xpose.msra.mxu0 0.0
    %2514 = vmatprep.subr.mxu0 0.0
    %2515 = vmatpush1.xpose.msra.mxu0 0.0
    %2516 = vmatprep.subr.mxu0 0.0
    %2517 = vmatpush1.xpose.msra.mxu0 0.0
    %2518 = vmatprep.mubr.f32.mxu0 0.0
    %2519 = vmatmul.mubr.f32.gmra.mrb[0].mxu0 %v2446
    %v2520 = vpop.f32.mrb[0].mxu0
    %v2521 = vadd.f32 0.0, %v2520
    %v2522 = vpop.f32.mrb[0].mxu0
    %2523 = vmatprep.mubr.f32.mxu0 0.0
    %2524 = vmatmul.mubr.f32.gmra.mrb[0].mxu0 %v2448
    %v2525 = vpop.f32.mrb[0].mxu0
    %v2526 = vadd.f32 0.0, %v2525
    %v2527 = vpop.f32.mrb[0].mxu0
    %2528 = vdwg.mxu0
    %v2529 = vmul.f32 %v2521, 0.25
    %v2530 = vmul.f32 %v2526, 0.25
    %v2531 = vsel %vm889, %v2529, -inf
    %2532 = vmax.xlane.f32.xlu0 %v2531
    %v2533 = vpop.xlane.xlu0 %2532
    %v2534 = vsel %vm893, %v2530, -inf
    %2535 = vmax.xlane.f32.xlu0 %v2534
    %v2536 = vpop.xlane.xlu0 %2535
    %v2537 = vsub.f32 %v2529, %v2533
    %v2538 = vsub.f32 %v2530, %v2536
    %v2539 = vmul.f32 %v2537, 1.442695
    %v2540 = vpow.pop %v2539
    %v2541 = vmul.f32 %v2538, 1.442695
    %v2542 = vpow.pop %v2541
    %v2543 = vsel %vm889, %v2540, 0.0
    %2544 = vadd.xlane.f32.xlu0 %v2543
    %v2545 = vpop.xlane.xlu0 %2544
    %v2546 = vsel %vm893, %v2542, 0.0
    %2547 = vadd.xlane.f32.xlu0 %v2546
    %v2548 = vpop.xlane.xlu0 %2547
    %v2549 = vrcp.pop %v2545
    %v2550 = vmul.f32 %v2540, %v2549
    %v2551 = vrcp.pop %v2548
    %v2552 = vmul.f32 %v2542, %v2551
    %2553 = vrot.lane.b32.xlu0 %v2422, 64
    %v2554 = vpop.permute.xlu0 %2553
    %2555 = vrot.lane.b32.xlu0 %v2427, 64
    %v2556 = vpop.permute.xlu0 %2555
    %v2559 = vsel %vm889, %v2550, 0
    %v2562 = vsel %vm889, %v2552, 0
    %v2564 = vsel %vm614, %v2556, 0
    %2566 = vmatprep.subr.mxu0 0.0
    %2567 = vmatpush1.msra.mxu0 %v2554
    %2568 = vmatprep.subr.mxu0 0.0
    %2569 = vmatpush1.msra.mxu0 %v2564
    %2570 = vmatprep.subr.mxu0 0.0
    %2571 = vmatpush1.msra.mxu0 0.0
    %2572 = vmatprep.subr.mxu0 0.0
    %2573 = vmatpush1.msra.mxu0 0.0
    %2574 = vmatprep.subr.mxu0 0.0
    %2575 = vmatpush1.msra.mxu0 0.0
    %2576 = vmatprep.subr.mxu0 0.0
    %2577 = vmatpush1.msra.mxu0 0.0
    %2578 = vmatprep.subr.mxu0 0.0
    %2579 = vmatpush1.msra.mxu0 0.0
    %2580 = vmatprep.subr.mxu0 0.0
    %2581 = vmatpush1.msra.mxu0 0.0
    %2582 = vmatprep.subr.mxu0 0.0
    %2583 = vmatpush1.msra.mxu0 0.0
    %2584 = vmatprep.subr.mxu0 0.0
    %2585 = vmatpush1.msra.mxu0 0.0
    %2586 = vmatprep.subr.mxu0 0.0
    %2587 = vmatpush1.msra.mxu0 0.0
    %2588 = vmatprep.subr.mxu0 0.0
    %2589 = vmatpush1.msra.mxu0 0.0
    %2590 = vmatprep.subr.mxu0 0.0
    %2591 = vmatpush1.msra.mxu0 0.0
    %2592 = vmatprep.subr.mxu0 0.0
    %2593 = vmatpush1.msra.mxu0 0.0
    %2594 = vmatprep.subr.mxu0 0.0
    %2595 = vmatpush1.msra.mxu0 0.0
    %2596 = vmatprep.subr.mxu0 0.0
    %2597 = vmatpush1.msra.mxu0 0.0
    %2598 = vmatprep.subr.mxu0 0.0
    %2599 = vmatpush1.msra.mxu0 0.0
    %2600 = vmatprep.subr.mxu0 0.0
    %2601 = vmatpush1.msra.mxu0 0.0
    %2602 = vmatprep.subr.mxu0 0.0
    %2603 = vmatpush1.msra.mxu0 0.0
    %2604 = vmatprep.subr.mxu0 0.0
    %2605 = vmatpush1.msra.mxu0 0.0
    %2606 = vmatprep.subr.mxu0 0.0
    %2607 = vmatpush1.msra.mxu0 0.0
    %2608 = vmatprep.subr.mxu0 0.0
    %2609 = vmatpush1.msra.mxu0 0.0
    %2610 = vmatprep.subr.mxu0 0.0
    %2611 = vmatpush1.msra.mxu0 0.0
    %2612 = vmatprep.subr.mxu0 0.0
    %2613 = vmatpush1.msra.mxu0 0.0
    %2614 = vmatprep.subr.mxu0 0.0
    %2615 = vmatpush1.msra.mxu0 0.0
    %2616 = vmatprep.subr.mxu0 0.0
    %2617 = vmatpush1.msra.mxu0 0.0
    %2618 = vmatprep.subr.mxu0 0.0
    %2619 = vmatpush1.msra.mxu0 0.0
    %2620 = vmatprep.subr.mxu0 0.0
    %2621 = vmatpush1.msra.mxu0 0.0
    %2622 = vmatprep.subr.mxu0 0.0
    %2623 = vmatpush1.msra.mxu0 0.0
    %2624 = vmatprep.subr.mxu0 0.0
    %2625 = vmatpush1.msra.mxu0 0.0
    %2626 = vmatprep.subr.mxu0 0.0
    %2627 = vmatpush1.msra.mxu0 0.0
    %2628 = vmatprep.subr.mxu0 0.0
    %2629 = vmatpush1.msra.mxu0 0.0
    %2630 = vmatprep.mubr.f32.mxu0 0.0
    %2631 = vmatmul.mubr.f32.gmra.mrb[0].mxu0 %v2559
    %v2632 = vpop.f32.mrb[0].mxu0
    %v2633 = vadd.f32 0.0, %v2632
    %v2634 = vpop.f32.mrb[0].mxu0
    %2635 = vmatprep.mubr.f32.mxu0 0.0
    %2636 = vmatmul.mubr.f32.gmra.mrb[0].mxu0 %v2562
    %v2637 = vpop.f32.mrb[0].mxu0
    %v2638 = vadd.f32 0.0, %v2637
    %v2639 = vpop.f32.mrb[0].mxu0
    %2640 = vdwg.mxu0
    %2641 = vrot.lane.b32.xlu0 %v2422, 112
    %v2642 = vpop.permute.xlu0 %2641
    %2643 = vrot.lane.b32.xlu0 %v2427, 112
    %v2644 = vpop.permute.xlu0 %2643
    %2645 = vrot.lane.b32.xlu0 %v2422, 80
    %v2646 = vpop.permute.xlu0 %2645
    %2647 = vrot.lane.b32.xlu0 %v2427, 80
    %v2648 = vpop.permute.xlu0 %2647
    %v2649 = vsel %vm803, %v2642, 0
    %v2651 = vsel %vm803, %v2644, 0
    %v2653 = vsel %vm803, %v2646, 0
    %v2655 = vsel %vm803, %v2648, 0
    %2657 = vmatprep.subr.mxu0 0.0
    %2658 = vmatpush1.xpose.msra.mxu0 %v2653
    %2659 = vmatprep.subr.mxu0 0.0
    %2660 = vmatpush1.xpose.msra.mxu0 %v2655
    %2661 = vmatprep.subr.mxu0 0.0
    %2662 = vmatpush1.xpose.msra.mxu0 0.0
    %2663 = vmatprep.subr.mxu0 0.0
    %2664 = vmatpush1.xpose.msra.mxu0 0.0
    %2665 = vmatprep.subr.mxu0 0.0
    %2666 = vmatpush1.xpose.msra.mxu0 0.0
    %2667 = vmatprep.subr.mxu0 0.0
    %2668 = vmatpush1.xpose.msra.mxu0 0.0
    %2669 = vmatprep.subr.mxu0 0.0
    %2670 = vmatpush1.xpose.msra.mxu0 0.0
    %2671 = vmatprep.subr.mxu0 0.0
    %2672 = vmatpush1.xpose.msra.mxu0 0.0
    %2673 = vmatprep.subr.mxu0 0.0
    %2674 = vmatpush1.xpose.msra.mxu0 0.0
    %2675 = vmatprep.subr.mxu0 0.0
    %2676 = vmatpush1.xpose.msra.mxu0 0.0
    %2677 = vmatprep.subr.mxu0 0.0
    %2678 = vmatpush1.xpose.msra.mxu0 0.0
    %2679 = vmatprep.subr.mxu0 0.0
    %2680 = vmatpush1.xpose.msra.mxu0 0.0
    %2681 = vmatprep.subr.mxu0 0.0
    %2682 = vmatpush1.xpose.msra.mxu0 0.0
    %2683 = vmatprep.subr.mxu0 0.0
    %2684 = vmatpush1.xpose.msra.mxu0 0.0
    %2685 = vmatprep.subr.mxu0 0.0
    %2686 = vmatpush1.xpose.msra.mxu0 0.0
    %2687 = vmatprep.subr.mxu0 0.0
    %2688 = vmatpush1.xpose.msra.mxu0 0.0
    %2689 = vmatprep.subr.mxu0 0.0
    %2690 = vmatpush1.xpose.msra.mxu0 0.0
    %2691 = vmatprep.subr.mxu0 0.0
    %2692 = vmatpush1.xpose.msra.mxu0 0.0
    %2693 = vmatprep.subr.mxu0 0.0
    %2694 = vmatpush1.xpose.msra.mxu0 0.0
    %2695 = vmatprep.subr.mxu0 0.0
    %2696 = vmatpush1.xpose.msra.mxu0 0.0
    %2697 = vmatprep.subr.mxu0 0.0
    %2698 = vmatpush1.xpose.msra.mxu0 0.0
    %2699 = vmatprep.subr.mxu0 0.0
    %2700 = vmatpush1.xpose.msra.mxu0 0.0
    %2701 = vmatprep.subr.mxu0 0.0
    %2702 = vmatpush1.xpose.msra.mxu0 0.0
    %2703 = vmatprep.subr.mxu0 0.0
    %2704 = vmatpush1.xpose.msra.mxu0 0.0
    %2705 = vmatprep.subr.mxu0 0.0
    %2706 = vmatpush1.xpose.msra.mxu0 0.0
    %2707 = vmatprep.subr.mxu0 0.0
    %2708 = vmatpush1.xpose.msra.mxu0 0.0
    %2709 = vmatprep.subr.mxu0 0.0
    %2710 = vmatpush1.xpose.msra.mxu0 0.0
    %2711 = vmatprep.subr.mxu0 0.0
    %2712 = vmatpush1.xpose.msra.mxu0 0.0
    %2713 = vmatprep.subr.mxu0 0.0
    %2714 = vmatpush1.xpose.msra.mxu0 0.0
    %2715 = vmatprep.subr.mxu0 0.0
    %2716 = vmatpush1.xpose.msra.mxu0 0.0
    %2717 = vmatprep.subr.mxu0 0.0
    %2718 = vmatpush1.xpose.msra.mxu0 0.0
    %2719 = vmatprep.subr.mxu0 0.0
    %2720 = vmatpush1.xpose.msra.mxu0 0.0
    %2721 = vmatprep.mubr.f32.mxu0 0.0
    %2722 = vmatmul.mubr.f32.gmra.mrb[0].mxu0 %v2649
    %v2723 = vpop.f32.mrb[0].mxu0
    %v2724 = vadd.f32 0.0, %v2723
    %v2725 = vpop.f32.mrb[0].mxu0
    %2726 = vmatprep.mubr.f32.mxu0 0.0
    %2727 = vmatmul.mubr.f32.gmra.mrb[0].mxu0 %v2651
    %v2728 = vpop.f32.mrb[0].mxu0
    %v2729 = vadd.f32 0.0, %v2728
    %v2730 = vpop.f32.mrb[0].mxu0
    %2731 = vdwg.mxu0
    %v2732 = vmul.f32 %v2724, 0.25
    %v2733 = vmul.f32 %v2729, 0.25
    %v2734 = vsel %vm889, %v2732, -inf
    %2735 = vmax.xlane.f32.xlu0 %v2734
    %v2736 = vpop.xlane.xlu0 %2735
    %v2737 = vsel %vm893, %v2733, -inf
    %2738 = vmax.xlane.f32.xlu0 %v2737
    %v2739 = vpop.xlane.xlu0 %2738
    %v2740 = vsub.f32 %v2732, %v2736
    %v2741 = vsub.f32 %v2733, %v2739
    %v2742 = vmul.f32 %v2740, 1.442695
    %v2743 = vpow.pop %v2742
    %v2744 = vmul.f32 %v2741, 1.442695
    %v2745 = vpow.pop %v2744
    %v2746 = vsel %vm889, %v2743, 0.0
    %2747 = vadd.xlane.f32.xlu0 %v2746
    %v2748 = vpop.xlane.xlu0 %2747
    %v2749 = vsel %vm893, %v2745, 0.0
    %2750 = vadd.xlane.f32.xlu0 %v2749
    %v2751 = vpop.xlane.xlu0 %2750
    %v2752 = vrcp.pop %v2748
    %v2753 = vmul.f32 %v2743, %v2752
    %v2754 = vrcp.pop %v2751
    %v2755 = vmul.f32 %v2745, %v2754
    %2756 = vrot.lane.b32.xlu0 %v2422, 48
    %v2757 = vpop.permute.xlu0 %2756
    %2758 = vrot.lane.b32.xlu0 %v2427, 48
    %v2759 = vpop.permute.xlu0 %2758
    %v2762 = vsel %vm889, %v2753, 0
    %v2765 = vsel %vm889, %v2755, 0
    %v2767 = vsel %vm614, %v2759, 0
    %2769 = vmatprep.subr.mxu0 0.0
    %2770 = vmatpush1.msra.mxu0 %v2757
    %2771 = vmatprep.subr.mxu0 0.0
    %2772 = vmatpush1.msra.mxu0 %v2767
    %2773 = vmatprep.subr.mxu0 0.0
    %2774 = vmatpush1.msra.mxu0 0.0
    %2775 = vmatprep.subr.mxu0 0.0
    %2776 = vmatpush1.msra.mxu0 0.0
    %2777 = vmatprep.subr.mxu0 0.0
    %2778 = vmatpush1.msra.mxu0 0.0
    %2779 = vmatprep.subr.mxu0 0.0
    %2780 = vmatpush1.msra.mxu0 0.0
    %2781 = vmatprep.subr.mxu0 0.0
    %2782 = vmatpush1.msra.mxu0 0.0
    %2783 = vmatprep.subr.mxu0 0.0
    %2784 = vmatpush1.msra.mxu0 0.0
    %2785 = vmatprep.subr.mxu0 0.0
    %2786 = vmatpush1.msra.mxu0 0.0
    %2787 = vmatprep.subr.mxu0 0.0
    %2788 = vmatpush1.msra.mxu0 0.0
    %2789 = vmatprep.subr.mxu0 0.0
    %2790 = vmatpush1.msra.mxu0 0.0
    %2791 = vmatprep.subr.mxu0 0.0
    %2792 = vmatpush1.msra.mxu0 0.0
    %2793 = vmatprep.subr.mxu0 0.0
    %2794 = vmatpush1.msra.mxu0 0.0
    %2795 = vmatprep.subr.mxu0 0.0
    %2796 = vmatpush1.msra.mxu0 0.0
    %2797 = vmatprep.subr.mxu0 0.0
    %2798 = vmatpush1.msra.mxu0 0.0
    %2799 = vmatprep.subr.mxu0 0.0
    %2800 = vmatpush1.msra.mxu0 0.0
    %2801 = vmatprep.subr.mxu0 0.0
    %2802 = vmatpush1.msra.mxu0 0.0
    %2803 = vmatprep.subr.mxu0 0.0
    %2804 = vmatpush1.msra.mxu0 0.0
    %2805 = vmatprep.subr.mxu0 0.0
    %2806 = vmatpush1.msra.mxu0 0.0
    %2807 = vmatprep.subr.mxu0 0.0
    %2808 = vmatpush1.msra.mxu0 0.0
    %2809 = vmatprep.subr.mxu0 0.0
    %2810 = vmatpush1.msra.mxu0 0.0
    %2811 = vmatprep.subr.mxu0 0.0
    %2812 = vmatpush1.msra.mxu0 0.0
    %2813 = vmatprep.subr.mxu0 0.0
    %2814 = vmatpush1.msra.mxu0 0.0
    %2815 = vmatprep.subr.mxu0 0.0
    %2816 = vmatpush1.msra.mxu0 0.0
    %2817 = vmatprep.subr.mxu0 0.0
    %2818 = vmatpush1.msra.mxu0 0.0
    %2819 = vmatprep.subr.mxu0 0.0
    %2820 = vmatpush1.msra.mxu0 0.0
    %2821 = vmatprep.subr.mxu0 0.0
    %2822 = vmatpush1.msra.mxu0 0.0
    %2823 = vmatprep.subr.mxu0 0.0
    %2824 = vmatpush1.msra.mxu0 0.0
    %2825 = vmatprep.subr.mxu0 0.0
    %2826 = vmatpush1.msra.mxu0 0.0
    %2827 = vmatprep.subr.mxu0 0.0
    %2828 = vmatpush1.msra.mxu0 0.0
    %2829 = vmatprep.subr.mxu0 0.0
    %2830 = vmatpush1.msra.mxu0 0.0
    %2831 = vmatprep.subr.mxu0 0.0
    %2832 = vmatpush1.msra.mxu0 0.0
    %2833 = vmatprep.mubr.f32.mxu0 0.0
    %2834 = vmatmul.mubr.f32.gmra.mrb[0].mxu0 %v2762
    %v2835 = vpop.f32.mrb[0].mxu0
    %v2836 = vadd.f32 0.0, %v2835
    %v2837 = vpop.f32.mrb[0].mxu0
    %2838 = vmatprep.mubr.f32.mxu0 0.0
    %2839 = vmatmul.mubr.f32.gmra.mrb[0].mxu0 %v2765
    %v2840 = vpop.f32.mrb[0].mxu0
    %v2841 = vadd.f32 0.0, %v2840
    %v2842 = vpop.f32.mrb[0].mxu0
    %2843 = vdwg.mxu0
    %2846 = vrot.lane.b32.xlu0 %v2836, 16
    %v2847 = vpop.permute.xlu0 %2846
    %2848 = vrot.lane.b32.xlu0 %v2841, 16
    %v2849 = vpop.permute.xlu0 %2848
    %v2852 = vsel %vm803, %v2633, %v2847
    %v2853 = vsel %vm803, %v2638, %v2849
    %v2855 = vsel %vm644, %v2852, 0
    %v2858 = vsel %vm644, %v2853, 0
    %2860 = vmatprep.subr.mxu0 0.0
    %2861 = vmatpush1.msra.mxu0 %v2436
    %2862 = vmatprep.subr.mxu0 0.0
    %2863 = vmatpush1.msra.mxu0 %v2437
    %2864 = vmatprep.subr.mxu0 0.0
    %2865 = vmatpush1.msra.mxu0 %v2438
    %2866 = vmatprep.subr.mxu0 0.0
    %2867 = vmatpush1.msra.mxu0 %v2439
    %2868 = vmatprep.subr.mxu0 0.0
    %2869 = vmatpush1.msra.mxu0 0.0
    %2870 = vmatprep.subr.mxu0 0.0
    %2871 = vmatpush1.msra.mxu0 0.0
    %2872 = vmatprep.subr.mxu0 0.0
    %2873 = vmatpush1.msra.mxu0 0.0
    %2874 = vmatprep.subr.mxu0 0.0
    %2875 = vmatpush1.msra.mxu0 0.0
    %2876 = vmatprep.subr.mxu0 0.0
    %2877 = vmatpush1.msra.mxu0 0.0
    %2878 = vmatprep.subr.mxu0 0.0
    %2879 = vmatpush1.msra.mxu0 0.0
    %2880 = vmatprep.subr.mxu0 0.0
    %2881 = vmatpush1.msra.mxu0 0.0
    %2882 = vmatprep.subr.mxu0 0.0
    %2883 = vmatpush1.msra.mxu0 0.0
    %2884 = vmatprep.subr.mxu0 0.0
    %2885 = vmatpush1.msra.mxu0 0.0
    %2886 = vmatprep.subr.mxu0 0.0
    %2887 = vmatpush1.msra.mxu0 0.0
    %2888 = vmatprep.subr.mxu0 0.0
    %2889 = vmatpush1.msra.mxu0 0.0
    %2890 = vmatprep.subr.mxu0 0.0
    %2891 = vmatpush1.msra.mxu0 0.0
    %2892 = vmatprep.subr.mxu0 0.0
    %2893 = vmatpush1.msra.mxu0 0.0
    %2894 = vmatprep.subr.mxu0 0.0
    %2895 = vmatpush1.msra.mxu0 0.0
    %2896 = vmatprep.subr.mxu0 0.0
    %2897 = vmatpush1.msra.mxu0 0.0
    %2898 = vmatprep.subr.mxu0 0.0
    %2899 = vmatpush1.msra.mxu0 0.0
    %2900 = vmatprep.subr.mxu0 0.0
    %2901 = vmatpush1.msra.mxu0 0.0
    %2902 = vmatprep.subr.mxu0 0.0
    %2903 = vmatpush1.msra.mxu0 0.0
    %2904 = vmatprep.subr.mxu0 0.0
    %2905 = vmatpush1.msra.mxu0 0.0
    %2906 = vmatprep.subr.mxu0 0.0
    %2907 = vmatpush1.msra.mxu0 0.0
    %2908 = vmatprep.subr.mxu0 0.0
    %2909 = vmatpush1.msra.mxu0 0.0
    %2910 = vmatprep.subr.mxu0 0.0
    %2911 = vmatpush1.msra.mxu0 0.0
    %2912 = vmatprep.subr.mxu0 0.0
    %2913 = vmatpush1.msra.mxu0 0.0
    %2914 = vmatprep.subr.mxu0 0.0
    %2915 = vmatpush1.msra.mxu0 0.0
    %2916 = vmatprep.subr.mxu0 0.0
    %2917 = vmatpush1.msra.mxu0 0.0
    %2918 = vmatprep.subr.mxu0 0.0
    %2919 = vmatpush1.msra.mxu0 0.0
    %2920 = vmatprep.subr.mxu0 0.0
    %2921 = vmatpush1.msra.mxu0 0.0
    %2922 = vmatprep.subr.mxu0 0.0
    %2923 = vmatpush1.msra.mxu0 0.0
    %2924 = vmatprep.mubr.f32.mxu0 0.0
    %2925 = vmatmul.mubr.f32.gmra.mrb[0].mxu0 %v2855
    %v2926 = vpop.f32.mrb[0].mxu0
    %v2927 = vadd.f32 0.0, %v2926
    %v2928 = vpop.f32.mrb[0].mxu0
    %2929 = vmatprep.mubr.f32.mxu0 0.0
    %2930 = vmatmul.mubr.f32.gmra.mrb[0].mxu0 %v2858
    %v2931 = vpop.f32.mrb[0].mxu0
    %v2932 = vadd.f32 0.0, %v2931
    %v2933 = vpop.f32.mrb[0].mxu0
    %2934 = vdwg.mxu0
    %v2936 = vrot.slane %v2427, 1
    %v2937 = vrot.slane %v2432, 1
    %v2938 = vsel %vm1296, %v2936, %v2937
    %2939 = vrot.lane.b32.xlu0 %v2938, 96
    %v2940 = vpop.permute.xlu0 %2939
    %2941 = vrot.lane.b32.xlu0 %v2937, 96
    %v2942 = vpop.permute.xlu0 %2941
    %v2943 = vsel %vm803, %v2938, 0
    %v2945 = vsel %vm803, %v2937, 0
    %v2947 = vsel %vm803, %v2940, 0
    %v2949 = vsel %vm803, %v2942, 0
    %2951 = vmatprep.subr.mxu0 0.0
    %2952 = vmatpush1.xpose.msra.mxu0 %v2947
    %2953 = vmatprep.subr.mxu0 0.0
    %2954 = vmatpush1.xpose.msra.mxu0 %v2949
    %2955 = vmatprep.subr.mxu0 0.0
    %2956 = vmatpush1.xpose.msra.mxu0 0.0
    %2957 = vmatprep.subr.mxu0 0.0
    %2958 = vmatpush1.xpose.msra.mxu0 0.0
    %2959 = vmatprep.subr.mxu0 0.0
    %2960 = vmatpush1.xpose.msra.mxu0 0.0
    %2961 = vmatprep.subr.mxu0 0.0
    %2962 = vmatpush1.xpose.msra.mxu0 0.0
    %2963 = vmatprep.subr.mxu0 0.0
    %2964 = vmatpush1.xpose.msra.mxu0 0.0
    %2965 = vmatprep.subr.mxu0 0.0
    %2966 = vmatpush1.xpose.msra.mxu0 0.0
    %2967 = vmatprep.subr.mxu0 0.0
    %2968 = vmatpush1.xpose.msra.mxu0 0.0
    %2969 = vmatprep.subr.mxu0 0.0
    %2970 = vmatpush1.xpose.msra.mxu0 0.0
    %2971 = vmatprep.subr.mxu0 0.0
    %2972 = vmatpush1.xpose.msra.mxu0 0.0
    %2973 = vmatprep.subr.mxu0 0.0
    %2974 = vmatpush1.xpose.msra.mxu0 0.0
    %2975 = vmatprep.subr.mxu0 0.0
    %2976 = vmatpush1.xpose.msra.mxu0 0.0
    %2977 = vmatprep.subr.mxu0 0.0
    %2978 = vmatpush1.xpose.msra.mxu0 0.0
    %2979 = vmatprep.subr.mxu0 0.0
    %2980 = vmatpush1.xpose.msra.mxu0 0.0
    %2981 = vmatprep.subr.mxu0 0.0
    %2982 = vmatpush1.xpose.msra.mxu0 0.0
    %2983 = vmatprep.subr.mxu0 0.0
    %2984 = vmatpush1.xpose.msra.mxu0 0.0
    %2985 = vmatprep.subr.mxu0 0.0
    %2986 = vmatpush1.xpose.msra.mxu0 0.0
    %2987 = vmatprep.subr.mxu0 0.0
    %2988 = vmatpush1.xpose.msra.mxu0 0.0
    %2989 = vmatprep.subr.mxu0 0.0
    %2990 = vmatpush1.xpose.msra.mxu0 0.0
    %2991 = vmatprep.subr.mxu0 0.0
    %2992 = vmatpush1.xpose.msra.mxu0 0.0
    %2993 = vmatprep.subr.mxu0 0.0
    %2994 = vmatpush1.xpose.msra.mxu0 0.0
    %2995 = vmatprep.subr.mxu0 0.0
    %2996 = vmatpush1.xpose.msra.mxu0 0.0
    %2997 = vmatprep.subr.mxu0 0.0
    %2998 = vmatpush1.xpose.msra.mxu0 0.0
    %2999 = vmatprep.subr.mxu0 0.0
    %3000 = vmatpush1.xpose.msra.mxu0 0.0
    %3001 = vmatprep.subr.mxu0 0.0
    %3002 = vmatpush1.xpose.msra.mxu0 0.0
    %3003 = vmatprep.subr.mxu0 0.0
    %3004 = vmatpush1.xpose.msra.mxu0 0.0
    %3005 = vmatprep.subr.mxu0 0.0
    %3006 = vmatpush1.xpose.msra.mxu0 0.0
    %3007 = vmatprep.subr.mxu0 0.0
    %3008 = vmatpush1.xpose.msra.mxu0 0.0
    %3009 = vmatprep.subr.mxu0 0.0
    %3010 = vmatpush1.xpose.msra.mxu0 0.0
    %3011 = vmatprep.subr.mxu0 0.0
    %3012 = vmatpush1.xpose.msra.mxu0 0.0
    %3013 = vmatprep.subr.mxu0 0.0
    %3014 = vmatpush1.xpose.msra.mxu0 0.0
    %3015 = vmatprep.mubr.f32.mxu0 0.0
    %3016 = vmatmul.mubr.f32.gmra.mrb[0].mxu0 %v2943
    %v3017 = vpop.f32.mrb[0].mxu0
    %v3018 = vadd.f32 0.0, %v3017
    %v3019 = vpop.f32.mrb[0].mxu0
    %3020 = vmatprep.mubr.f32.mxu0 0.0
    %3021 = vmatmul.mubr.f32.gmra.mrb[0].mxu0 %v2945
    %v3022 = vpop.f32.mrb[0].mxu0
    %v3023 = vadd.f32 0.0, %v3022
    %v3024 = vpop.f32.mrb[0].mxu0
    %3025 = vdwg.mxu0
    %v3026 = vmul.f32 %v3018, 0.25
    %v3027 = vmul.f32 %v3023, 0.25
    %v3028 = vsel %vm889, %v3026, -inf
    %3029 = vmax.xlane.f32.xlu0 %v3028
    %v3030 = vpop.xlane.xlu0 %3029
    %v3031 = vsel %vm893, %v3027, -inf
    %3032 = vmax.xlane.f32.xlu0 %v3031
    %v3033 = vpop.xlane.xlu0 %3032
    %v3034 = vsub.f32 %v3026, %v3030
    %v3035 = vsub.f32 %v3027, %v3033
    %v3036 = vmul.f32 %v3034, 1.442695
    %v3037 = vpow.pop %v3036
    %v3038 = vmul.f32 %v3035, 1.442695
    %v3039 = vpow.pop %v3038
    %v3040 = vsel %vm889, %v3037, 0.0
    %3041 = vadd.xlane.f32.xlu0 %v3040
    %v3042 = vpop.xlane.xlu0 %3041
    %v3043 = vsel %vm893, %v3039, 0.0
    %3044 = vadd.xlane.f32.xlu0 %v3043
    %v3045 = vpop.xlane.xlu0 %3044
    %v3046 = vrcp.pop %v3042
    %v3047 = vmul.f32 %v3037, %v3046
    %v3048 = vrcp.pop %v3045
    %v3049 = vmul.f32 %v3039, %v3048
    %3050 = vrot.lane.b32.xlu0 %v2938, 64
    %v3051 = vpop.permute.xlu0 %3050
    %3052 = vrot.lane.b32.xlu0 %v2937, 64
    %v3053 = vpop.permute.xlu0 %3052
    %v3056 = vsel %vm889, %v3047, 0
    %v3059 = vsel %vm889, %v3049, 0
    %v3061 = vsel %vm614, %v3053, 0
    %3063 = vmatprep.subr.mxu0 0.0
    %3064 = vmatpush1.msra.mxu0 %v3051
    %3065 = vmatprep.subr.mxu0 0.0
    %3066 = vmatpush1.msra.mxu0 %v3061
    %3067 = vmatprep.subr.mxu0 0.0
    %3068 = vmatpush1.msra.mxu0 0.0
    %3069 = vmatprep.subr.mxu0 0.0
    %3070 = vmatpush1.msra.mxu0 0.0
    %3071 = vmatprep.subr.mxu0 0.0
    %3072 = vmatpush1.msra.mxu0 0.0
    %3073 = vmatprep.subr.mxu0 0.0
    %3074 = vmatpush1.msra.mxu0 0.0
    %3075 = vmatprep.subr.mxu0 0.0
    %3076 = vmatpush1.msra.mxu0 0.0
    %3077 = vmatprep.subr.mxu0 0.0
    %3078 = vmatpush1.msra.mxu0 0.0
    %3079 = vmatprep.subr.mxu0 0.0
    %3080 = vmatpush1.msra.mxu0 0.0
    %3081 = vmatprep.subr.mxu0 0.0
    %3082 = vmatpush1.msra.mxu0 0.0
    %3083 = vmatprep.subr.mxu0 0.0
    %3084 = vmatpush1.msra.mxu0 0.0
    %3085 = vmatprep.subr.mxu0 0.0
    %3086 = vmatpush1.msra.mxu0 0.0
    %3087 = vmatprep.subr.mxu0 0.0
    %3088 = vmatpush1.msra.mxu0 0.0
    %3089 = vmatprep.subr.mxu0 0.0
    %3090 = vmatpush1.msra.mxu0 0.0
    %3091 = vmatprep.subr.mxu0 0.0
    %3092 = vmatpush1.msra.mxu0 0.0
    %3093 = vmatprep.subr.mxu0 0.0
    %3094 = vmatpush1.msra.mxu0 0.0
    %3095 = vmatprep.subr.mxu0 0.0
    %3096 = vmatpush1.msra.mxu0 0.0
    %3097 = vmatprep.subr.mxu0 0.0
    %3098 = vmatpush1.msra.mxu0 0.0
    %3099 = vmatprep.subr.mxu0 0.0
    %3100 = vmatpush1.msra.mxu0 0.0
    %3101 = vmatprep.subr.mxu0 0.0
    %3102 = vmatpush1.msra.mxu0 0.0
    %3103 = vmatprep.subr.mxu0 0.0
    %3104 = vmatpush1.msra.mxu0 0.0
    %3105 = vmatprep.subr.mxu0 0.0
    %3106 = vmatpush1.msra.mxu0 0.0
    %3107 = vmatprep.subr.mxu0 0.0
    %3108 = vmatpush1.msra.mxu0 0.0
    %3109 = vmatprep.subr.mxu0 0.0
    %3110 = vmatpush1.msra.mxu0 0.0
    %3111 = vmatprep.subr.mxu0 0.0
    %3112 = vmatpush1.msra.mxu0 0.0
    %3113 = vmatprep.subr.mxu0 0.0
    %3114 = vmatpush1.msra.mxu0 0.0
    %3115 = vmatprep.subr.mxu0 0.0
    %3116 = vmatpush1.msra.mxu0 0.0
    %3117 = vmatprep.subr.mxu0 0.0
    %3118 = vmatpush1.msra.mxu0 0.0
    %3119 = vmatprep.subr.mxu0 0.0
    %3120 = vmatpush1.msra.mxu0 0.0
    %3121 = vmatprep.subr.mxu0 0.0
    %3122 = vmatpush1.msra.mxu0 0.0
    %3123 = vmatprep.subr.mxu0 0.0
    %3124 = vmatpush1.msra.mxu0 0.0
    %3125 = vmatprep.subr.mxu0 0.0
    %3126 = vmatpush1.msra.mxu0 0.0
    %3127 = vmatprep.mubr.f32.mxu0 0.0
    %3128 = vmatmul.mubr.f32.gmra.mrb[0].mxu0 %v3056
    %v3129 = vpop.f32.mrb[0].mxu0
    %v3130 = vadd.f32 0.0, %v3129
    %v3131 = vpop.f32.mrb[0].mxu0
    %3132 = vmatprep.mubr.f32.mxu0 0.0
    %3133 = vmatmul.mubr.f32.gmra.mrb[0].mxu0 %v3059
    %v3134 = vpop.f32.mrb[0].mxu0
    %v3135 = vadd.f32 0.0, %v3134
    %v3136 = vpop.f32.mrb[0].mxu0
    %3137 = vdwg.mxu0
    %3138 = vrot.lane.b32.xlu0 %v2938, 112
    %v3139 = vpop.permute.xlu0 %3138
    %3140 = vrot.lane.b32.xlu0 %v2937, 112
    %v3141 = vpop.permute.xlu0 %3140
    %3142 = vrot.lane.b32.xlu0 %v2938, 80
    %v3143 = vpop.permute.xlu0 %3142
    %3144 = vrot.lane.b32.xlu0 %v2937, 80
    %v3145 = vpop.permute.xlu0 %3144
    %v3146 = vsel %vm803, %v3139, 0
    %v3148 = vsel %vm803, %v3141, 0
    %v3150 = vsel %vm803, %v3143, 0
    %v3152 = vsel %vm803, %v3145, 0
    %3154 = vmatprep.subr.mxu0 0.0
    %3155 = vmatpush1.xpose.msra.mxu0 %v3150
    %3156 = vmatprep.subr.mxu0 0.0
    %3157 = vmatpush1.xpose.msra.mxu0 %v3152
    %3158 = vmatprep.subr.mxu0 0.0
    %3159 = vmatpush1.xpose.msra.mxu0 0.0
    %3160 = vmatprep.subr.mxu0 0.0
    %3161 = vmatpush1.xpose.msra.mxu0 0.0
    %3162 = vmatprep.subr.mxu0 0.0
    %3163 = vmatpush1.xpose.msra.mxu0 0.0
    %3164 = vmatprep.subr.mxu0 0.0
    %3165 = vmatpush1.xpose.msra.mxu0 0.0
    %3166 = vmatprep.subr.mxu0 0.0
    %3167 = vmatpush1.xpose.msra.mxu0 0.0
    %3168 = vmatprep.subr.mxu0 0.0
    %3169 = vmatpush1.xpose.msra.mxu0 0.0
    %3170 = vmatprep.subr.mxu0 0.0
    %3171 = vmatpush1.xpose.msra.mxu0 0.0
    %3172 = vmatprep.subr.mxu0 0.0
    %3173 = vmatpush1.xpose.msra.mxu0 0.0
    %3174 = vmatprep.subr.mxu0 0.0
    %3175 = vmatpush1.xpose.msra.mxu0 0.0
    %3176 = vmatprep.subr.mxu0 0.0
    %3177 = vmatpush1.xpose.msra.mxu0 0.0
    %3178 = vmatprep.subr.mxu0 0.0
    %3179 = vmatpush1.xpose.msra.mxu0 0.0
    %3180 = vmatprep.subr.mxu0 0.0
    %3181 = vmatpush1.xpose.msra.mxu0 0.0
    %3182 = vmatprep.subr.mxu0 0.0
    %3183 = vmatpush1.xpose.msra.mxu0 0.0
    %3184 = vmatprep.subr.mxu0 0.0
    %3185 = vmatpush1.xpose.msra.mxu0 0.0
    %3186 = vmatprep.subr.mxu0 0.0
    %3187 = vmatpush1.xpose.msra.mxu0 0.0
    %3188 = vmatprep.subr.mxu0 0.0
    %3189 = vmatpush1.xpose.msra.mxu0 0.0
    %3190 = vmatprep.subr.mxu0 0.0
    %3191 = vmatpush1.xpose.msra.mxu0 0.0
    %3192 = vmatprep.subr.mxu0 0.0
    %3193 = vmatpush1.xpose.msra.mxu0 0.0
    %3194 = vmatprep.subr.mxu0 0.0
    %3195 = vmatpush1.xpose.msra.mxu0 0.0
    %3196 = vmatprep.subr.mxu0 0.0
    %3197 = vmatpush1.xpose.msra.mxu0 0.0
    %3198 = vmatprep.subr.mxu0 0.0
    %3199 = vmatpush1.xpose.msra.mxu0 0.0
    %3200 = vmatprep.subr.mxu0 0.0
    %3201 = vmatpush1.xpose.msra.mxu0 0.0
    %3202 = vmatprep.subr.mxu0 0.0
    %3203 = vmatpush1.xpose.msra.mxu0 0.0
    %3204 = vmatprep.subr.mxu0 0.0
    %3205 = vmatpush1.xpose.msra.mxu0 0.0
    %3206 = vmatprep.subr.mxu0 0.0
    %3207 = vmatpush1.xpose.msra.mxu0 0.0
    %3208 = vmatprep.subr.mxu0 0.0
    %3209 = vmatpush1.xpose.msra.mxu0 0.0
    %3210 = vmatprep.subr.mxu0 0.0
    %3211 = vmatpush1.xpose.msra.mxu0 0.0
    %3212 = vmatprep.subr.mxu0 0.0
    %3213 = vmatpush1.xpose.msra.mxu0 0.0
    %3214 = vmatprep.subr.mxu0 0.0
    %3215 = vmatpush1.xpose.msra.mxu0 0.0
    %3216 = vmatprep.subr.mxu0 0.0
    %3217 = vmatpush1.xpose.msra.mxu0 0.0
    %3218 = vmatprep.mubr.f32.mxu0 0.0
    %3219 = vmatmul.mubr.f32.gmra.mrb[0].mxu0 %v3146
    %v3220 = vpop.f32.mrb[0].mxu0
    %v3221 = vadd.f32 0.0, %v3220
    %v3222 = vpop.f32.mrb[0].mxu0
    %3223 = vmatprep.mubr.f32.mxu0 0.0
    %3224 = vmatmul.mubr.f32.gmra.mrb[0].mxu0 %v3148
    %v3225 = vpop.f32.mrb[0].mxu0
    %v3226 = vadd.f32 0.0, %v3225
    %v3227 = vpop.f32.mrb[0].mxu0
    %3228 = vdwg.mxu0
    %v3229 = vmul.f32 %v3221, 0.25
    %v3230 = vmul.f32 %v3226, 0.25
    %v3231 = vsel %vm889, %v3229, -inf
    %3232 = vmax.xlane.f32.xlu0 %v3231
    %v3233 = vpop.xlane.xlu0 %3232
    %v3234 = vsel %vm893, %v3230, -inf
    %3235 = vmax.xlane.f32.xlu0 %v3234
    %v3236 = vpop.xlane.xlu0 %3235
    %v3237 = vsub.f32 %v3229, %v3233
    %v3238 = vsub.f32 %v3230, %v3236
    %v3239 = vmul.f32 %v3237, 1.442695
    %v3240 = vpow.pop %v3239
    %v3241 = vmul.f32 %v3238, 1.442695
    %v3242 = vpow.pop %v3241
    %v3243 = vsel %vm889, %v3240, 0.0
    %3244 = vadd.xlane.f32.xlu0 %v3243
    %v3245 = vpop.xlane.xlu0 %3244
    %v3246 = vsel %vm893, %v3242, 0.0
    %3247 = vadd.xlane.f32.xlu0 %v3246
    %v3248 = vpop.xlane.xlu0 %3247
    %v3249 = vrcp.pop %v3245
    %v3250 = vmul.f32 %v3240, %v3249
    %v3251 = vrcp.pop %v3248
    %v3252 = vmul.f32 %v3242, %v3251
    %3253 = vrot.lane.b32.xlu0 %v2938, 48
    %v3254 = vpop.permute.xlu0 %3253
    %3255 = vrot.lane.b32.xlu0 %v2937, 48
    %v3256 = vpop.permute.xlu0 %3255
    %v3259 = vsel %vm889, %v3250, 0
    %v3262 = vsel %vm889, %v3252, 0
    %v3264 = vsel %vm614, %v3256, 0
    %3266 = vmatprep.subr.mxu0 0.0
    %3267 = vmatpush1.msra.mxu0 %v3254
    %3268 = vmatprep.subr.mxu0 0.0
    %3269 = vmatpush1.msra.mxu0 %v3264
    %3270 = vmatprep.subr.mxu0 0.0
    %3271 = vmatpush1.msra.mxu0 0.0
    %3272 = vmatprep.subr.mxu0 0.0
    %3273 = vmatpush1.msra.mxu0 0.0
    %3274 = vmatprep.subr.mxu0 0.0
    %3275 = vmatpush1.msra.mxu0 0.0
    %3276 = vmatprep.subr.mxu0 0.0
    %3277 = vmatpush1.msra.mxu0 0.0
    %3278 = vmatprep.subr.mxu0 0.0
    %3279 = vmatpush1.msra.mxu0 0.0
    %3280 = vmatprep.subr.mxu0 0.0
    %3281 = vmatpush1.msra.mxu0 0.0
    %3282 = vmatprep.subr.mxu0 0.0
    %3283 = vmatpush1.msra.mxu0 0.0
    %3284 = vmatprep.subr.mxu0 0.0
    %3285 = vmatpush1.msra.mxu0 0.0
    %3286 = vmatprep.subr.mxu0 0.0
    %3287 = vmatpush1.msra.mxu0 0.0
    %3288 = vmatprep.subr.mxu0 0.0
    %3289 = vmatpush1.msra.mxu0 0.0
    %3290 = vmatprep.subr.mxu0 0.0
    %3291 = vmatpush1.msra.mxu0 0.0
    %3292 = vmatprep.subr.mxu0 0.0
    %3293 = vmatpush1.msra.mxu0 0.0
    %3294 = vmatprep.subr.mxu0 0.0
    %3295 = vmatpush1.msra.mxu0 0.0
    %3296 = vmatprep.subr.mxu0 0.0
    %3297 = vmatpush1.msra.mxu0 0.0
    %3298 = vmatprep.subr.mxu0 0.0
    %3299 = vmatpush1.msra.mxu0 0.0
    %3300 = vmatprep.subr.mxu0 0.0
    %3301 = vmatpush1.msra.mxu0 0.0
    %3302 = vmatprep.subr.mxu0 0.0
    %3303 = vmatpush1.msra.mxu0 0.0
    %3304 = vmatprep.subr.mxu0 0.0
    %3305 = vmatpush1.msra.mxu0 0.0
    %3306 = vmatprep.subr.mxu0 0.0
    %3307 = vmatpush1.msra.mxu0 0.0
    %3308 = vmatprep.subr.mxu0 0.0
    %3309 = vmatpush1.msra.mxu0 0.0
    %3310 = vmatprep.subr.mxu0 0.0
    %3311 = vmatpush1.msra.mxu0 0.0
    %3312 = vmatprep.subr.mxu0 0.0
    %3313 = vmatpush1.msra.mxu0 0.0
    %3314 = vmatprep.subr.mxu0 0.0
    %3315 = vmatpush1.msra.mxu0 0.0
    %3316 = vmatprep.subr.mxu0 0.0
    %3317 = vmatpush1.msra.mxu0 0.0
    %3318 = vmatprep.subr.mxu0 0.0
    %3319 = vmatpush1.msra.mxu0 0.0
    %3320 = vmatprep.subr.mxu0 0.0
    %3321 = vmatpush1.msra.mxu0 0.0
    %3322 = vmatprep.subr.mxu0 0.0
    %3323 = vmatpush1.msra.mxu0 0.0
    %3324 = vmatprep.subr.mxu0 0.0
    %3325 = vmatpush1.msra.mxu0 0.0
    %3326 = vmatprep.subr.mxu0 0.0
    %3327 = vmatpush1.msra.mxu0 0.0
    %3328 = vmatprep.subr.mxu0 0.0
    %3329 = vmatpush1.msra.mxu0 0.0
    %3330 = vmatprep.mubr.f32.mxu0 0.0
    %3331 = vmatmul.mubr.f32.gmra.mrb[0].mxu0 %v3259
    %v3332 = vpop.f32.mrb[0].mxu0
    %v3333 = vadd.f32 0.0, %v3332
    %v3334 = vpop.f32.mrb[0].mxu0
    %3335 = vmatprep.mubr.f32.mxu0 0.0
    %3336 = vmatmul.mubr.f32.gmra.mrb[0].mxu0 %v3262
    %v3337 = vpop.f32.mrb[0].mxu0
    %v3338 = vadd.f32 0.0, %v3337
    %v3339 = vpop.f32.mrb[0].mxu0
    %3340 = vdwg.mxu0
    %3343 = vrot.lane.b32.xlu0 %v3333, 16
    %v3344 = vpop.permute.xlu0 %3343
    %3345 = vrot.lane.b32.xlu0 %v3338, 16
    %v3346 = vpop.permute.xlu0 %3345
    %v3349 = vsel %vm803, %v3130, %v3344
    %v3350 = vsel %vm803, %v3135, %v3346
    %v3352 = vsel %vm644, %v3349, 0
    %v3355 = vsel %vm644, %v3350, 0
    %3357 = vmatprep.subr.mxu0 0.0
    %3358 = vmatpush1.msra.mxu0 %v2436
    %3359 = vmatprep.subr.mxu0 0.0
    %3360 = vmatpush1.msra.mxu0 %v2437
    %3361 = vmatprep.subr.mxu0 0.0
    %3362 = vmatpush1.msra.mxu0 %v2438
    %3363 = vmatprep.subr.mxu0 0.0
    %3364 = vmatpush1.msra.mxu0 %v2439
    %3365 = vmatprep.subr.mxu0 0.0
    %3366 = vmatpush1.msra.mxu0 0.0
    %3367 = vmatprep.subr.mxu0 0.0
    %3368 = vmatpush1.msra.mxu0 0.0
    %3369 = vmatprep.subr.mxu0 0.0
    %3370 = vmatpush1.msra.mxu0 0.0
    %3371 = vmatprep.subr.mxu0 0.0
    %3372 = vmatpush1.msra.mxu0 0.0
    %3373 = vmatprep.subr.mxu0 0.0
    %3374 = vmatpush1.msra.mxu0 0.0
    %3375 = vmatprep.subr.mxu0 0.0
    %3376 = vmatpush1.msra.mxu0 0.0
    %3377 = vmatprep.subr.mxu0 0.0
    %3378 = vmatpush1.msra.mxu0 0.0
    %3379 = vmatprep.subr.mxu0 0.0
    %3380 = vmatpush1.msra.mxu0 0.0
    %3381 = vmatprep.subr.mxu0 0.0
    %3382 = vmatpush1.msra.mxu0 0.0
    %3383 = vmatprep.subr.mxu0 0.0
    %3384 = vmatpush1.msra.mxu0 0.0
    %3385 = vmatprep.subr.mxu0 0.0
    %3386 = vmatpush1.msra.mxu0 0.0
    %3387 = vmatprep.subr.mxu0 0.0
    %3388 = vmatpush1.msra.mxu0 0.0
    %3389 = vmatprep.subr.mxu0 0.0
    %3390 = vmatpush1.msra.mxu0 0.0
    %3391 = vmatprep.subr.mxu0 0.0
    %3392 = vmatpush1.msra.mxu0 0.0
    %3393 = vmatprep.subr.mxu0 0.0
    %3394 = vmatpush1.msra.mxu0 0.0
    %3395 = vmatprep.subr.mxu0 0.0
    %3396 = vmatpush1.msra.mxu0 0.0
    %3397 = vmatprep.subr.mxu0 0.0
    %3398 = vmatpush1.msra.mxu0 0.0
    %3399 = vmatprep.subr.mxu0 0.0
    %3400 = vmatpush1.msra.mxu0 0.0
    %3401 = vmatprep.subr.mxu0 0.0
    %3402 = vmatpush1.msra.mxu0 0.0
    %3403 = vmatprep.subr.mxu0 0.0
    %3404 = vmatpush1.msra.mxu0 0.0
    %3405 = vmatprep.subr.mxu0 0.0
    %3406 = vmatpush1.msra.mxu0 0.0
    %3407 = vmatprep.subr.mxu0 0.0
    %3408 = vmatpush1.msra.mxu0 0.0
    %3409 = vmatprep.subr.mxu0 0.0
    %3410 = vmatpush1.msra.mxu0 0.0
    %3411 = vmatprep.subr.mxu0 0.0
    %3412 = vmatpush1.msra.mxu0 0.0
    %3413 = vmatprep.subr.mxu0 0.0
    %3414 = vmatpush1.msra.mxu0 0.0
    %3415 = vmatprep.subr.mxu0 0.0
    %3416 = vmatpush1.msra.mxu0 0.0
    %3417 = vmatprep.subr.mxu0 0.0
    %3418 = vmatpush1.msra.mxu0 0.0
    %3419 = vmatprep.subr.mxu0 0.0
    %3420 = vmatpush1.msra.mxu0 0.0
    %3421 = vmatprep.mubr.f32.mxu0 0.0
    %3422 = vmatmul.mubr.f32.gmra.mrb[0].mxu0 %v3352
    %v3423 = vpop.f32.mrb[0].mxu0
    %v3424 = vadd.f32 0.0, %v3423
    %v3425 = vpop.f32.mrb[0].mxu0
    %3426 = vmatprep.mubr.f32.mxu0 0.0
    %3427 = vmatmul.mubr.f32.gmra.mrb[0].mxu0 %v3355
    %v3428 = vpop.f32.mrb[0].mxu0
    %v3429 = vadd.f32 0.0, %v3428
    %v3430 = vpop.f32.mrb[0].mxu0
    %3431 = vdwg.mxu0
    %v3434 = vrot.slane %v3424, 7
    %v3435 = vrot.slane %v3429, 7
    %v3436 = vsel %vm614, %v3434, %v3435
    %v3439 = vsel %vm614, %v2932, %v3434
    %v3440 = vadd.f32 %v2283, %v2927
    %v3441 = vadd.f32 %v2284, %v3439
    %v3442 = vadd.f32 %v2285, %v3436
    %v3443 = vsel %vm644, %v3440, 0.0
    %3444 = vadd.xlane.f32.xlu0 %v3443
    %v3445 = vpop.xlane.xlu0 %3444
    %v3446 = vsel %vm644, %v3441, 0.0
    %3447 = vadd.xlane.f32.xlu0 %v3446
    %v3448 = vpop.xlane.xlu0 %3447
    %v3449 = vsel %vm651, %v3442, 0.0
    %3450 = vadd.xlane.f32.xlu0 %v3449
    %v3451 = vpop.xlane.xlu0 %3450
    %v3452 = vmul.f32 %v3445, %v655
    %v3453 = vmul.f32 %v3448, %v655
    %v3454 = vmul.f32 %v3451, %v655
    %v3455 = vsub.f32 %v3440, %v3452
    %v3456 = vsub.f32 %v3441, %v3453
    %v3457 = vsub.f32 %v3442, %v3454
    %v3458 = vmul.f32 %v3455, %v3455
    %v3459 = vmul.f32 %v3456, %v3456
    %v3460 = vmul.f32 %v3457, %v3457
    %v3461 = vsel %vm644, %v3458, 0.0
    %3462 = vadd.xlane.f32.xlu0 %v3461
    %v3463 = vpop.xlane.xlu0 %3462
    %v3464 = vsel %vm644, %v3459, 0.0
    %3465 = vadd.xlane.f32.xlu0 %v3464
    %v3466 = vpop.xlane.xlu0 %3465
    %v3467 = vsel %vm651, %v3460, 0.0
    %3468 = vadd.xlane.f32.xlu0 %v3467
    %v3469 = vpop.xlane.xlu0 %3468
    %v3470 = vmul.f32 %v3463, %v655
    %v3471 = vmul.f32 %v3466, %v655
    %v3472 = vmul.f32 %v3469, %v655
    %v3473 = vadd.f32 %v3470, 1e-05
    %v3474 = vadd.f32 %v3471, 1e-05
    %v3475 = vadd.f32 %v3472, 1e-05
    %v3476 = vrsqrt.pop %v3473
    %v3477 = vrsqrt.pop %v3474
    %v3478 = vrsqrt.pop %v3475
    %v3479 = vmul.f32 %v3455, %v3476
    %v3480 = vmul.f32 %v3456, %v3477
    %v3481 = vmul.f32 %v3457, %v3478
    %v3482 = vlaneseq
    %v3483 = vshrl.u32 %v3482, 7
    %v3484 = vsub.s32 2, %v3483
    %v3485 = vrot.slane %v2287, %v3484
    %v3486 = vmul.f32 %v3479, %v3485
    %v3487 = vmul.f32 %v3480, %v3485
    %v3488 = vmul.f32 %v3481, %v3485
    %v3489 = vlaneseq
    %v3490 = vshrl.u32 %v3489, 7
    %v3491 = vsub.s32 3, %v3490
    %v3492 = vrot.slane %v2287, %v3491
    %v3493 = vadd.f32 %v3486, %v3492
    %v3494 = vadd.f32 %v3487, %v3492
    %v3495 = vadd.f32 %v3488, %v3492
    %s3496 = scalar_lea.vmem %s10, 32
    %v3497 = vld [vmem:[%s3496] sm:$0xff]
    %v3498 = vld [vmem:[%s3496 + $0x8] sm:$0xff]
    %v3499 = vld [vmem:[%s3496 + $0x10] sm:$0xff]
    %v3500 = vld [vmem:[%s3496 + $0x18] sm:$0xff]
    %s3501 = scalar_lea.vmem %s11, 1
    %v3502 = vld [vmem:[%s3501] sm:$0x1]
    %v3504 = vlaneseq
    %v3505 = vshrl.u32 %v3504, 7
    %v3506 = vsub.s32 0, %v3505
    %v3507 = vrot.slane %v3502, %v3506
    %v3510 = vsel %vm644, %v3493, 0
    %v3513 = vsel %vm644, %v3494, 0
    %v3516 = vsel %vm644, %v3495, 0
    %3518 = vmatprep.subr.mxu0 0.0
    %3519 = vmatpush1.msra.mxu0 %v3497
    %3520 = vmatprep.subr.mxu0 0.0
    %3521 = vmatpush1.msra.mxu0 %v3498
    %3522 = vmatprep.subr.mxu0 0.0
    %3523 = vmatpush1.msra.mxu0 %v3499
    %3524 = vmatprep.subr.mxu0 0.0
    %3525 = vmatpush1.msra.mxu0 %v3500
    %3526 = vmatprep.subr.mxu0 0.0
    %3527 = vmatpush1.msra.mxu0 0.0
    %3528 = vmatprep.subr.mxu0 0.0
    %3529 = vmatpush1.msra.mxu0 0.0
    %3530 = vmatprep.subr.mxu0 0.0
    %3531 = vmatpush1.msra.mxu0 0.0
    %3532 = vmatprep.subr.mxu0 0.0
    %3533 = vmatpush1.msra.mxu0 0.0
    %3534 = vmatprep.subr.mxu0 0.0
    %3535 = vmatpush1.msra.mxu0 0.0
    %3536 = vmatprep.subr.mxu0 0.0
    %3537 = vmatpush1.msra.mxu0 0.0
    %3538 = vmatprep.subr.mxu0 0.0
    %3539 = vmatpush1.msra.mxu0 0.0
    %3540 = vmatprep.subr.mxu0 0.0
    %3541 = vmatpush1.msra.mxu0 0.0
    %3542 = vmatprep.subr.mxu0 0.0
    %3543 = vmatpush1.msra.mxu0 0.0
    %3544 = vmatprep.subr.mxu0 0.0
    %3545 = vmatpush1.msra.mxu0 0.0
    %3546 = vmatprep.subr.mxu0 0.0
    %3547 = vmatpush1.msra.mxu0 0.0
    %3548 = vmatprep.subr.mxu0 0.0
    %3549 = vmatpush1.msra.mxu0 0.0
    %3550 = vmatprep.subr.mxu0 0.0
    %3551 = vmatpush1.msra.mxu0 0.0
    %3552 = vmatprep.subr.mxu0 0.0
    %3553 = vmatpush1.msra.mxu0 0.0
    %3554 = vmatprep.subr.mxu0 0.0
    %3555 = vmatpush1.msra.mxu0 0.0
    %3556 = vmatprep.subr.mxu0 0.0
    %3557 = vmatpush1.msra.mxu0 0.0
    %3558 = vmatprep.subr.mxu0 0.0
    %3559 = vmatpush1.msra.mxu0 0.0
    %3560 = vmatprep.subr.mxu0 0.0
    %3561 = vmatpush1.msra.mxu0 0.0
    %3562 = vmatprep.subr.mxu0 0.0
    %3563 = vmatpush1.msra.mxu0 0.0
    %3564 = vmatprep.subr.mxu0 0.0
    %3565 = vmatpush1.msra.mxu0 0.0
    %3566 = vmatprep.subr.mxu0 0.0
    %3567 = vmatpush1.msra.mxu0 0.0
    %3568 = vmatprep.subr.mxu0 0.0
    %3569 = vmatpush1.msra.mxu0 0.0
    %3570 = vmatprep.subr.mxu0 0.0
    %3571 = vmatpush1.msra.mxu0 0.0
    %3572 = vmatprep.subr.mxu0 0.0
    %3573 = vmatpush1.msra.mxu0 0.0
    %3574 = vmatprep.subr.mxu0 0.0
    %3575 = vmatpush1.msra.mxu0 0.0
    %3576 = vmatprep.subr.mxu0 0.0
    %3577 = vmatpush1.msra.mxu0 0.0
    %3578 = vmatprep.subr.mxu0 0.0
    %3579 = vmatpush1.msra.mxu0 0.0
    %3580 = vmatprep.subr.mxu0 0.0
    %3581 = vmatpush1.msra.mxu0 0.0
    %3582 = vmatprep.mubr.f32.mxu0 0.0
    %3583 = vmatmul.mubr.f32.gmra.mrb[0].mxu0 %v3510
    %v3584 = vpop.f32.mrb[0].mxu0
    %v3585 = vadd.f32 %v3507, %v3584
    %v3586 = vpop.f32.mrb[0].mxu0
    %3587 = vmatprep.mubr.f32.mxu0 0.0
    %3588 = vmatmul.mubr.f32.gmra.mrb[0].mxu0 %v3513
    %v3589 = vpop.f32.mrb[0].mxu0
    %v3590 = vadd.f32 %v3507, %v3589
    %v3591 = vpop.f32.mrb[0].mxu0
    %3592 = vmatprep.mubr.f32.mxu0 0.0
    %3593 = vmatmul.mubr.f32.gmra.mrb[0].mxu0 %v3516
    %v3594 = vpop.f32.mrb[0].mxu0
    %v3595 = vadd.f32 %v3507, %v3594
    %v3596 = vpop.f32.mrb[0].mxu0
    %3597 = vdwg.mxu0
    %v3598 = vmul.f32 %v3585, 0.5
    %v3599 = vmul.f32 %v3590, 0.5
    %v3600 = vmul.f32 %v3595, 0.5
    %v3601 = vmul.f32 %v3585, 0.044715
    %v3602 = vmul.f32 %v3590, 0.044715
    %v3603 = vmul.f32 %v3595, 0.044715
    %v3604 = vmul.f32 %v3601, %v3585
    %v3605 = vmul.f32 %v3602, %v3590
    %v3606 = vmul.f32 %v3603, %v3595
    %v3607 = vmul.f32 %v3604, %v3585
    %v3608 = vmul.f32 %v3605, %v3590
    %v3609 = vmul.f32 %v3606, %v3595
    %v3610 = vadd.f32 %v3585, %v3607
    %v3611 = vadd.f32 %v3590, %v3608
    %v3612 = vadd.f32 %v3595, %v3609
    %v3613 = vmul.f32 %v3610, 0.7978846
    %v3614 = vmul.f32 %v3611, 0.7978846
    %v3615 = vmul.f32 %v3612, 0.7978846
    %v3616 = vtanh.pop %v3613
    %v3617 = vtanh.pop %v3614
    %v3618 = vtanh.pop %v3615
    %v3619 = vadd.f32 %v3616, 1.0
    %v3620 = vadd.f32 %v3617, 1.0
    %v3621 = vadd.f32 %v3618, 1.0
    %v3622 = vmul.f32 %v3598, %v3619
    %v3623 = vmul.f32 %v3599, %v3620
    %v3624 = vmul.f32 %v3600, %v3621
    %s3625 = scalar_lea.vmem %s12, 64
    %v3626 = vld [vmem:[%s3625] sm:$0xff]
    %v3627 = vld [vmem:[%s3625 + $0x8] sm:$0xff]
    %v3628 = vld [vmem:[%s3625 + $0x10] sm:$0xff]
    %v3629 = vld [vmem:[%s3625 + $0x18] sm:$0xff]
    %v3630 = vld [vmem:[%s3625 + $0x20] sm:$0xff]
    %v3631 = vld [vmem:[%s3625 + $0x28] sm:$0xff]
    %v3632 = vld [vmem:[%s3625 + $0x30] sm:$0xff]
    %v3633 = vld [vmem:[%s3625 + $0x38] sm:$0xff]
    %v3634 = vlaneseq
    %v3635 = vshrl.u32 %v3634, 7
    %v3636 = vsub.s32 4, %v3635
    %v3637 = vrot.slane %v2287, %v3636
    %v3639 = vsel %vm400, %v3622, 0
    %v3642 = vsel %vm400, %v3623, 0
    %v3645 = vsel %vm400, %v3624, 0
    %3647 = vmatprep.subr.mxu0 0.0
    %3648 = vmatpush1.msra.mxu0 %v3626
    %3649 = vmatprep.subr.mxu0 0.0
    %3650 = vmatpush1.msra.mxu0 %v3627
    %3651 = vmatprep.subr.mxu0 0.0
    %3652 = vmatpush1.msra.mxu0 %v3628
    %3653 = vmatprep.subr.mxu0 0.0
    %3654 = vmatpush1.msra.mxu0 %v3629
    %3655 = vmatprep.subr.mxu0 0.0
    %3656 = vmatpush1.msra.mxu0 %v3630
    %3657 = vmatprep.subr.mxu0 0.0
    %3658 = vmatpush1.msra.mxu0 %v3631
    %3659 = vmatprep.subr.mxu0 0.0
    %3660 = vmatpush1.msra.mxu0 %v3632
    %3661 = vmatprep.subr.mxu0 0.0
    %3662 = vmatpush1.msra.mxu0 %v3633
    %3663 = vmatprep.subr.mxu0 0.0
    %3664 = vmatpush1.msra.mxu0 0.0
    %3665 = vmatprep.subr.mxu0 0.0
    %3666 = vmatpush1.msra.mxu0 0.0
    %3667 = vmatprep.subr.mxu0 0.0
    %3668 = vmatpush1.msra.mxu0 0.0
    %3669 = vmatprep.subr.mxu0 0.0
    %3670 = vmatpush1.msra.mxu0 0.0
    %3671 = vmatprep.subr.mxu0 0.0
    %3672 = vmatpush1.msra.mxu0 0.0
    %3673 = vmatprep.subr.mxu0 0.0
    %3674 = vmatpush1.msra.mxu0 0.0
    %3675 = vmatprep.subr.mxu0 0.0
    %3676 = vmatpush1.msra.mxu0 0.0
    %3677 = vmatprep.subr.mxu0 0.0
    %3678 = vmatpush1.msra.mxu0 0.0
    %3679 = vmatprep.subr.mxu0 0.0
    %3680 = vmatpush1.msra.mxu0 0.0
    %3681 = vmatprep.subr.mxu0 0.0
    %3682 = vmatpush1.msra.mxu0 0.0
    %3683 = vmatprep.subr.mxu0 0.0
    %3684 = vmatpush1.msra.mxu0 0.0
    %3685 = vmatprep.subr.mxu0 0.0
    %3686 = vmatpush1.msra.mxu0 0.0
    %3687 = vmatprep.subr.mxu0 0.0
    %3688 = vmatpush1.msra.mxu0 0.0
    %3689 = vmatprep.subr.mxu0 0.0
    %3690 = vmatpush1.msra.mxu0 0.0
    %3691 = vmatprep.subr.mxu0 0.0
    %3692 = vmatpush1.msra.mxu0 0.0
    %3693 = vmatprep.subr.mxu0 0.0
    %3694 = vmatpush1.msra.mxu0 0.0
    %3695 = vmatprep.subr.mxu0 0.0
    %3696 = vmatpush1.msra.mxu0 0.0
    %3697 = vmatprep.subr.mxu0 0.0
    %3698 = vmatpush1.msra.mxu0 0.0
    %3699 = vmatprep.subr.mxu0 0.0
    %3700 = vmatpush1.msra.mxu0 0.0
    %3701 = vmatprep.subr.mxu0 0.0
    %3702 = vmatpush1.msra.mxu0 0.0
    %3703 = vmatprep.subr.mxu0 0.0
    %3704 = vmatpush1.msra.mxu0 0.0
    %3705 = vmatprep.subr.mxu0 0.0
    %3706 = vmatpush1.msra.mxu0 0.0
    %3707 = vmatprep.subr.mxu0 0.0
    %3708 = vmatpush1.msra.mxu0 0.0
    %3709 = vmatprep.subr.mxu0 0.0
    %3710 = vmatpush1.msra.mxu0 0.0
    %3711 = vmatprep.mubr.f32.mxu0 0.0
    %3712 = vmatmul.mubr.f32.gmra.mrb[0].mxu0 %v3639
    %v3713 = vpop.f32.mrb[0].mxu0
    %v3714 = vadd.f32 %v3637, %v3713
    %v3715 = vpop.f32.mrb[0].mxu0
    %3716 = vmatprep.mubr.f32.mxu0 0.0
    %3717 = vmatmul.mubr.f32.gmra.mrb[0].mxu0 %v3642
    %v3718 = vpop.f32.mrb[0].mxu0
    %v3719 = vadd.f32 %v3637, %v3718
    %v3720 = vpop.f32.mrb[0].mxu0
    %3721 = vmatprep.mubr.f32.mxu0 0.0
    %3722 = vmatmul.mubr.f32.gmra.mrb[0].mxu0 %v3645
    %v3723 = vpop.f32.mrb[0].mxu0
    %v3724 = vadd.f32 %v3637, %v3723
    %v3725 = vpop.f32.mrb[0].mxu0
    %3726 = vdwg.mxu0
    %v3727 = vadd.f32 %v3714, %v3440
    %v3728 = vadd.f32 %v3719, %v3441
    %v3729 = vadd.f32 %v3724, %v3442
    %s3730 = sld [smem:[#allocation2 + $0x80]]
    %v3731 = vstv %s3730
    %v3732 = vmul.f32 %v3731, %v2190
    %s3733 = sld [smem:[#allocation2 + $0x81]]
    %v3734 = vstv %s3733
    %v3735 = vadd.f32 %v3732, %v3734
    %v3736 = vmax.f32 %v3735, 0.0
    %3738 = vrot.lane.b32.xlu0 %v3736, 1
    %v3739 = vpop.permute.xlu0 %3738
    %v3741 = vsel %vm72, 0.0, %v3739
    %3742 = vrot.lane.b32.xlu0 %v3736, 97
    %v3743 = vpop.permute.xlu0 %3742
    %v3745 = vsel %vm72, 0.0, %v3743
    %3747 = vrot.lane.b32.xlu0 %v3745, 32
    %v3748 = vpop.permute.xlu0 %3747
    %v3750 = vsel %vm644, %v3741, %v3748
    %3751 = vrot.lane.b32.xlu0 %v3736, 127
    %v3752 = vpop.permute.xlu0 %3751
    %v3754 = vsel %vm2112, %v3752, 0.0
    %3755 = vrot.lane.b32.xlu0 %v3736, 95
    %v3756 = vpop.permute.xlu0 %3755
    %v3758 = vsel %vm2112, %v3756, 0.0
    %3760 = vrot.lane.b32.xlu0 %v3758, 32
    %v3761 = vpop.permute.xlu0 %3760
    %v3763 = vsel %vm644, %v3754, %v3761
    %v3765 = vrot.slane %v3750, 7
    %v3767 = vsel %vm614, 0.0, %v3765
    %s3768 = sld [smem:[#allocation2 + $0x82]]
    %v3769 = vstv %s3768
    %v3770 = vmul.f32 %v3769, %v3767
    %v3771 = vadd.f32 %v3770, 0.0
    %s3772 = sld [smem:[#allocation2 + $0x85]]
    %v3773 = vstv %s3772
    %v3774 = vmul.f32 %v3773, %v3750
    %v3775 = vadd.f32 %v3771, %v3774
    %v3776 = vrot.slane %v3750, 1
    %v3778 = vsel %vm1296, %v3776, 0.0
    %s3779 = sld [smem:[#allocation2 + $0x88]]
    %v3780 = vstv %s3779
    %v3781 = vmul.f32 %v3780, %v3778
    %v3782 = vadd.f32 %v3775, %v3781
    %v3783 = vrot.slane %v3736, 7
    %v3785 = vsel %vm614, 0.0, %v3783
    %s3786 = sld [smem:[#allocation2 + $0x83]]
    %v3787 = vstv %s3786
    %v3788 = vmul.f32 %v3787, %v3785
    %v3789 = vadd.f32 %v3782, %v3788
    %s3790 = sld [smem:[#allocation2 + $0x86]]
    %v3791 = vstv %s3790
    %v3792 = vmul.f32 %v3791, %v3736
    %v3793 = vadd.f32 %v3789, %v3792
    %v3794 = vrot.slane %v3736, 1
    %v3796 = vsel %vm1296, %v3794, 0.0
    %s3797 = sld [smem:[#allocation2 + $0x89]]
    %v3798 = vstv %s3797
    %v3799 = vmul.f32 %v3798, %v3796
    %v3800 = vadd.f32 %v3793, %v3799
    %v3802 = vrot.slane %v3763, 7
    %v3804 = vsel %vm614, 0.0, %v3802
    %s3805 = sld [smem:[#allocation2 + $0x84]]
    %v3806 = vstv %s3805
    %v3807 = vmul.f32 %v3806, %v3804
    %v3808 = vadd.f32 %v3800, %v3807
    %s3809 = sld [smem:[#allocation2 + $0x87]]
    %v3810 = vstv %s3809
    %v3811 = vmul.f32 %v3810, %v3763
    %v3812 = vadd.f32 %v3808, %v3811
    %v3813 = vrot.slane %v3763, 1
    %v3815 = vsel %vm1296, %v3813, 0.0
    %s3816 = sld [smem:[#allocation2 + $0x8a]]
    %v3817 = vstv %s3816
    %v3818 = vmul.f32 %v3817, %v3815
    %v3819 = vadd.f32 %v3812, %v3818
    %s3820 = sld [smem:[#allocation2 + $0x8b]]
    %v3821 = vstv %s3820
    %v3822 = vadd.f32 %v3819, %v3821
    %v3823 = vmax.f32 %v3822, 0.0
    %s3824 = sld [smem:[#allocation2 + $0x8c]]
    %v3825 = vstv %s3824
    %v3826 = vmul.f32 %v3825, %v2190
    %s3827 = sld [smem:[#allocation2 + $0x8d]]
    %v3828 = vstv %s3827
    %v3829 = vadd.f32 %v3826, %v3828
    %v3830 = vadd.f32 %v3823, %v3829
    %v3831 = vmax.f32 %v3830, 0.0
    %s3832 = scalar_lea.vmem %s13, 8
    %v3833 = vld [vmem:[%s3832] sm:$0xff]
    %s3834 = scalar_lea.vmem %s14, 8
    %v3835 = vld [vmem:[%s3834] sm:$0xff]
    %3837 = vset.pattern.permute.xlu0 0
    %3838 = vperm.xlu0 %3837, %v3835
    %v3839 = vpop.permute.xlu0 %3838
    %v3842 = vsel %vm2198, %v3833, 0
    %3844 = vmatprep.subr.mxu0 0.0
    %3845 = vmatpush1.msra.mxu0 %v3831
    %3846 = vmatprep.subr.mxu0 0.0
    %3847 = vmatpush1.msra.mxu0 0.0
    %3848 = vmatprep.subr.mxu0 0.0
    %3849 = vmatpush1.msra.mxu0 0.0
    %3850 = vmatprep.subr.mxu0 0.0
    %3851 = vmatpush1.msra.mxu0 0.0
    %3852 = vmatprep.subr.mxu0 0.0
    %3853 = vmatpush1.msra.mxu0 0.0
    %3854 = vmatprep.subr.mxu0 0.0
    %3855 = vmatpush1.msra.mxu0 0.0
    %3856 = vmatprep.subr.mxu0 0.0
    %3857 = vmatpush1.msra.mxu0 0.0
    %3858 = vmatprep.subr.mxu0 0.0
    %3859 = vmatpush1.msra.mxu0 0.0
    %3860 = vmatprep.subr.mxu0 0.0
    %3861 = vmatpush1.msra.mxu0 0.0
    %3862 = vmatprep.subr.mxu0 0.0
    %3863 = vmatpush1.msra.mxu0 0.0
    %3864 = vmatprep.subr.mxu0 0.0
    %3865 = vmatpush1.msra.mxu0 0.0
    %3866 = vmatprep.subr.mxu0 0.0
    %3867 = vmatpush1.msra.mxu0 0.0
    %3868 = vmatprep.subr.mxu0 0.0
    %3869 = vmatpush1.msra.mxu0 0.0
    %3870 = vmatprep.subr.mxu0 0.0
    %3871 = vmatpush1.msra.mxu0 0.0
    %3872 = vmatprep.subr.mxu0 0.0
    %3873 = vmatpush1.msra.mxu0 0.0
    %3874 = vmatprep.subr.mxu0 0.0
    %3875 = vmatpush1.msra.mxu0 0.0
    %3876 = vmatprep.subr.mxu0 0.0
    %3877 = vmatpush1.msra.mxu0 0.0
    %3878 = vmatprep.subr.mxu0 0.0
    %3879 = vmatpush1.msra.mxu0 0.0
    %3880 = vmatprep.subr.mxu0 0.0
    %3881 = vmatpush1.msra.mxu0 0.0
    %3882 = vmatprep.subr.mxu0 0.0
    %3883 = vmatpush1.msra.mxu0 0.0
    %3884 = vmatprep.subr.mxu0 0.0
    %3885 = vmatpush1.msra.mxu0 0.0
    %3886 = vmatprep.subr.mxu0 0.0
    %3887 = vmatpush1.msra.mxu0 0.0
    %3888 = vmatprep.subr.mxu0 0.0
    %3889 = vmatpush1.msra.mxu0 0.0
    %3890 = vmatprep.subr.mxu0 0.0
    %3891 = vmatpush1.msra.mxu0 0.0
    %3892 = vmatprep.subr.mxu0 0.0
    %3893 = vmatpush1.msra.mxu0 0.0
    %3894 = vmatprep.subr.mxu0 0.0
    %3895 = vmatpush1.msra.mxu0 0.0
    %3896 = vmatprep.subr.mxu0 0.0
    %3897 = vmatpush1.msra.mxu0 0.0
    %3898 = vmatprep.subr.mxu0 0.0
    %3899 = vmatpush1.msra.mxu0 0.0
    %3900 = vmatprep.subr.mxu0 0.0
    %3901 = vmatpush1.msra.mxu0 0.0
    %3902 = vmatprep.subr.mxu0 0.0
    %3903 = vmatpush1.msra.mxu0 0.0
    %3904 = vmatprep.subr.mxu0 0.0
    %3905 = vmatpush1.msra.mxu0 0.0
    %3906 = vmatprep.subr.mxu0 0.0
    %3907 = vmatpush1.msra.mxu0 0.0
    %3908 = vmatprep.mubr.f32.mxu0 0.0
    %3909 = vmatmul.mubr.f32.gmra.mrb[0].mxu0 %v3842
    %v3910 = vpop.f32.mrb[0].mxu0
    %v3911 = vadd.f32 %v3839, %v3910
    %v3912 = vpop.f32.mrb[0].mxu0
    %3913 = vdwg.mxu0
    %v3915 = vrot.slane %v3727, 1
    %3916 = vrot.lane.b32.xlu0 %v3915, 32
    %v3917 = vpop.permute.xlu0 %3916
    %v3919 = vrot.slane %v3727, 2
    %3920 = vrot.lane.b32.xlu0 %v3919, 64
    %v3921 = vpop.permute.xlu0 %3920
    %v3923 = vrot.slane %v3727, 3
    %3924 = vrot.lane.b32.xlu0 %v3923, 96
    %v3925 = vpop.permute.xlu0 %3924
    %v3927 = vrot.slane %v3727, 4
    %v3929 = vrot.slane %v3727, 5
    %3930 = vrot.lane.b32.xlu0 %v3929, 32
    %v3931 = vpop.permute.xlu0 %3930
    %v3933 = vrot.slane %v3727, 6
    %3934 = vrot.lane.b32.xlu0 %v3933, 64
    %v3935 = vpop.permute.xlu0 %3934
    %v3938 = vrot.slane %v3728, 7
    %3939 = vrot.lane.b32.xlu0 %v3938, 96
    %v3940 = vpop.permute.xlu0 %3939
    %v3942 = vrot.slane %v3728, 1
    %v3944 = vrot.slane %v3728, 2
    %3945 = vrot.lane.b32.xlu0 %v3944, 32
    %v3946 = vpop.permute.xlu0 %3945
    %v3948 = vrot.slane %v3728, 3
    %3949 = vrot.lane.b32.xlu0 %v3948, 64
    %v3950 = vpop.permute.xlu0 %3949
    %v3952 = vrot.slane %v3728, 4
    %3953 = vrot.lane.b32.xlu0 %v3952, 96
    %v3954 = vpop.permute.xlu0 %3953
    %v3956 = vrot.slane %v3728, 5
    %v3958 = vrot.slane %v3728, 6
    %3959 = vrot.lane.b32.xlu0 %v3958, 32
    %v3960 = vpop.permute.xlu0 %3959
    %v3963 = vrot.slane %v3729, 7
    %3964 = vrot.lane.b32.xlu0 %v3963, 64
    %v3965 = vpop.permute.xlu0 %3964
    %3967 = vrot.lane.b32.xlu0 %v3729, 96
    %v3968 = vpop.permute.xlu0 %3967
    %v3970 = vsel %vm644, %v3727, %v3917
    %v3971 = vsel %vm400, %v3970, %v3921
    %vm3972 = vcmask 785408
    %v3973 = vsel %vm3972, %v3971, %v3925
    %v3974 = vsel %vm644, %v3927, %v3931
    %v3975 = vsel %vm400, %v3974, %v3935
    %v3976 = vsel %vm3972, %v3975, %v3940
    %v3977 = vsel %vm644, %v3942, %v3946
    %v3978 = vsel %vm400, %v3977, %v3950
    %v3979 = vsel %vm3972, %v3978, %v3954
    %v3980 = vsel %vm644, %v3956, %v3960
    %v3981 = vsel %vm400, %v3980, %v3965
    %v3982 = vsel %vm3972, %v3981, %v3968
    %v3984 = vrot.slane %v3911, 1
    %3985 = vrot.lane.b32.xlu0 %v3984, 32
    %v3986 = vpop.permute.xlu0 %3985
    %v3988 = vrot.slane %v3911, 2
    %3989 = vrot.lane.b32.xlu0 %v3988, 64
    %v3990 = vpop.permute.xlu0 %3989
    %v3992 = vrot.slane %v3911, 3
    %3993 = vrot.lane.b32.xlu0 %v3992, 96
    %v3994 = vpop.permute.xlu0 %3993
    %v3996 = vrot.slane %v3911, 4
    %v3998 = vrot.slane %v3911, 5
    %3999 = vrot.lane.b32.xlu0 %v3998, 32
    %v4000 = vpop.permute.xlu0 %3999
    %v4002 = vrot.slane %v3911, 6
    %4003 = vrot.lane.b32.xlu0 %v4002, 64
    %v4004 = vpop.permute.xlu0 %4003
    %v4006 = vrot.slane %v3911, 7
    %4007 = vrot.lane.b32.xlu0 %v4006, 96
    %v4008 = vpop.permute.xlu0 %4007
    %4010 = vrot.lane.b32.xlu0 %v3911, 96
    %v4011 = vpop.permute.xlu0 %4010
    %4014 = vrot.lane.b32.xlu0 %v3988, 32
    %v4015 = vpop.permute.xlu0 %4014
    %4017 = vrot.lane.b32.xlu0 %v3992, 64
    %v4018 = vpop.permute.xlu0 %4017
    %4020 = vrot.lane.b32.xlu0 %v3996, 96
    %v4021 = vpop.permute.xlu0 %4020
    %4024 = vrot.lane.b32.xlu0 %v4002, 32
    %v4025 = vpop.permute.xlu0 %4024
    %4027 = vrot.lane.b32.xlu0 %v4006, 64
    %v4028 = vpop.permute.xlu0 %4027
    %v4030 = vsel %vm644, %v3911, %v3986
    %v4031 = vsel %vm400, %v4030, %v3990
    %v4032 = vsel %vm3972, %v4031, %v3994
    %v4033 = vsel %vm644, %v3996, %v4000
    %v4034 = vsel %vm400, %v4033, %v4004
    %v4035 = vsel %vm3972, %v4034, %v4008
    %v4036 = vsel %vm644, %v4011, %v3984
    %v4037 = vsel %vm400, %v4036, %v4015
    %v4038 = vsel %vm3972, %v4037, %v4018
    %v4039 = vsel %vm644, %v4021, %v3998
    %v4040 = vsel %vm400, %v4039, %v4025
    %v4041 = vsel %vm3972, %v4040, %v4028
    %v4046 = vrot.slane %v3973, 1
    %v4047 = vrot.slane %v3976, 1
    %v4048 = vrot.slane %v3979, 1
    %v4049 = vrot.slane %v3982, 1
    %v4058 = vrot.slane %v4032, 7
    %v4059 = vrot.slane %v4035, 7
    %v4060 = vrot.slane %v4038, 7
    %v4061 = vrot.slane %v4041, 7
    %v4066 = vsel %vm614, %v4046, %v4058
    %v4067 = vsel %vm614, %v4047, %v4059
    %v4068 = vsel %vm614, %v4048, %v4060
    %v4069 = vsel %vm614, %v4049, %v4061
    %v4074 = vcombine.low %v4066, %v4067
    %v4075 = vcombine.low %v4068, %v4069
    %v4077 = vunpack.c.l.s4 1983009808
    %v4078 = vunpack.c.0.s8 %v4077
    %v4079 = vlaneseq
    %v4080 = vshrl.u32 %v4079, 7
    %v4081 = vsub.s32 %v4078, %v4080
    %v4082 = vrot.slane %v4074, %v4081
    %v4084 = vunpack.c.l.s4 1983009808
    %v4085 = vunpack.c.0.s8 %v4084
    %v4086 = vlaneseq
    %v4087 = vshrl.u32 %v4086, 7
    %v4088 = vsub.s32 %v4085, %v4087
    %v4089 = vrot.slane %v4075, %v4088
    %v4090 = vcombine.low %v4082, %v4089
    %4092 = vst [vmem:[%s16] sm:$0xff] %v4090
    // Predicated region
    $region70: #{forward.1} parent=1 // pred_check
      _
    $region71: #{forward.1} parent=1 // pred_check_branch
      %4094 = sbr.rel (0) target = $region73
    $region72: #{forward.1} parent=1 // pred_region
      _
    $region73: #{forward.1} parent=1 // pred_fallthru
      _
    // Predicated region
    $region74: #{forward.1} parent=1 // pred_check
      _
    $region75: #{forward.1} parent=1 // pred_check_branch
      %4096 = sbr.rel (0) target = $region77
    $region76: #{forward.1} parent=1 // pred_region
      _
    $region77: #{forward.1} parent=1 // pred_fallthru
      _
    %4097 = vsyncpa [#allocation3], 1

</llo_original>
